<compile_context>
chip_gen: v6e
topology: v6e:2x2x1
jax: 0.10.0
libtpu: 0.0.40
codegen_flags: <defaults>
</compile_context>

<pallas_src>
import functools

import jax
import jax.numpy as jnp
from jax.experimental import pallas as pl
from jax.experimental.pallas import tpu as pltpu


def attention_kernel(q_ref, k_ref, v_ref,
                     wq_ref, wk_ref, wv_ref, wp_ref, bp_ref,
                     o_ref,
                     qp_sc, m_sc, l_sc, acc_sc,
                     *, num_heads, head_dim, n_q, tile_m, scale):
    """One batch element x one kv tile of flash-style cross-attention.

    q_ref: (N, C) f32; k_ref/v_ref: (tile_m, C) f32; w*_ref: (C, C) bf16
    (pre-transposed so y = x @ Wt); bp_ref: (1, C) f32; o_ref: (N, C).
    Scratch: qp_sc (H, N, hd) bf16, m/l (H, N, 1) f32, acc (H, N, hd) f32.
    """
    C = num_heads * head_dim
    kv = pl.program_id(1)

    # ---- Once per batch element: project q, relayout heads, init softmax state.
    @pl.when(kv == 0)
    def _init():
        qp = jnp.dot(q_ref[...].astype(jnp.bfloat16), wq_ref[...],
                     preferred_element_type=jnp.float32)
        qp = (qp * scale).astype(jnp.bfloat16)          # fold softmax scale into q
        # Single relayout (N, C) -> (H, N, hd): heads become a batch axis so the
        # attention core below is one batched matmul/softmax/matmul instead of
        # H tiny per-head ops.
        qp_sc[...] = jnp.swapaxes(qp.reshape(n_q, num_heads, head_dim), 0, 1)
        m_sc[...] = jnp.full_like(m_sc, -jnp.inf)
        l_sc[...] = jnp.zeros_like(l_sc)
        acc_sc[...] = jnp.zeros_like(acc_sc)

    # ---- Every kv step: project this k/v tile (one MXU matmul each, all heads).
    kp = jnp.dot(k_ref[...].astype(jnp.bfloat16), wk_ref[...],
                 preferred_element_type=jnp.float32).astype(jnp.bfloat16)
    vp = jnp.dot(v_ref[...].astype(jnp.bfloat16), wv_ref[...],
                 preferred_element_type=jnp.float32).astype(jnp.bfloat16)
    kp = jnp.swapaxes(kp.reshape(tile_m, num_heads, head_dim), 0, 1)  # (H, Mt, hd)
    vp = jnp.swapaxes(vp.reshape(tile_m, num_heads, head_dim), 0, 1)  # (H, Mt, hd)

    qp = qp_sc[...]                                                   # (H, N, hd)

    # Batched scores over all heads at once (f32 MXU accumulation).
    s = jnp.einsum('hnd,hmd->hnm', qp, kp,
                   preferred_element_type=jnp.float32)                # (H, N, Mt)

    # Online (streaming) softmax in f32.
    m_prev = m_sc[...]
    m_new = jnp.maximum(m_prev, jnp.max(s, axis=-1, keepdims=True))
    alpha = jnp.exp(m_prev - m_new)
    p = jnp.exp(s - m_new)
    l_sc[...] = alpha * l_sc[...] + jnp.sum(p, axis=-1, keepdims=True)
    acc_sc[...] = alpha * acc_sc[...] + jnp.einsum(
        'hnm,hmd->hnd', p.astype(jnp.bfloat16), vp,
        preferred_element_type=jnp.float32)
    m_sc[...] = m_new

    # ---- Once per batch element: normalize, merge heads, output projection.
    @pl.when(kv == pl.num_programs(1) - 1)
    def _finalize():
        ctx = acc_sc[...] * pl.reciprocal(l_sc[...], approx=True)     # (H, N, hd)
        ctx = jnp.swapaxes(ctx.astype(jnp.bfloat16), 0, 1).reshape(n_q, C)
        out = jnp.dot(ctx, wp_ref[...],
                      preferred_element_type=jnp.float32) + bp_ref[...]
        o_ref[...] = out.astype(o_ref.dtype)       # natural (N, C) store


def _pick_kv_tile(m, target=256):
    """Largest kv tile that divides M, is a multiple of 8, and is <= target.

    ~256 keys per MXU push fits the 256-wide v6e/v7x MXU; v5e just sees two
    128-wide passes.  Small M is taken whole.
    """
    if m <= target:
        return m
    for t in range(target, 7, -8):
        if m % t == 0:
            return t
    return m


def prepare_attention_params(params, compute_dtype=jnp.bfloat16):
    """One-time (cacheable) weight prep outside the per-call hot path."""
    C = params["wq"].shape[0]
    return {
        "wq_t": jnp.asarray(params["wq"].T, compute_dtype),
        "wk_t": jnp.asarray(params["wk"].T, compute_dtype),
        "wv_t": jnp.asarray(params["wv"].T, compute_dtype),
        "wp_t": jnp.asarray(params["wp"].T, compute_dtype),
        "bp": jnp.asarray(params["bp"], jnp.float32).reshape(1, C),
    }


def attention_forward(q, k, v, prepared, *, num_heads, kv_tile=None):
    B, N, C = q.shape
    Bk, M, Ck = k.shape
    assert k.shape == v.shape and Bk == B and Ck == C
    assert C % num_heads == 0
    head_dim = C // num_heads
    scale = head_dim ** (-0.5)

    tile_m = kv_tile if kv_tile is not None else _pick_kv_tile(M)
    assert M % tile_m == 0
    num_kv = M // tile_m
    # (8, 128) tiling: f32 row blocks must be multiples of 8 rows (full tiles).
    assert N % 8 == 0 and tile_m % 8 == 0, "N and kv tile must be multiples of 8"

    # Keep q/k/v f32 on the wire (no separate HBM downcast pass); the bf16 cast
    # for the MXU happens inside the kernel.
    q2 = q.reshape(B * N, C)
    k2 = k.reshape(B * M, C)
    v2 = v.reshape(B * M, C)

    kernel = functools.partial(
        attention_kernel, num_heads=num_heads, head_dim=head_dim,
        n_q=N, tile_m=tile_m, scale=scale)

    def run(single_buffer_weights):
        def wspec(shape):
            if single_buffer_weights:
                # Constant block index across the whole grid -> no need to
                # double-buffer (saves VMEM on v7x 64 MiB / v5e 16 MiB scoped).
                return pl.BlockSpec(shape, lambda b, t: (0, 0),
                                    pipeline_mode=pl.Buffered(1))
            return pl.BlockSpec(shape, lambda b, t: (0, 0))

        grid_spec = pltpu.PrefetchScalarGridSpec(
            num_scalar_prefetch=0,
            # B * num_kv grid steps; batch axis is "parallel" (megacore on v7x),
            # kv axis is the "arbitrary" online-softmax reduction.
            grid=(B, num_kv),
            in_specs=[
                pl.BlockSpec((N, C), lambda b, t: (b, 0)),                    # q rows
                pl.BlockSpec((tile_m, C), lambda b, t: (b * num_kv + t, 0)),  # k rows
                pl.BlockSpec((tile_m, C), lambda b, t: (b * num_kv + t, 0)),  # v rows
                wspec((C, C)),   # Wq^T
                wspec((C, C)),   # Wk^T
                wspec((C, C)),   # Wv^T
                wspec((C, C)),   # Wproj^T
                wspec((1, C)),   # bproj
            ],
            out_specs=pl.BlockSpec((N, C), lambda b, t: (b, 0)),
            scratch_shapes=[
                pltpu.VMEM((num_heads, N, head_dim), jnp.bfloat16),  # projected q
                pltpu.VMEM((num_heads, N, 1), jnp.float32),          # running max
                pltpu.VMEM((num_heads, N, 1), jnp.float32),          # running sum
                pltpu.VMEM((num_heads, N, head_dim), jnp.float32),   # accumulator
            ],
        )
        return pl.pallas_call(
            kernel,
            out_shape=jax.ShapeDtypeStruct((B * N, C), q.dtype),
            grid_spec=grid_spec,
            compiler_params=pltpu.CompilerParams(
                dimension_semantics=("parallel", "arbitrary")),
        )(q2, k2, v2,
          prepared["wq_t"], prepared["wk_t"], prepared["wv_t"],
          prepared["wp_t"], prepared["bp"])

    try:
        out = jax.block_until_ready(run(single_buffer_weights=True))
    except Exception:
        # Fallback for JAX builds without pipeline_mode / Buffered(1) support on
        # constant blocks; only costs extra weight VMEM, never correctness.
        out = run(single_buffer_weights=False)

    return out.reshape(B, N, C)


def attention_reference(q, k, v, params, *, num_heads):
    """Pure-JAX f32 reference mirroring the PyTorch forward exactly."""
    B, N, C = q.shape
    _, M, _ = k.shape
    hd = C // num_heads
    scale = hd ** (-0.5)

    qp = (q @ params["wq"].T).reshape(B, N, num_heads, hd)
    kp = (k @ params["wk"].T).reshape(B, M, num_heads, hd)
    vp = (v @ params["wv"].T).reshape(B, M, num_heads, hd)

    attn = jnp.einsum('bnkc,bmkc->bknm', qp, kp) * scale
    attn = jax.nn.softmax(attn, axis=-1)
    x = jnp.einsum('bknm,bmkc->bnkc', attn, vp).reshape(B, N, C)
    return x @ params["wp"].T + params["bp"]


if __name__ == "__main__":
    # Small shapes consistent with the module: dim divisible by num_heads.
    B, N, M, C = 2, 8, 8, 32
    num_heads = 8

    key = jax.random.PRNGKey(0)
    keys = jax.random.split(key, 8)

    # Deterministic parameter init (PyTorch Linear-like uniform bound 1/sqrt(C)).
    bound = 1.0 / (C ** 0.5)
    params = {
        "wq": jax.random.uniform(keys[0], (C, C), jnp.float32, -bound, bound),
        "wk": jax.random.uniform(keys[1], (C, C), jnp.float32, -bound, bound),
        "wv": jax.random.uniform(keys[2], (C, C), jnp.float32, -bound, bound),
        "wp": jax.random.uniform(keys[3], (C, C), jnp.float32, -bound, bound),
        "bp": jax.random.uniform(keys[4], (C,), jnp.float32, -bound, bound),
    }
    # qkv_bias=False -> no q/k/v biases; attn_drop/proj_drop = 0 (identity).

    q = jax.random.normal(keys[5], (B, N, C), jnp.float32)
    k = jax.random.normal(keys[6], (B, M, C), jnp.float32)
    v = jax.random.normal(keys[7], (B, M, C), jnp.float32)

    # One-time weight prep (transpose + bf16 cast) — cache this in real use.
    prepared = prepare_attention_params(params)

    out = attention_forward(q, k, v, prepared, num_heads=num_heads)
    out = jax.block_until_ready(out)

    ref = attention_reference(q, k, v, params, num_heads=num_heads)
    assert out.shape == (B, N, C)
    # bf16 MXU operands + approx reciprocal -> looser tolerance than pure f32.
    assert jnp.allclose(out, ref, atol=5e-2, rtol=5e-2), (
        "mismatch vs reference, max abs err = "
        f"{float(jnp.max(jnp.abs(out - ref)))}")

    print("KERNEL_OK")
</pallas_src>

<mosaic_0001>
module attributes {stable_mosaic.version = 11 : i64} {
  func.func @attention_kernel(%arg0: i32, %arg1: i32, %arg2: memref<8x32xf32, #tpu.memory_space<vmem>>, %arg3: memref<8x32xf32, #tpu.memory_space<vmem>>, %arg4: memref<8x32xf32, #tpu.memory_space<vmem>>, %arg5: memref<32x32xbf16, #tpu.memory_space<vmem>>, %arg6: memref<32x32xbf16, #tpu.memory_space<vmem>>, %arg7: memref<32x32xbf16, #tpu.memory_space<vmem>>, %arg8: memref<32x32xbf16, #tpu.memory_space<vmem>>, %arg9: memref<1x32xf32, #tpu.memory_space<vmem>>, %arg10: memref<8x32xf32, #tpu.memory_space<vmem>>, %arg11: memref<8x8x4xbf16, #tpu.memory_space<vmem>>, %arg12: memref<8x8x1xf32, #tpu.memory_space<vmem>>, %arg13: memref<8x8x1xf32, #tpu.memory_space<vmem>>, %arg14: memref<8x8x4xf32, #tpu.memory_space<vmem>>) attributes {dimension_semantics = [#tpu.dimension_semantics<parallel>, #tpu.dimension_semantics<arbitrary>], iteration_bounds = array<i64: 2, 1>, scalar_prefetch = 0 : i64, scratch_operands = 4 : i64, tpu.core_type = #tpu.core_type<tc>, window_params = [{transform_indices = @transform_0, window_bounds = array<i64: 8, 32>}, {transform_indices = @transform_1, window_bounds = array<i64: 8, 32>}, {transform_indices = @transform_2, window_bounds = array<i64: 8, 32>}, {pipeline_mode = #tpu.pipeline_mode<synchronous>, transform_indices = @transform_3, window_bounds = array<i64: 32, 32>}, {pipeline_mode = #tpu.pipeline_mode<synchronous>, transform_indices = @transform_4, window_bounds = array<i64: 32, 32>}, {pipeline_mode = #tpu.pipeline_mode<synchronous>, transform_indices = @transform_5, window_bounds = array<i64: 32, 32>}, {pipeline_mode = #tpu.pipeline_mode<synchronous>, transform_indices = @transform_6, window_bounds = array<i64: 32, 32>}, {pipeline_mode = #tpu.pipeline_mode<synchronous>, transform_indices = @transform_7, window_bounds = array<i64: 1, 32>}, {transform_indices = @transform_8, window_bounds = array<i64: 8, 32>}]} {
    %c0_i32 = arith.constant 0 : i32
    %0 = arith.cmpi eq, %arg1, %c0_i32 : i32
    %1 = arith.extui %0 : i1 to i32
    %c0_i32_0 = arith.constant 0 : i32
    %2 = arith.cmpi ne, %1, %c0_i32_0 : i32
    scf.if %2 {
      %c0_36 = arith.constant 0 : index
      %c0_37 = arith.constant 0 : index
      %45 = vector.load %arg2[%c0_36, %c0_37] : memref<8x32xf32, #tpu.memory_space<vmem>>, vector<8x32xf32>
      %46 = arith.truncf %45 : vector<8x32xf32> to vector<8x32xbf16>
      %c0_38 = arith.constant 0 : index
      %c0_39 = arith.constant 0 : index
      %47 = vector.load %arg5[%c0_38, %c0_39] : memref<32x32xbf16, #tpu.memory_space<vmem>>, vector<32x32xbf16>
      %cst_40 = arith.constant dense<0.000000e+00> : vector<8x32xf32>
      %48 = tpu.matmul %46, %47, %cst_40 {dimension_numbers = #tpu.dot_dimension_numbers<[1], [0], [0], [1], [0, 0, 1, 1], [], []>} : vector<8x32xbf16>, vector<32x32xbf16>, vector<8x32xf32> -> vector<8x32xf32>
      %cst_41 = arith.constant 5.000000e-01 : f32
      %49 = vector.broadcast %cst_41 : f32 to vector<8x32xf32>
      %50 = arith.mulf %48, %49 : vector<8x32xf32>
      %51 = arith.truncf %50 : vector<8x32xf32> to vector<8x32xbf16>
      %52 = vector.shape_cast %51 : vector<8x32xbf16> to vector<8x8x4xbf16>
      %53 = tpu.transpose %52, [1, 0, 2] : vector<8x8x4xbf16> -> vector<8x8x4xbf16>
      %c0_42 = arith.constant 0 : index
      %c0_43 = arith.constant 0 : index
      %c0_44 = arith.constant 0 : index
      %54 = vector.load %arg11[%c0_42, %c0_43, %c0_44] : memref<8x8x4xbf16, #tpu.memory_space<vmem>>, vector<8x8x4xbf16>
      tpu.vector_store %arg11[%c0_42, %c0_43, %c0_44], %53 {strides = array<i32>} : memref<8x8x4xbf16, #tpu.memory_space<vmem>>, vector<8x8x4xbf16>,
      %cst_45 = arith.constant 0xFF800000 : f32
      %55 = vector.broadcast %cst_45 : f32 to vector<8x8x1xf32>
      %c0_46 = arith.constant 0 : index
      %c0_47 = arith.constant 0 : index
      %c0_48 = arith.constant 0 : index
      %56 = vector.load %arg12[%c0_46, %c0_47, %c0_48] : memref<8x8x1xf32, #tpu.memory_space<vmem>>, vector<8x8x1xf32>
      tpu.vector_store %arg12[%c0_46, %c0_47, %c0_48], %55 {strides = array<i32>} : memref<8x8x1xf32, #tpu.memory_space<vmem>>, vector<8x8x1xf32>,
      %cst_49 = arith.constant 0.000000e+00 : f32
      %57 = vector.broadcast %cst_49 : f32 to vector<8x8x1xf32>
      %c0_50 = arith.constant 0 : index
      %c0_51 = arith.constant 0 : index
      %c0_52 = arith.constant 0 : index
      %58 = vector.load %arg13[%c0_50, %c0_51, %c0_52] : memref<8x8x1xf32, #tpu.memory_space<vmem>>, vector<8x8x1xf32>
      tpu.vector_store %arg13[%c0_50, %c0_51, %c0_52], %57 {strides = array<i32>} : memref<8x8x1xf32, #tpu.memory_space<vmem>>, vector<8x8x1xf32>,
      %cst_53 = arith.constant 0.000000e+00 : f32
      %59 = vector.broadcast %cst_53 : f32 to vector<8x8x4xf32>
      %c0_54 = arith.constant 0 : index
      %c0_55 = arith.constant 0 : index
      %c0_56 = arith.constant 0 : index
      %60 = vector.load %arg14[%c0_54, %c0_55, %c0_56] : memref<8x8x4xf32, #tpu.memory_space<vmem>>, vector<8x8x4xf32>
      tpu.vector_store %arg14[%c0_54, %c0_55, %c0_56], %59 {strides = array<i32>} : memref<8x8x4xf32, #tpu.memory_space<vmem>>, vector<8x8x4xf32>,
    } else {
    }
    %c0 = arith.constant 0 : index
    %c0_1 = arith.constant 0 : index
    %3 = vector.load %arg3[%c0, %c0_1] : memref<8x32xf32, #tpu.memory_space<vmem>>, vector<8x32xf32>
    %4 = arith.truncf %3 : vector<8x32xf32> to vector<8x32xbf16>
    %c0_2 = arith.constant 0 : index
    %c0_3 = arith.constant 0 : index
    %5 = vector.load %arg6[%c0_2, %c0_3] : memref<32x32xbf16, #tpu.memory_space<vmem>>, vector<32x32xbf16>
    %cst = arith.constant dense<0.000000e+00> : vector<8x32xf32>
    %6 = tpu.matmul %4, %5, %cst {dimension_numbers = #tpu.dot_dimension_numbers<[1], [0], [0], [1], [0, 0, 1, 1], [], []>} : vector<8x32xbf16>, vector<32x32xbf16>, vector<8x32xf32> -> vector<8x32xf32>
    %7 = arith.truncf %6 : vector<8x32xf32> to vector<8x32xbf16>
    %c0_4 = arith.constant 0 : index
    %c0_5 = arith.constant 0 : index
    %8 = vector.load %arg4[%c0_4, %c0_5] : memref<8x32xf32, #tpu.memory_space<vmem>>, vector<8x32xf32>
    %9 = arith.truncf %8 : vector<8x32xf32> to vector<8x32xbf16>
    %c0_6 = arith.constant 0 : index
    %c0_7 = arith.constant 0 : index
    %10 = vector.load %arg7[%c0_6, %c0_7] : memref<32x32xbf16, #tpu.memory_space<vmem>>, vector<32x32xbf16>
    %cst_8 = arith.constant dense<0.000000e+00> : vector<8x32xf32>
    %11 = tpu.matmul %9, %10, %cst_8 {dimension_numbers = #tpu.dot_dimension_numbers<[1], [0], [0], [1], [0, 0, 1, 1], [], []>} : vector<8x32xbf16>, vector<32x32xbf16>, vector<8x32xf32> -> vector<8x32xf32>
    %12 = arith.truncf %11 : vector<8x32xf32> to vector<8x32xbf16>
    %13 = vector.shape_cast %7 : vector<8x32xbf16> to vector<8x8x4xbf16>
    %14 = tpu.transpose %13, [1, 0, 2] : vector<8x8x4xbf16> -> vector<8x8x4xbf16>
    %15 = vector.shape_cast %12 : vector<8x32xbf16> to vector<8x8x4xbf16>
    %16 = tpu.transpose %15, [1, 0, 2] : vector<8x8x4xbf16> -> vector<8x8x4xbf16>
    %c0_9 = arith.constant 0 : index
    %c0_10 = arith.constant 0 : index
    %c0_11 = arith.constant 0 : index
    %17 = vector.load %arg11[%c0_9, %c0_10, %c0_11] : memref<8x8x4xbf16, #tpu.memory_space<vmem>>, vector<8x8x4xbf16>
    "tpu.trace_start"() <{level = 10 : i32, message = "hnd,hmd->hnm"}> : () -> ()
    %cst_12 = arith.constant dense<0.000000e+00> : vector<8x8x8xf32>
    %18 = tpu.matmul %17, %14, %cst_12 {dimension_numbers = #tpu.dot_dimension_numbers<[2], [2], [1], [1], [0, 0, 0, 1, 1, 1], [0], [0]>} : vector<8x8x4xbf16>, vector<8x8x4xbf16>, vector<8x8x8xf32> -> vector<8x8x8xf32>
    "tpu.trace_stop"() : () -> ()
    %c0_13 = arith.constant 0 : index
    %c0_14 = arith.constant 0 : index
    %c0_15 = arith.constant 0 : index
    %19 = vector.load %arg12[%c0_13, %c0_14, %c0_15] : memref<8x8x1xf32, #tpu.memory_space<vmem>>, vector<8x8x1xf32>
    %cst_16 = arith.constant dense<0xFF800000> : vector<8x8xf32>
    %20 = vector.multi_reduction <maximumf>, %18, %cst_16 [2] : vector<8x8x8xf32> to vector<8x8xf32>
    %21 = vector.shape_cast %20 : vector<8x8xf32> to vector<8x8x1xf32>
    %22 = arith.maximumf %19, %21 : vector<8x8x1xf32>
    %23 = arith.subf %19, %22 : vector<8x8x1xf32>
    %24 = math.exp %23 : vector<8x8x1xf32>
    %25 = vector.broadcast %22 : vector<8x8x1xf32> to vector<8x8x8xf32>
    %26 = arith.subf %18, %25 : vector<8x8x8xf32>
    %27 = math.exp %26 : vector<8x8x8xf32>
    %c0_17 = arith.constant 0 : index
    %c0_18 = arith.constant 0 : index
    %c0_19 = arith.constant 0 : index
    %28 = vector.load %arg13[%c0_17, %c0_18, %c0_19] : memref<8x8x1xf32, #tpu.memory_space<vmem>>, vector<8x8x1xf32>
    %29 = arith.mulf %24, %28 : vector<8x8x1xf32>
    %cst_20 = arith.constant dense<0.000000e+00> : vector<8x8xf32>
    %30 = vector.multi_reduction <add>, %27, %cst_20 [2] : vector<8x8x8xf32> to vector<8x8xf32>
    %31 = vector.shape_cast %30 : vector<8x8xf32> to vector<8x8x1xf32>
    %32 = arith.addf %29, %31 : vector<8x8x1xf32>
    %c0_21 = arith.constant 0 : index
    %c0_22 = arith.constant 0 : index
    %c0_23 = arith.constant 0 : index
    %33 = vector.load %arg13[%c0_21, %c0_22, %c0_23] : memref<8x8x1xf32, #tpu.memory_space<vmem>>, vector<8x8x1xf32>
    tpu.vector_store %arg13[%c0_21, %c0_22, %c0_23], %32 {strides = array<i32>} : memref<8x8x1xf32, #tpu.memory_space<vmem>>, vector<8x8x1xf32>,
    %c0_24 = arith.constant 0 : index
    %c0_25 = arith.constant 0 : index
    %c0_26 = arith.constant 0 : index
    %34 = vector.load %arg14[%c0_24, %c0_25, %c0_26] : memref<8x8x4xf32, #tpu.memory_space<vmem>>, vector<8x8x4xf32>
    %35 = vector.broadcast %24 : vector<8x8x1xf32> to vector<8x8x4xf32>
    %36 = arith.mulf %35, %34 : vector<8x8x4xf32>
    %37 = arith.truncf %27 : vector<8x8x8xf32> to vector<8x8x8xbf16>
    "tpu.trace_start"() <{level = 10 : i32, message = "hnm,hmd->hnd"}> : () -> ()
    %cst_27 = arith.constant dense<0.000000e+00> : vector<8x8x4xf32>
    %38 = tpu.matmul %37, %16, %cst_27 {dimension_numbers = #tpu.dot_dimension_numbers<[2], [1], [1], [2], [0, 0, 0, 1, 1, 2], [0], [0]>} : vector<8x8x8xbf16>, vector<8x8x4xbf16>, vector<8x8x4xf32> -> vector<8x8x4xf32>
    "tpu.trace_stop"() : () -> ()
    %39 = arith.addf %36, %38 : vector<8x8x4xf32>
    %c0_28 = arith.constant 0 : index
    %c0_29 = arith.constant 0 : index
    %c0_30 = arith.constant 0 : index
    %40 = vector.load %arg14[%c0_28, %c0_29, %c0_30] : memref<8x8x4xf32, #tpu.memory_space<vmem>>, vector<8x8x4xf32>
    tpu.vector_store %arg14[%c0_28, %c0_29, %c0_30], %39 {strides = array<i32>} : memref<8x8x4xf32, #tpu.memory_space<vmem>>, vector<8x8x4xf32>,
    %c0_31 = arith.constant 0 : index
    %c0_32 = arith.constant 0 : index
    %c0_33 = arith.constant 0 : index
    %41 = vector.load %arg12[%c0_31, %c0_32, %c0_33] : memref<8x8x1xf32, #tpu.memory_space<vmem>>, vector<8x8x1xf32>
    tpu.vector_store %arg12[%c0_31, %c0_32, %c0_33], %22 {strides = array<i32>} : memref<8x8x1xf32, #tpu.memory_space<vmem>>, vector<8x8x1xf32>,
    %c0_i32_34 = arith.constant 0 : i32
    %42 = arith.cmpi eq, %arg1, %c0_i32_34 : i32
    %43 = arith.extui %42 : i1 to i32
    %c0_i32_35 = arith.constant 0 : i32
    %44 = arith.cmpi ne, %43, %c0_i32_35 : i32
    scf.if %44 {
      %c0_36 = arith.constant 0 : index
      %c0_37 = arith.constant 0 : index
      %c0_38 = arith.constant 0 : index
      %45 = vector.load %arg14[%c0_36, %c0_37, %c0_38] : memref<8x8x4xf32, #tpu.memory_space<vmem>>, vector<8x8x4xf32>
      %c0_39 = arith.constant 0 : index
      %c0_40 = arith.constant 0 : index
      %c0_41 = arith.constant 0 : index
      %46 = vector.load %arg13[%c0_39, %c0_40, %c0_41] : memref<8x8x1xf32, #tpu.memory_space<vmem>>, vector<8x8x1xf32>
      %47 = tpu.reciprocal %46 {approx = true} : vector<8x8x1xf32> -> vector<8x8x1xf32>
      %48 = vector.broadcast %47 : vector<8x8x1xf32> to vector<8x8x4xf32>
      %49 = arith.mulf %45, %48 : vector<8x8x4xf32>
      %50 = arith.truncf %49 : vector<8x8x4xf32> to vector<8x8x4xbf16>
      %51 = tpu.transpose %50, [1, 0, 2] : vector<8x8x4xbf16> -> vector<8x8x4xbf16>
      %52 = vector.shape_cast %51 : vector<8x8x4xbf16> to vector<8x32xbf16>
      %c0_42 = arith.constant 0 : index
      %c0_43 = arith.constant 0 : index
      %53 = vector.load %arg8[%c0_42, %c0_43] : memref<32x32xbf16, #tpu.memory_space<vmem>>, vector<32x32xbf16>
      %cst_44 = arith.constant dense<0.000000e+00> : vector<8x32xf32>
      %54 = tpu.matmul %52, %53, %cst_44 {dimension_numbers = #tpu.dot_dimension_numbers<[1], [0], [0], [1], [0, 0, 1, 1], [], []>} : vector<8x32xbf16>, vector<32x32xbf16>, vector<8x32xf32> -> vector<8x32xf32>
      %c0_45 = arith.constant 0 : index
      %c0_46 = arith.constant 0 : index
      %55 = vector.load %arg9[%c0_45, %c0_46] : memref<1x32xf32, #tpu.memory_space<vmem>>, vector<1x32xf32>
      %56 = vector.broadcast %55 : vector<1x32xf32> to vector<8x32xf32>
      %57 = arith.addf %54, %56 : vector<8x32xf32>
      %c0_47 = arith.constant 0 : index
      %c0_48 = arith.constant 0 : index
      %58 = vector.load %arg10[%c0_47, %c0_48] : memref<8x32xf32, #tpu.memory_space<vmem>>, vector<8x32xf32>
      tpu.vector_store %arg10[%c0_47, %c0_48], %57 {strides = array<i32>} : memref<8x32xf32, #tpu.memory_space<vmem>>, vector<8x32xf32>,
    } else {
    }
    return
  }
  func.func @transform_0(%arg0: i32, %arg1: i32) -> (i32, i32) {
    %c0_i32 = arith.constant 0 : i32
    %c0_i32_0 = arith.constant 0 : i32
    return %arg0, %c0_i32 : i32, i32
  }
  func.func @transform_1(%arg0: i32, %arg1: i32) -> (i32, i32) {
    %c1_i32 = arith.constant 1 : i32
    %0 = arith.muli %arg0, %c1_i32 : i32
    %1 = arith.addi %0, %arg1 : i32
    %c0_i32 = arith.constant 0 : i32
    %c0_i32_0 = arith.constant 0 : i32
    return %1, %c0_i32 : i32, i32
  }
  func.func @transform_2(%arg0: i32, %arg1: i32) -> (i32, i32) {
    %c1_i32 = arith.constant 1 : i32
    %0 = arith.muli %arg0, %c1_i32 : i32
    %1 = arith.addi %0, %arg1 : i32
    %c0_i32 = arith.constant 0 : i32
    %c0_i32_0 = arith.constant 0 : i32
    return %1, %c0_i32 : i32, i32
  }
  func.func @transform_3(%arg0: i32, %arg1: i32) -> (i32, i32) {
    %c0_i32 = arith.constant 0 : i32
    %c0_i32_0 = arith.constant 0 : i32
    %c0_i32_1 = arith.constant 0 : i32
    return %c0_i32, %c0_i32_0 : i32, i32
  }
  func.func @transform_4(%arg0: i32, %arg1: i32) -> (i32, i32) {
    %c0_i32 = arith.constant 0 : i32
    %c0_i32_0 = arith.constant 0 : i32
    %c0_i32_1 = arith.constant 0 : i32
    return %c0_i32, %c0_i32_0 : i32, i32
  }
  func.func @transform_5(%arg0: i32, %arg1: i32) -> (i32, i32) {
    %c0_i32 = arith.constant 0 : i32
    %c0_i32_0 = arith.constant 0 : i32
    %c0_i32_1 = arith.constant 0 : i32
    return %c0_i32, %c0_i32_0 : i32, i32
  }
  func.func @transform_6(%arg0: i32, %arg1: i32) -> (i32, i32) {
    %c0_i32 = arith.constant 0 : i32
    %c0_i32_0 = arith.constant 0 : i32
    %c0_i32_1 = arith.constant 0 : i32
    return %c0_i32, %c0_i32_0 : i32, i32
  }
  func.func @transform_7(%arg0: i32, %arg1: i32) -> (i32, i32) {
    %c0_i32 = arith.constant 0 : i32
    %c0_i32_0 = arith.constant 0 : i32
    %c0_i32_1 = arith.constant 0 : i32
    return %c0_i32, %c0_i32_0 : i32, i32
  }
  func.func @transform_8(%arg0: i32, %arg1: i32) -> (i32, i32) {
    %c0_i32 = arith.constant 0 : i32
    %c0_i32_0 = arith.constant 0 : i32
    return %arg0, %c0_i32 : i32, i32
  }
}

module attributes {stable_mosaic.version = 11 : i64} {
  func.func @attention_kernel(%arg0: i32, %arg1: i32, %arg2: memref<8x32xf32, #tpu.memory_space<vmem>>, %arg3: memref<8x32xf32, #tpu.memory_space<vmem>>, %arg4: memref<8x32xf32, #tpu.memory_space<vmem>>, %arg5: memref<32x32xbf16, #tpu.memory_space<vmem>>, %arg6: memref<32x32xbf16, #tpu.memory_space<vmem>>, %arg7: memref<32x32xbf16, #tpu.memory_space<vmem>>, %arg8: memref<32x32xbf16, #tpu.memory_space<vmem>>, %arg9: memref<1x32xf32, #tpu.memory_space<vmem>>, %arg10: memref<8x32xf32, #tpu.memory_space<vmem>>, %arg11: memref<8x8x4xbf16, #tpu.memory_space<vmem>>, %arg12: memref<8x8x1xf32, #tpu.memory_space<vmem>>, %arg13: memref<8x8x1xf32, #tpu.memory_space<vmem>>, %arg14: memref<8x8x4xf32, #tpu.memory_space<vmem>>) attributes {dimension_semantics = [#tpu.dimension_semantics<parallel>, #tpu.dimension_semantics<arbitrary>], iteration_bounds = array<i64: 2, 1>, scalar_prefetch = 0 : i64, scratch_operands = 4 : i64, tpu.core_type = #tpu.core_type<tc>, window_params = [{transform_indices = @transform_0, window_bounds = array<i64: 8, 32>}, {transform_indices = @transform_1, window_bounds = array<i64: 8, 32>}, {transform_indices = @transform_2, window_bounds = array<i64: 8, 32>}, {pipeline_mode = #tpu.pipeline_mode<synchronous>, transform_indices = @transform_3, window_bounds = array<i64: 32, 32>}, {pipeline_mode = #tpu.pipeline_mode<synchronous>, transform_indices = @transform_4, window_bounds = array<i64: 32, 32>}, {pipeline_mode = #tpu.pipeline_mode<synchronous>, transform_indices = @transform_5, window_bounds = array<i64: 32, 32>}, {pipeline_mode = #tpu.pipeline_mode<synchronous>, transform_indices = @transform_6, window_bounds = array<i64: 32, 32>}, {pipeline_mode = #tpu.pipeline_mode<synchronous>, transform_indices = @transform_7, window_bounds = array<i64: 1, 32>}, {transform_indices = @transform_8, window_bounds = array<i64: 8, 32>}]} {
    %c0_i32 = arith.constant 0 : i32
    %0 = arith.cmpi eq, %arg1, %c0_i32 : i32
    %1 = arith.extui %0 : i1 to i32
    %c0_i32_0 = arith.constant 0 : i32
    %2 = arith.cmpi ne, %1, %c0_i32_0 : i32
    scf.if %2 {
      %c0_36 = arith.constant 0 : index
      %c0_37 = arith.constant 0 : index
      %45 = vector.load %arg2[%c0_36, %c0_37] : memref<8x32xf32, #tpu.memory_space<vmem>>, vector<8x32xf32>
      %46 = arith.truncf %45 : vector<8x32xf32> to vector<8x32xbf16>
      %c0_38 = arith.constant 0 : index
      %c0_39 = arith.constant 0 : index
      %47 = vector.load %arg5[%c0_38, %c0_39] : memref<32x32xbf16, #tpu.memory_space<vmem>>, vector<32x32xbf16>
      %cst_40 = arith.constant dense<0.000000e+00> : vector<8x32xf32>
      %48 = tpu.matmul %46, %47, %cst_40 {dimension_numbers = #tpu.dot_dimension_numbers<[1], [0], [0], [1], [0, 0, 1, 1], [], []>} : vector<8x32xbf16>, vector<32x32xbf16>, vector<8x32xf32> -> vector<8x32xf32>
      %cst_41 = arith.constant 5.000000e-01 : f32
      %49 = vector.broadcast %cst_41 : f32 to vector<8x32xf32>
      %50 = arith.mulf %48, %49 : vector<8x32xf32>
      %51 = arith.truncf %50 : vector<8x32xf32> to vector<8x32xbf16>
      %52 = vector.shape_cast %51 : vector<8x32xbf16> to vector<8x8x4xbf16>
      %53 = tpu.transpose %52, [1, 0, 2] : vector<8x8x4xbf16> -> vector<8x8x4xbf16>
      %c0_42 = arith.constant 0 : index
      %c0_43 = arith.constant 0 : index
      %c0_44 = arith.constant 0 : index
      %54 = vector.load %arg11[%c0_42, %c0_43, %c0_44] : memref<8x8x4xbf16, #tpu.memory_space<vmem>>, vector<8x8x4xbf16>
      tpu.vector_store %arg11[%c0_42, %c0_43, %c0_44], %53 {strides = array<i32>} : memref<8x8x4xbf16, #tpu.memory_space<vmem>>, vector<8x8x4xbf16>,
      %cst_45 = arith.constant 0xFF800000 : f32
      %55 = vector.broadcast %cst_45 : f32 to vector<8x8x1xf32>
      %c0_46 = arith.constant 0 : index
      %c0_47 = arith.constant 0 : index
      %c0_48 = arith.constant 0 : index
      %56 = vector.load %arg12[%c0_46, %c0_47, %c0_48] : memref<8x8x1xf32, #tpu.memory_space<vmem>>, vector<8x8x1xf32>
      tpu.vector_store %arg12[%c0_46, %c0_47, %c0_48], %55 {strides = array<i32>} : memref<8x8x1xf32, #tpu.memory_space<vmem>>, vector<8x8x1xf32>,
      %cst_49 = arith.constant 0.000000e+00 : f32
      %57 = vector.broadcast %cst_49 : f32 to vector<8x8x1xf32>
      %c0_50 = arith.constant 0 : index
      %c0_51 = arith.constant 0 : index
      %c0_52 = arith.constant 0 : index
      %58 = vector.load %arg13[%c0_50, %c0_51, %c0_52] : memref<8x8x1xf32, #tpu.memory_space<vmem>>, vector<8x8x1xf32>
      tpu.vector_store %arg13[%c0_50, %c0_51, %c0_52], %57 {strides = array<i32>} : memref<8x8x1xf32, #tpu.memory_space<vmem>>, vector<8x8x1xf32>,
      %cst_53 = arith.constant 0.000000e+00 : f32
      %59 = vector.broadcast %cst_53 : f32 to vector<8x8x4xf32>
      %c0_54 = arith.constant 0 : index
      %c0_55 = arith.constant 0 : index
      %c0_56 = arith.constant 0 : index
      %60 = vector.load %arg14[%c0_54, %c0_55, %c0_56] : memref<8x8x4xf32, #tpu.memory_space<vmem>>, vector<8x8x4xf32>
      tpu.vector_store %arg14[%c0_54, %c0_55, %c0_56], %59 {strides = array<i32>} : memref<8x8x4xf32, #tpu.memory_space<vmem>>, vector<8x8x4xf32>,
    } else {
    }
    %c0 = arith.constant 0 : index
    %c0_1 = arith.constant 0 : index
    %3 = vector.load %arg3[%c0, %c0_1] : memref<8x32xf32, #tpu.memory_space<vmem>>, vector<8x32xf32>
    %4 = arith.truncf %3 : vector<8x32xf32> to vector<8x32xbf16>
    %c0_2 = arith.constant 0 : index
    %c0_3 = arith.constant 0 : index
    %5 = vector.load %arg6[%c0_2, %c0_3] : memref<32x32xbf16, #tpu.memory_space<vmem>>, vector<32x32xbf16>
    %cst = arith.constant dense<0.000000e+00> : vector<8x32xf32>
    %6 = tpu.matmul %4, %5, %cst {dimension_numbers = #tpu.dot_dimension_numbers<[1], [0], [0], [1], [0, 0, 1, 1], [], []>} : vector<8x32xbf16>, vector<32x32xbf16>, vector<8x32xf32> -> vector<8x32xf32>
    %7 = arith.truncf %6 : vector<8x32xf32> to vector<8x32xbf16>
    %c0_4 = arith.constant 0 : index
    %c0_5 = arith.constant 0 : index
    %8 = vector.load %arg4[%c0_4, %c0_5] : memref<8x32xf32, #tpu.memory_space<vmem>>, vector<8x32xf32>
    %9 = arith.truncf %8 : vector<8x32xf32> to vector<8x32xbf16>
    %c0_6 = arith.constant 0 : index
    %c0_7 = arith.constant 0 : index
    %10 = vector.load %arg7[%c0_6, %c0_7] : memref<32x32xbf16, #tpu.memory_space<vmem>>, vector<32x32xbf16>
    %cst_8 = arith.constant dense<0.000000e+00> : vector<8x32xf32>
    %11 = tpu.matmul %9, %10, %cst_8 {dimension_numbers = #tpu.dot_dimension_numbers<[1], [0], [0], [1], [0, 0, 1, 1], [], []>} : vector<8x32xbf16>, vector<32x32xbf16>, vector<8x32xf32> -> vector<8x32xf32>
    %12 = arith.truncf %11 : vector<8x32xf32> to vector<8x32xbf16>
    %13 = vector.shape_cast %7 : vector<8x32xbf16> to vector<8x8x4xbf16>
    %14 = tpu.transpose %13, [1, 0, 2] : vector<8x8x4xbf16> -> vector<8x8x4xbf16>
    %15 = vector.shape_cast %12 : vector<8x32xbf16> to vector<8x8x4xbf16>
    %16 = tpu.transpose %15, [1, 0, 2] : vector<8x8x4xbf16> -> vector<8x8x4xbf16>
    %c0_9 = arith.constant 0 : index
    %c0_10 = arith.constant 0 : index
    %c0_11 = arith.constant 0 : index
    %17 = vector.load %arg11[%c0_9, %c0_10, %c0_11] : memref<8x8x4xbf16, #tpu.memory_space<vmem>>, vector<8x8x4xbf16>
    "tpu.trace_start"() <{level = 10 : i32, message = "hnd,hmd->hnm"}> : () -> ()
    %cst_12 = arith.constant dense<0.000000e+00> : vector<8x8x8xf32>
    %18 = tpu.matmul %17, %14, %cst_12 {dimension_numbers = #tpu.dot_dimension_numbers<[2], [2], [1], [1], [0, 0, 0, 1, 1, 1], [0], [0]>} : vector<8x8x4xbf16>, vector<8x8x4xbf16>, vector<8x8x8xf32> -> vector<8x8x8xf32>
    "tpu.trace_stop"() : () -> ()
    %c0_13 = arith.constant 0 : index
    %c0_14 = arith.constant 0 : index
    %c0_15 = arith.constant 0 : index
    %19 = vector.load %arg12[%c0_13, %c0_14, %c0_15] : memref<8x8x1xf32, #tpu.memory_space<vmem>>, vector<8x8x1xf32>
    %cst_16 = arith.constant dense<0xFF800000> : vector<8x8xf32>
    %20 = vector.multi_reduction <maximumf>, %18, %cst_16 [2] : vector<8x8x8xf32> to vector<8x8xf32>
    %21 = vector.shape_cast %20 : vector<8x8xf32> to vector<8x8x1xf32>
    %22 = arith.maximumf %19, %21 : vector<8x8x1xf32>
    %23 = arith.subf %19, %22 : vector<8x8x1xf32>
    %24 = math.exp %23 : vector<8x8x1xf32>
    %25 = vector.broadcast %22 : vector<8x8x1xf32> to vector<8x8x8xf32>
    %26 = arith.subf %18, %25 : vector<8x8x8xf32>
    %27 = math.exp %26 : vector<8x8x8xf32>
    %c0_17 = arith.constant 0 : index
    %c0_18 = arith.constant 0 : index
    %c0_19 = arith.constant 0 : index
    %28 = vector.load %arg13[%c0_17, %c0_18, %c0_19] : memref<8x8x1xf32, #tpu.memory_space<vmem>>, vector<8x8x1xf32>
    %29 = arith.mulf %24, %28 : vector<8x8x1xf32>
    %cst_20 = arith.constant dense<0.000000e+00> : vector<8x8xf32>
    %30 = vector.multi_reduction <add>, %27, %cst_20 [2] : vector<8x8x8xf32> to vector<8x8xf32>
    %31 = vector.shape_cast %30 : vector<8x8xf32> to vector<8x8x1xf32>
    %32 = arith.addf %29, %31 : vector<8x8x1xf32>
    %c0_21 = arith.constant 0 : index
    %c0_22 = arith.constant 0 : index
    %c0_23 = arith.constant 0 : index
    %33 = vector.load %arg13[%c0_21, %c0_22, %c0_23] : memref<8x8x1xf32, #tpu.memory_space<vmem>>, vector<8x8x1xf32>
    tpu.vector_store %arg13[%c0_21, %c0_22, %c0_23], %32 {strides = array<i32>} : memref<8x8x1xf32, #tpu.memory_space<vmem>>, vector<8x8x1xf32>,
    %c0_24 = arith.constant 0 : index
    %c0_25 = arith.constant 0 : index
    %c0_26 = arith.constant 0 : index
    %34 = vector.load %arg14[%c0_24, %c0_25, %c0_26] : memref<8x8x4xf32, #tpu.memory_space<vmem>>, vector<8x8x4xf32>
    %35 = vector.broadcast %24 : vector<8x8x1xf32> to vector<8x8x4xf32>
    %36 = arith.mulf %35, %34 : vector<8x8x4xf32>
    %37 = arith.truncf %27 : vector<8x8x8xf32> to vector<8x8x8xbf16>
    "tpu.trace_start"() <{level = 10 : i32, message = "hnm,hmd->hnd"}> : () -> ()
    %cst_27 = arith.constant dense<0.000000e+00> : vector<8x8x4xf32>
    %38 = tpu.matmul %37, %16, %cst_27 {dimension_numbers = #tpu.dot_dimension_numbers<[2], [1], [1], [2], [0, 0, 0, 1, 1, 2], [0], [0]>} : vector<8x8x8xbf16>, vector<8x8x4xbf16>, vector<8x8x4xf32> -> vector<8x8x4xf32>
    "tpu.trace_stop"() : () -> ()
    %39 = arith.addf %36, %38 : vector<8x8x4xf32>
    %c0_28 = arith.constant 0 : index
    %c0_29 = arith.constant 0 : index
    %c0_30 = arith.constant 0 : index
    %40 = vector.load %arg14[%c0_28, %c0_29, %c0_30] : memref<8x8x4xf32, #tpu.memory_space<vmem>>, vector<8x8x4xf32>
    tpu.vector_store %arg14[%c0_28, %c0_29, %c0_30], %39 {strides = array<i32>} : memref<8x8x4xf32, #tpu.memory_space<vmem>>, vector<8x8x4xf32>,
    %c0_31 = arith.constant 0 : index
    %c0_32 = arith.constant 0 : index
    %c0_33 = arith.constant 0 : index
    %41 = vector.load %arg12[%c0_31, %c0_32, %c0_33] : memref<8x8x1xf32, #tpu.memory_space<vmem>>, vector<8x8x1xf32>
    tpu.vector_store %arg12[%c0_31, %c0_32, %c0_33], %22 {strides = array<i32>} : memref<8x8x1xf32, #tpu.memory_space<vmem>>, vector<8x8x1xf32>,
    %c0_i32_34 = arith.constant 0 : i32
    %42 = arith.cmpi eq, %arg1, %c0_i32_34 : i32
    %43 = arith.extui %42 : i1 to i32
    %c0_i32_35 = arith.constant 0 : i32
    %44 = arith.cmpi ne, %43, %c0_i32_35 : i32
    scf.if %44 {
      %c0_36 = arith.constant 0 : index
      %c0_37 = arith.constant 0 : index
      %c0_38 = arith.constant 0 : index
      %45 = vector.load %arg14[%c0_36, %c0_37, %c0_38] : memref<8x8x4xf32, #tpu.memory_space<vmem>>, vector<8x8x4xf32>
      %c0_39 = arith.constant 0 : index
      %c0_40 = arith.constant 0 : index
      %c0_41 = arith.constant 0 : index
      %46 = vector.load %arg13[%c0_39, %c0_40, %c0_41] : memref<8x8x1xf32, #tpu.memory_space<vmem>>, vector<8x8x1xf32>
      %47 = tpu.reciprocal %46 {approx = true} : vector<8x8x1xf32> -> vector<8x8x1xf32>
      %48 = vector.broadcast %47 : vector<8x8x1xf32> to vector<8x8x4xf32>
      %49 = arith.mulf %45, %48 : vector<8x8x4xf32>
      %50 = arith.truncf %49 : vector<8x8x4xf32> to vector<8x8x4xbf16>
      %51 = tpu.transpose %50, [1, 0, 2] : vector<8x8x4xbf16> -> vector<8x8x4xbf16>
      %52 = vector.shape_cast %51 : vector<8x8x4xbf16> to vector<8x32xbf16>
      %c0_42 = arith.constant 0 : index
      %c0_43 = arith.constant 0 : index
      %53 = vector.load %arg8[%c0_42, %c0_43] : memref<32x32xbf16, #tpu.memory_space<vmem>>, vector<32x32xbf16>
      %cst_44 = arith.constant dense<0.000000e+00> : vector<8x32xf32>
      %54 = tpu.matmul %52, %53, %cst_44 {dimension_numbers = #tpu.dot_dimension_numbers<[1], [0], [0], [1], [0, 0, 1, 1], [], []>} : vector<8x32xbf16>, vector<32x32xbf16>, vector<8x32xf32> -> vector<8x32xf32>
      %c0_45 = arith.constant 0 : index
      %c0_46 = arith.constant 0 : index
      %55 = vector.load %arg9[%c0_45, %c0_46] : memref<1x32xf32, #tpu.memory_space<vmem>>, vector<1x32xf32>
      %56 = vector.broadcast %55 : vector<1x32xf32> to vector<8x32xf32>
      %57 = arith.addf %54, %56 : vector<8x32xf32>
      %c0_47 = arith.constant 0 : index
      %c0_48 = arith.constant 0 : index
      %58 = vector.load %arg10[%c0_47, %c0_48] : memref<8x32xf32, #tpu.memory_space<vmem>>, vector<8x32xf32>
      tpu.vector_store %arg10[%c0_47, %c0_48], %57 {strides = array<i32>} : memref<8x32xf32, #tpu.memory_space<vmem>>, vector<8x32xf32>,
    } else {
    }
    return
  }
  func.func @transform_0(%arg0: i32, %arg1: i32) -> (i32, i32) {
    %c0_i32 = arith.constant 0 : i32
    %c0_i32_0 = arith.constant 0 : i32
    return %arg0, %c0_i32 : i32, i32
  }
  func.func @transform_1(%arg0: i32, %arg1: i32) -> (i32, i32) {
    %c1_i32 = arith.constant 1 : i32
    %0 = arith.muli %arg0, %c1_i32 : i32
    %1 = arith.addi %0, %arg1 : i32
    %c0_i32 = arith.constant 0 : i32
    %c0_i32_0 = arith.constant 0 : i32
    return %1, %c0_i32 : i32, i32
  }
  func.func @transform_2(%arg0: i32, %arg1: i32) -> (i32, i32) {
    %c1_i32 = arith.constant 1 : i32
    %0 = arith.muli %arg0, %c1_i32 : i32
    %1 = arith.addi %0, %arg1 : i32
    %c0_i32 = arith.constant 0 : i32
    %c0_i32_0 = arith.constant 0 : i32
    return %1, %c0_i32 : i32, i32
  }
  func.func @transform_3(%arg0: i32, %arg1: i32) -> (i32, i32) {
    %c0_i32 = arith.constant 0 : i32
    %c0_i32_0 = arith.constant 0 : i32
    %c0_i32_1 = arith.constant 0 : i32
    return %c0_i32, %c0_i32_0 : i32, i32
  }
  func.func @transform_4(%arg0: i32, %arg1: i32) -> (i32, i32) {
    %c0_i32 = arith.constant 0 : i32
    %c0_i32_0 = arith.constant 0 : i32
    %c0_i32_1 = arith.constant 0 : i32
    return %c0_i32, %c0_i32_0 : i32, i32
  }
  func.func @transform_5(%arg0: i32, %arg1: i32) -> (i32, i32) {
    %c0_i32 = arith.constant 0 : i32
    %c0_i32_0 = arith.constant 0 : i32
    %c0_i32_1 = arith.constant 0 : i32
    return %c0_i32, %c0_i32_0 : i32, i32
  }
  func.func @transform_6(%arg0: i32, %arg1: i32) -> (i32, i32) {
    %c0_i32 = arith.constant 0 : i32
    %c0_i32_0 = arith.constant 0 : i32
    %c0_i32_1 = arith.constant 0 : i32
    return %c0_i32, %c0_i32_0 : i32, i32
  }
  func.func @transform_7(%arg0: i32, %arg1: i32) -> (i32, i32) {
    %c0_i32 = arith.constant 0 : i32
    %c0_i32_0 = arith.constant 0 : i32
    %c0_i32_1 = arith.constant 0 : i32
    return %c0_i32, %c0_i32_0 : i32, i32
  }
  func.func @transform_8(%arg0: i32, %arg1: i32) -> (i32, i32) {
    %c0_i32 = arith.constant 0 : i32
    %c0_i32_0 = arith.constant 0 : i32
    return %arg0, %c0_i32 : i32, i32
  }
}

</mosaic_0001>

<llo_original>
// kernel: tpu_custom_call.1
$region0: #{tpu_custom_call.1}
  #allocation0 [shape = 'u32[]', space=smem, size = 0x4, offset = 0x4, fixed_abs, tag = 'smem constant byte address 0x4 - core index']
  #allocation1 [shape = 'u32[144,128]{1,0:T(1,128)}', space=vmem, size = 0x12000, scoped, tag = 'internal scratch']
  #allocation2 [shape = 'bf16[8,8,4]{2,1,0:T(8,128)(2,1)}', space=vmem, size = 0x4000, scoped, tag = 'scratch operand']
  #allocation3 [shape = 'f32[8,8,1]{2,1,0:T(8,128)}', space=vmem, size = 0x8000, scoped, tag = 'scratch operand']
  #allocation4 [shape = 'f32[8,8,1]{2,1,0:T(8,128)}', space=vmem, size = 0x8000, scoped, tag = 'scratch operand']
  #allocation5 [shape = 'f32[8,8,4]{2,1,0:T(8,128)}', space=vmem, size = 0x8000, scoped, tag = 'scratch operand']
  %s0 = inlined_call_operand.hbm [shape: f32[16,32], index: 0, kind: input, shape index: {}]
  %s1 = inlined_call_operand.hbm [shape: f32[16,32], index: 1, kind: input, shape index: {}]
  %s2 = inlined_call_operand.hbm [shape: f32[16,32], index: 2, kind: input, shape index: {}]
  %s3 = inlined_call_operand.hbm [shape: bf16[32,32], index: 3, kind: input, shape index: {}]
  %s4 = inlined_call_operand.hbm [shape: bf16[32,32], index: 4, kind: input, shape index: {}]
  %s5 = inlined_call_operand.hbm [shape: bf16[32,32], index: 5, kind: input, shape index: {}]
  %s6 = inlined_call_operand.hbm [shape: bf16[32,32], index: 6, kind: input, shape index: {}]
  %s7 = inlined_call_operand.vmem [shape: f32[1,32], index: 7, kind: input, shape index: {}]
  %s8 = inlined_call_operand.hbm [shape: f32[16,32], index: 8, kind: output, shape index: {}]
  %s9 = sld [smem:[#allocation0]]
  $region101: #{tpu_custom_call.1} parent=0
    _
  %s11 = ssub.s32 1, %s9
  %s12 = scalar_select 0, %s11, %s9
  $region1: #{tpu_custom_call.1} parent=0
    #allocation6 [shape = 'u8[8192]{0}', space=vmem, size = 0x2000, scoped, tag = 'input window, operand 0']
    #allocation7 [shape = 's32[2]{0}', space=sflag, size = 0x8, scoped, tag = 'scoped memory for tpu_custom_call.1']
    #allocation8 [shape = 's32[2]{0}', space=sflag, size = 0x8, scoped, tag = 'scoped memory for tpu_custom_call.1']
    #allocation9 [shape = 'u8[8192]{0}', space=vmem, size = 0x2000, scoped, tag = 'input window, operand 1']
    #allocation10 [shape = 's32[2]{0}', space=sflag, size = 0x8, scoped, tag = 'scoped memory for tpu_custom_call.1']
    #allocation11 [shape = 'u8[8192]{0}', space=vmem, size = 0x2000, scoped, tag = 'input window, operand 2']
    #allocation12 [shape = 'u8[8192]{0}', space=vmem, size = 0x2000, scoped, tag = 'input window, operand 3, single buffered']
    #allocation13 [shape = 's32[1]{0}', space=sflag, size = 0x4, scoped, tag = 'scoped memory for tpu_custom_call.1']
    #allocation14 [shape = 'u8[8192]{0}', space=vmem, size = 0x2000, scoped, tag = 'input window, operand 4, single buffered']
    #allocation15 [shape = 'u8[8192]{0}', space=vmem, size = 0x2000, scoped, tag = 'input window, operand 5, single buffered']
    #allocation16 [shape = 's32[1]{0}', space=sflag, size = 0x4, scoped, tag = 'scoped memory for tpu_custom_call.1']
    #allocation17 [shape = 'u8[8192]{0}', space=vmem, size = 0x2000, scoped, tag = 'input window, operand 6, single buffered']
    #allocation18 [shape = 'u8[8192]{0}', space=vmem, size = 0x2000, scoped, tag = 'output window, operand 0']
    %13 = vsyncpa [#allocation7], 0
    %s14 = scalar_lea.sflag [#allocation7], 1
    %15 = vsyncpa %s14, 0
    %16 = vsyncpa [#allocation10], 0
    %s17 = scalar_lea.sflag [#allocation10], 1
    %18 = vsyncpa %s17, 0
    %19 = vsyncpa [#allocation13], 0
    %20 = vsyncpa [#allocation16], 0
    %21 = vsyncpa [#allocation8], 0
    %s22 = scalar_lea.sflag [#allocation8], 1
    %23 = vsyncpa %s22, 0
    loop: start=0, step=1, limit=4
    $region2: #{tpu_custom_call.1} parent=1 // loop_pre_header
      _
    $region3: #{tpu_custom_call.1} parent=1 // loop_header
      %s25 = sphi 0, %s29
      %p26 = scmp.ge.s32.totalorder %s25, 4
      %s32 = sphi 0, %s44
      %s33 = sphi 0, %s40
      %s34 = sphi 0, %s32
      %s35 = sphi 0, %s33
      %s36 = sphi 0, %s34
      %s37 = sphi 0, %s35
      %s47 = sphi 0, %s49
      %s50 = sphi 0, %s47
      %s51 = sphi 0, %s50
      %s67 = sphi 0, %s51
      %s75 = sphi 0, %s77
      %s78 = sphi 0, %s75
      %s79 = sphi 0, %s78
      %s95 = sphi 0, %s79
      %s103 = sphi 0, %s105
      %s106 = sphi 0, %s103
      %s107 = sphi 0, %s106
      %s123 = sphi 0, %s107
      %s127 = sphi 0, %s127
      %s129 = sphi 0, %s127
      %s130 = sphi 0, %s129
      %s144 = sphi 0, %s130
      %s148 = sphi 0, %s148
      %s150 = sphi 0, %s148
      %s151 = sphi 0, %s150
      %s165 = sphi 0, %s151
      %s169 = sphi 0, %s169
      %s171 = sphi 0, %s169
      %s172 = sphi 0, %s171
      %s186 = sphi 0, %s172
      %s190 = sphi 0, %s190
      %s192 = sphi 0, %s190
      %s193 = sphi 0, %s192
      %s207 = sphi 0, %s193
      %s211 = sphi 0, %s211
      %s213 = sphi 0, %s211
      %s214 = sphi 0, %s213
      %s228 = sphi 0, %s214
      %s234 = sphi 0, %s236
      %s237 = sphi 0, %s234
      %s238 = sphi 0, %s237
      %s254 = sphi 0, %s238
    $region4: #{tpu_custom_call.1} parent=1 // loop_header_branch
      %28 = sbr.rel (%p26) target = $region8
    $region5: #{tpu_custom_call.1} parent=1 // loop_body
      %s30 = ssub.s32 %s25, 1
      %s31 = ssub.s32 %s25, 2
      %s38 = sadd.s32 1, %s33
      %p39 = scmp.ge.s32.totalorder %s38, 1
      %s40 = scalar_select %p39, 0, %s38
      %s41 = sadd.s32 1, %s32
      %s42 = scalar_select %p39, %s41, %s32
      %p43 = scmp.ge.s32.totalorder %s42, 2
      %s44 = scalar_select %p43, 0, %s42
      %s45 = ssub.s32 %s32, %s44
      %p46 = scmp.eq.s32.totalorder %s45, 0
      %s48 = sadd.s32 %s47, 1
      %s49 = scalar_select %p46, %s47, %s48
      %p52 = pneg %p46
      %p53 = scmp.eq.s32.totalorder %s25, 1
      %p54 = por %p52, %p53
      %p55 = scmp.ne.s32.totalorder %s47, %s50
      %p56 = scmp.eq.s32.totalorder %s25, 0
      %p57 = por %p55, %p56
      %p58 = scmp.ne.s32.totalorder %s47, %s50
      %p59 = scmp.eq.s32.totalorder %s30, 1
      %p60 = por %p58, %p59
      %p61 = scmp.ne.s32.totalorder %s50, %s51
      %p62 = scmp.eq.s32.totalorder %s30, 0
      %p63 = por %p61, %p62
      %p64 = scmp.ne.s32.totalorder %s50, %s51
      %p65 = scmp.eq.s32.totalorder %s31, 1
      %p66 = por %p64, %p65
      %p68 = scmp.ne.s32.totalorder %s51, %s67
      %p69 = scmp.eq.s32.totalorder %s31, 0
      %p70 = por %p68, %p69
      %s71 = sadd.s32 %s32, %s33
      %s72 = sadd.s32 %s44, %s40
      %s73 = ssub.s32 %s71, %s72
      %p74 = scmp.eq.s32.totalorder %s73, 0
      %s76 = sadd.s32 %s75, 1
      %s77 = scalar_select %p74, %s75, %s76
      %p80 = pneg %p74
      %p81 = scmp.eq.s32.totalorder %s25, 1
      %p82 = por %p80, %p81
      %p83 = scmp.ne.s32.totalorder %s75, %s78
      %p84 = scmp.eq.s32.totalorder %s25, 0
      %p85 = por %p83, %p84
      %p86 = scmp.ne.s32.totalorder %s75, %s78
      %p87 = scmp.eq.s32.totalorder %s30, 1
      %p88 = por %p86, %p87
      %p89 = scmp.ne.s32.totalorder %s78, %s79
      %p90 = scmp.eq.s32.totalorder %s30, 0
      %p91 = por %p89, %p90
      %p92 = scmp.ne.s32.totalorder %s78, %s79
      %p93 = scmp.eq.s32.totalorder %s31, 1
      %p94 = por %p92, %p93
      %p96 = scmp.ne.s32.totalorder %s79, %s95
      %p97 = scmp.eq.s32.totalorder %s31, 0
      %p98 = por %p96, %p97
      %s99 = sadd.s32 %s32, %s33
      %s100 = sadd.s32 %s44, %s40
      %s101 = ssub.s32 %s99, %s100
      %p102 = scmp.eq.s32.totalorder %s101, 0
      %s104 = sadd.s32 %s103, 1
      %s105 = scalar_select %p102, %s103, %s104
      %p108 = pneg %p102
      %p109 = scmp.eq.s32.totalorder %s25, 1
      %p110 = por %p108, %p109
      %p111 = scmp.ne.s32.totalorder %s103, %s106
      %p112 = scmp.eq.s32.totalorder %s25, 0
      %p113 = por %p111, %p112
      %p114 = scmp.ne.s32.totalorder %s103, %s106
      %p115 = scmp.eq.s32.totalorder %s30, 1
      %p116 = por %p114, %p115
      %p117 = scmp.ne.s32.totalorder %s106, %s107
      %p118 = scmp.eq.s32.totalorder %s30, 0
      %p119 = por %p117, %p118
      %p120 = scmp.ne.s32.totalorder %s106, %s107
      %p121 = scmp.eq.s32.totalorder %s31, 1
      %p122 = por %p120, %p121
      %p124 = scmp.ne.s32.totalorder %s107, %s123
      %p125 = scmp.eq.s32.totalorder %s31, 0
      %p126 = por %p124, %p125
      %s128 = sadd.s32 %s127, 1
      %p131 = scmp.eq.s32.totalorder %s25, 1
      %p132 = scmp.ne.s32.totalorder %s127, %s129
      %p133 = scmp.eq.s32.totalorder %s25, 0
      %p134 = por %p132, %p133
      %p135 = scmp.ne.s32.totalorder %s127, %s129
      %p136 = scmp.eq.s32.totalorder %s30, 1
      %p137 = por %p135, %p136
      %p138 = scmp.ne.s32.totalorder %s129, %s130
      %p139 = scmp.eq.s32.totalorder %s30, 0
      %p140 = por %p138, %p139
      %p141 = scmp.ne.s32.totalorder %s129, %s130
      %p142 = scmp.eq.s32.totalorder %s31, 1
      %p143 = por %p141, %p142
      %p145 = scmp.ne.s32.totalorder %s130, %s144
      %p146 = scmp.eq.s32.totalorder %s31, 0
      %p147 = por %p145, %p146
      %s149 = sadd.s32 %s148, 1
      %p152 = scmp.eq.s32.totalorder %s25, 1
      %p153 = scmp.ne.s32.totalorder %s148, %s150
      %p154 = scmp.eq.s32.totalorder %s25, 0
      %p155 = por %p153, %p154
      %p156 = scmp.ne.s32.totalorder %s148, %s150
      %p157 = scmp.eq.s32.totalorder %s30, 1
      %p158 = por %p156, %p157
      %p159 = scmp.ne.s32.totalorder %s150, %s151
      %p160 = scmp.eq.s32.totalorder %s30, 0
      %p161 = por %p159, %p160
      %p162 = scmp.ne.s32.totalorder %s150, %s151
      %p163 = scmp.eq.s32.totalorder %s31, 1
      %p164 = por %p162, %p163
      %p166 = scmp.ne.s32.totalorder %s151, %s165
      %p167 = scmp.eq.s32.totalorder %s31, 0
      %p168 = por %p166, %p167
      %s170 = sadd.s32 %s169, 1
      %p173 = scmp.eq.s32.totalorder %s25, 1
      %p174 = scmp.ne.s32.totalorder %s169, %s171
      %p175 = scmp.eq.s32.totalorder %s25, 0
      %p176 = por %p174, %p175
      %p177 = scmp.ne.s32.totalorder %s169, %s171
      %p178 = scmp.eq.s32.totalorder %s30, 1
      %p179 = por %p177, %p178
      %p180 = scmp.ne.s32.totalorder %s171, %s172
      %p181 = scmp.eq.s32.totalorder %s30, 0
      %p182 = por %p180, %p181
      %p183 = scmp.ne.s32.totalorder %s171, %s172
      %p184 = scmp.eq.s32.totalorder %s31, 1
      %p185 = por %p183, %p184
      %p187 = scmp.ne.s32.totalorder %s172, %s186
      %p188 = scmp.eq.s32.totalorder %s31, 0
      %p189 = por %p187, %p188
      %s191 = sadd.s32 %s190, 1
      %p194 = scmp.eq.s32.totalorder %s25, 1
      %p195 = scmp.ne.s32.totalorder %s190, %s192
      %p196 = scmp.eq.s32.totalorder %s25, 0
      %p197 = por %p195, %p196
      %p198 = scmp.ne.s32.totalorder %s190, %s192
      %p199 = scmp.eq.s32.totalorder %s30, 1
      %p200 = por %p198, %p199
      %p201 = scmp.ne.s32.totalorder %s192, %s193
      %p202 = scmp.eq.s32.totalorder %s30, 0
      %p203 = por %p201, %p202
      %p204 = scmp.ne.s32.totalorder %s192, %s193
      %p205 = scmp.eq.s32.totalorder %s31, 1
      %p206 = por %p204, %p205
      %p208 = scmp.ne.s32.totalorder %s193, %s207
      %p209 = scmp.eq.s32.totalorder %s31, 0
      %p210 = por %p208, %p209
      %s212 = sadd.s32 %s211, 1
      %p215 = scmp.eq.s32.totalorder %s25, 1
      %p216 = scmp.ne.s32.totalorder %s211, %s213
      %p217 = scmp.eq.s32.totalorder %s25, 0
      %p218 = por %p216, %p217
      %p219 = scmp.ne.s32.totalorder %s211, %s213
      %p220 = scmp.eq.s32.totalorder %s30, 1
      %p221 = por %p219, %p220
      %p222 = scmp.ne.s32.totalorder %s213, %s214
      %p223 = scmp.eq.s32.totalorder %s30, 0
      %p224 = por %p222, %p223
      %p225 = scmp.ne.s32.totalorder %s213, %s214
      %p226 = scmp.eq.s32.totalorder %s31, 1
      %p227 = por %p225, %p226
      %p229 = scmp.ne.s32.totalorder %s214, %s228
      %p230 = scmp.eq.s32.totalorder %s31, 0
      %p231 = por %p229, %p230
      %s232 = ssub.s32 %s32, %s44
      %p233 = scmp.eq.s32.totalorder %s232, 0
      %s235 = sadd.s32 %s234, 1
      %s236 = scalar_select %p233, %s234, %s235
      %p239 = pneg %p233
      %p240 = scmp.eq.s32.totalorder %s25, 1
      %p241 = por %p239, %p240
      %p242 = scmp.ne.s32.totalorder %s234, %s237
      %p243 = scmp.eq.s32.totalorder %s25, 0
      %p244 = por %p242, %p243
      %p245 = scmp.ne.s32.totalorder %s234, %s237
      %p246 = scmp.eq.s32.totalorder %s30, 1
      %p247 = por %p245, %p246
      %p248 = scmp.ne.s32.totalorder %s237, %s238
      %p249 = scmp.eq.s32.totalorder %s30, 0
      %p250 = por %p248, %p249
      %p251 = scmp.ne.s32.totalorder %s237, %s238
      %p252 = scmp.eq.s32.totalorder %s31, 1
      %p253 = por %p251, %p252
      %p255 = scmp.ne.s32.totalorder %s238, %s254
      %p256 = scmp.eq.s32.totalorder %s31, 0
      %p257 = por %p255, %p256
      %p258 = scmp.le.s32.totalorder 1, %s25
      %p259 = scmp.lt.s32.totalorder %s25, 3
      %p260 = pnand %p258, %p259
      %p261 = pneg %p260
      // Predicated region
      $region9: #{tpu_custom_call.1} parent=5 // pred_check
        _
      $region10: #{tpu_custom_call.1} parent=5 // pred_check_branch
        %263 = sbr.rel (%p260) target = $region12
      $region11: #{tpu_custom_call.1} parent=5 // pred_region
        %s264 = ssub.s32 %s25, 1
        // Predicated region
        $region13: #{tpu_custom_call.1} parent=11 // pred_check
          %p265 = pneg %p140
        $region14: #{tpu_custom_call.1} parent=11 // pred_check_branch
          %267 = sbr.rel (%p265) target = $region16
        $region15: #{tpu_custom_call.1} parent=11 // pred_region
          %s269 = ssub.s32 256, 256
          %270 = vsyncadd [#allocation13], %s269
          %s271 = sshll.u32 [#allocation12], 4
          %s272 = int_to_ptr.vmem [resolvable:$true] %s271
          %277 = dma.hbm_to_vmem [thread:$0]  %s3, 256, %s272, [#allocation13], 64, 64, 4
        $region16: #{tpu_custom_call.1} parent=11 // pred_fallthru
          _
        // Predicated region
        $region17: #{tpu_custom_call.1} parent=11 // pred_check
          %p278 = pneg %p161
        $region18: #{tpu_custom_call.1} parent=11 // pred_check_branch
          %280 = sbr.rel (%p278) target = $region20
        $region19: #{tpu_custom_call.1} parent=11 // pred_region
          %s282 = ssub.s32 256, 256
          %283 = vsyncadd [#allocation13], %s282
          %s284 = sshll.u32 [#allocation14], 4
          %s285 = int_to_ptr.vmem [resolvable:$true] %s284
          %290 = dma.hbm_to_vmem [thread:$0]  %s4, 256, %s285, [#allocation13], 64, 64, 4
        $region20: #{tpu_custom_call.1} parent=11 // pred_fallthru
          _
        // Predicated region
        $region21: #{tpu_custom_call.1} parent=11 // pred_check
          %p291 = pneg %p182
        $region22: #{tpu_custom_call.1} parent=11 // pred_check_branch
          %293 = sbr.rel (%p291) target = $region24
        $region23: #{tpu_custom_call.1} parent=11 // pred_region
          %s295 = ssub.s32 256, 256
          %296 = vsyncadd [#allocation16], %s295
          %s297 = sshll.u32 [#allocation15], 4
          %s298 = int_to_ptr.vmem [resolvable:$true] %s297
          %303 = dma.hbm_to_vmem [thread:$0]  %s5, 256, %s298, [#allocation16], 64, 64, 4
        $region24: #{tpu_custom_call.1} parent=11 // pred_fallthru
          _
        // Predicated region
        $region25: #{tpu_custom_call.1} parent=11 // pred_check
          %p304 = pneg %p203
        $region26: #{tpu_custom_call.1} parent=11 // pred_check_branch
          %306 = sbr.rel (%p304) target = $region28
        $region27: #{tpu_custom_call.1} parent=11 // pred_region
          %s308 = ssub.s32 256, 256
          %309 = vsyncadd [#allocation16], %s308
          %s310 = sshll.u32 [#allocation17], 4
          %s311 = int_to_ptr.vmem [resolvable:$true] %s310
          %316 = dma.hbm_to_vmem [thread:$0]  %s6, 256, %s311, [#allocation16], 64, 64, 4
        $region28: #{tpu_custom_call.1} parent=11 // pred_fallthru
          _
        // Predicated region
        $region29: #{tpu_custom_call.1} parent=11 // pred_check
          %p317 = pneg %p224
        $region30: #{tpu_custom_call.1} parent=11 // pred_check_branch
          %319 = sbr.rel (%p317) target = $region32
        $region31: #{tpu_custom_call.1} parent=11 // pred_region
          _
        $region32: #{tpu_custom_call.1} parent=11 // pred_fallthru
          _
      $region12: #{tpu_custom_call.1} parent=5 // pred_fallthru
        _
      %p320 = scmp.lt.s32.totalorder %s25, 2
      // Predicated region
      $region33: #{tpu_custom_call.1} parent=5 // pred_check
        %p321 = pneg %p320
      $region34: #{tpu_custom_call.1} parent=5 // pred_check_branch
        %323 = sbr.rel (%p321) target = $region36
      $region35: #{tpu_custom_call.1} parent=5 // pred_region
        // Predicated region
        $region37: #{tpu_custom_call.1} parent=35 // pred_check
          %p324 = pneg %p57
        $region38: #{tpu_custom_call.1} parent=35 // pred_check_branch
          %326 = sbr.rel (%p324) target = $region40
        $region39: #{tpu_custom_call.1} parent=35 // pred_region
          %s327 = sand.u32 %s47, 1
          %s328 = scalar_lea.sflag [#allocation7], %s327
          %s329 = sand.u32 %s47, 1
          %s330 = smul.addr %s329, 8
          %s331 = scalar_lea.vmem [#allocation6], %s330
          %s333 = ssub.s32 128, 128
          %334 = vsyncadd %s328, %s333
          %s335 = smul.addr %s32, 128
          %s336 = scalar_lea.hbm %s0, %s335
          %s338 = sshll.u32 %s331, 4
          %s339 = int_to_ptr.vmem [resolvable:$true] %s338
          %341 = dma.hbm_to_vmem [thread:$0]  %s336, 128, %s339, %s328
        $region40: #{tpu_custom_call.1} parent=35 // pred_fallthru
          _
        // Predicated region
        $region41: #{tpu_custom_call.1} parent=35 // pred_check
          %p342 = pneg %p85
        $region42: #{tpu_custom_call.1} parent=35 // pred_check_branch
          %344 = sbr.rel (%p342) target = $region44
        $region43: #{tpu_custom_call.1} parent=35 // pred_region
          %s345 = sand.u32 %s25, 1
          %s346 = scalar_lea.sflag [#allocation10], %s345
          %s347 = sand.u32 %s75, 1
          %s348 = smul.addr %s347, 8
          %s349 = scalar_lea.vmem [#allocation9], %s348
          %s350 = sadd.s32 %s32, %s33
          %s352 = ssub.s32 128, 128
          %353 = vsyncadd %s346, %s352
          %s354 = smul.addr %s350, 128
          %s355 = scalar_lea.hbm %s1, %s354
          %s357 = sshll.u32 %s349, 4
          %s358 = int_to_ptr.vmem [resolvable:$true] %s357
          %360 = dma.hbm_to_vmem [thread:$0]  %s355, 128, %s358, %s346
        $region44: #{tpu_custom_call.1} parent=35 // pred_fallthru
          _
        // Predicated region
        $region45: #{tpu_custom_call.1} parent=35 // pred_check
          %p361 = pneg %p113
        $region46: #{tpu_custom_call.1} parent=35 // pred_check_branch
          %363 = sbr.rel (%p361) target = $region48
        $region47: #{tpu_custom_call.1} parent=35 // pred_region
          %s364 = sand.u32 %s25, 1
          %s365 = scalar_lea.sflag [#allocation10], %s364
          %s366 = sand.u32 %s103, 1
          %s367 = smul.addr %s366, 8
          %s368 = scalar_lea.vmem [#allocation11], %s367
          %s369 = sadd.s32 %s32, %s33
          %s371 = ssub.s32 128, 128
          %372 = vsyncadd %s365, %s371
          %s373 = smul.addr %s369, 128
          %s374 = scalar_lea.hbm %s2, %s373
          %s376 = sshll.u32 %s368, 4
          %s377 = int_to_ptr.vmem [resolvable:$true] %s376
          %379 = dma.hbm_to_vmem [thread:$0]  %s374, 128, %s377, %s365
        $region48: #{tpu_custom_call.1} parent=35 // pred_fallthru
          _
      $region36: #{tpu_custom_call.1} parent=5 // pred_fallthru
        _
      %p380 = scmp.le.s32.totalorder 1, %s25
      %p381 = scmp.lt.s32.totalorder %s25, 3
      %p382 = pnand %p380, %p381
      %p383 = pneg %p382
      // Predicated region
      $region49: #{tpu_custom_call.1} parent=5 // pred_check
        _
      $region50: #{tpu_custom_call.1} parent=5 // pred_check_branch
        %385 = sbr.rel (%p382) target = $region52
      $region51: #{tpu_custom_call.1} parent=5 // pred_region
        %s386 = ssub.s32 %s25, 1
        %s387 = sand.u32 %s50, 1
        %s388 = scalar_lea.sflag [#allocation7], %s387
        %s389 = sand.u32 %s50, 1
        %s390 = smul.addr %s389, 8
        %s391 = scalar_lea.vmem [#allocation6], %s390
        // Predicated region
        $region53: #{tpu_custom_call.1} parent=51 // pred_check
          %p392 = pneg %p63
        $region54: #{tpu_custom_call.1} parent=51 // pred_check_branch
          %394 = sbr.rel (%p392) target = $region56
        $region55: #{tpu_custom_call.1} parent=51 // pred_region
          %395 = dma.done %s388, 128
        $region56: #{tpu_custom_call.1} parent=51 // pred_fallthru
          _
        %s396 = sand.u32 %s30, 1
        %s397 = scalar_lea.sflag [#allocation10], %s396
        %s398 = sand.u32 %s78, 1
        %s399 = smul.addr %s398, 8
        %s400 = scalar_lea.vmem [#allocation9], %s399
        // Predicated region
        $region57: #{tpu_custom_call.1} parent=51 // pred_check
          %p401 = pneg %p91
        $region58: #{tpu_custom_call.1} parent=51 // pred_check_branch
          %403 = sbr.rel (%p401) target = $region60
        $region59: #{tpu_custom_call.1} parent=51 // pred_region
          %404 = dma.done %s397, 128
        $region60: #{tpu_custom_call.1} parent=51 // pred_fallthru
          _
        %s405 = sand.u32 %s30, 1
        %s406 = scalar_lea.sflag [#allocation10], %s405
        %s407 = sand.u32 %s106, 1
        %s408 = smul.addr %s407, 8
        %s409 = scalar_lea.vmem [#allocation11], %s408
        // Predicated region
        $region61: #{tpu_custom_call.1} parent=51 // pred_check
          %p410 = pneg %p119
        $region62: #{tpu_custom_call.1} parent=51 // pred_check_branch
          %412 = sbr.rel (%p410) target = $region64
        $region63: #{tpu_custom_call.1} parent=51 // pred_region
          %413 = dma.done %s406, 128
        $region64: #{tpu_custom_call.1} parent=51 // pred_fallthru
          _
        // Predicated region
        $region65: #{tpu_custom_call.1} parent=51 // pred_check
          %p414 = pneg %p140
        $region66: #{tpu_custom_call.1} parent=51 // pred_check_branch
          %416 = sbr.rel (%p414) target = $region68
        $region67: #{tpu_custom_call.1} parent=51 // pred_region
          %417 = dma.done [#allocation13], 256
        $region68: #{tpu_custom_call.1} parent=51 // pred_fallthru
          _
        // Predicated region
        $region69: #{tpu_custom_call.1} parent=51 // pred_check
          %p418 = pneg %p161
        $region70: #{tpu_custom_call.1} parent=51 // pred_check_branch
          %420 = sbr.rel (%p418) target = $region72
        $region71: #{tpu_custom_call.1} parent=51 // pred_region
          %421 = dma.done [#allocation13], 256
        $region72: #{tpu_custom_call.1} parent=51 // pred_fallthru
          _
        // Predicated region
        $region73: #{tpu_custom_call.1} parent=51 // pred_check
          %p422 = pneg %p182
        $region74: #{tpu_custom_call.1} parent=51 // pred_check_branch
          %424 = sbr.rel (%p422) target = $region76
        $region75: #{tpu_custom_call.1} parent=51 // pred_region
          %425 = dma.done [#allocation16], 256
        $region76: #{tpu_custom_call.1} parent=51 // pred_fallthru
          _
        // Predicated region
        $region77: #{tpu_custom_call.1} parent=51 // pred_check
          %p426 = pneg %p203
        $region78: #{tpu_custom_call.1} parent=51 // pred_check_branch
          %428 = sbr.rel (%p426) target = $region80
        $region79: #{tpu_custom_call.1} parent=51 // pred_region
          %429 = dma.done [#allocation16], 256
        $region80: #{tpu_custom_call.1} parent=51 // pred_fallthru
          _
        %s430 = sand.u32 %s50, 1
        %s431 = scalar_lea.sflag [#allocation7], %s430
        %s432 = sand.u32 %s50, 1
        %s433 = smul.addr %s432, 8
        %s434 = scalar_lea.vmem [#allocation6], %s433
        %p435 = pneg %p63
        %p436 = pneg %p60
        %s437 = sand.u32 %s30, 1
        %s438 = scalar_lea.sflag [#allocation10], %s437
        %s439 = sand.u32 %s78, 1
        %s440 = smul.addr %s439, 8
        %s441 = scalar_lea.vmem [#allocation9], %s440
        %p442 = pneg %p91
        %p443 = pneg %p88
        %s444 = sand.u32 %s30, 1
        %s445 = scalar_lea.sflag [#allocation10], %s444
        %s446 = sand.u32 %s106, 1
        %s447 = smul.addr %s446, 8
        %s448 = scalar_lea.vmem [#allocation11], %s447
        %p449 = pneg %p119
        %p450 = pneg %p116
        %p451 = pneg %p140
        %p452 = pneg %p137
        %p453 = pneg %p161
        %p454 = pneg %p158
        %p455 = pneg %p182
        %p456 = pneg %p179
        %p457 = pneg %p203
        %p458 = pneg %p200
        %p459 = pneg %p224
        %p460 = pneg %p221
        %p461 = pneg %p250
        %p462 = pneg %p247
        %s463 = sand.u32 %s237, 1
        %s464 = scalar_lea.sflag [#allocation8], %s463
        %s465 = sand.u32 %s237, 1
        %s466 = smul.addr %s465, 8
        %s467 = scalar_lea.vmem [#allocation18], %s466
        %s468 = sadd.s32 %s34, %s35
        %s469 = sadd.s32 %s34, %s35
        %p471 = scmp.eq.s32.totalorder %s35, 0
        // Predicated region
        $region81: #{tpu_custom_call.1} parent=51 // pred_check
          %p472 = pneg %p471
        $region82: #{tpu_custom_call.1} parent=51 // pred_check_branch
          %474 = sbr.rel (%p472) target = $region84
        $region83: #{tpu_custom_call.1} parent=51 // pred_region
          %v475 = vld [vmem:[%s391] sm:$0xff]
          %v476 = vpack.c.bf16 %v475, %v475
          %v477 = vld [vmem:[#allocation12] sm:$0xf]
          %v478 = vld [vmem:[#allocation12 + $0x4] sm:$0xf]
          %v479 = vld [vmem:[#allocation12 + $0x8] sm:$0xf]
          %v480 = vld [vmem:[#allocation12 + $0xc] sm:$0xf]
          %v485 = vunpack.c.l.b16 %v477
          %v486 = vunpack.c.l.b16 %v478
          %v487 = vunpack.c.l.b16 %v479
          %v488 = vunpack.c.l.b16 %v480
          %v489 = vpack.c.b16 %v486, %v485
          %v490 = vpack.c.b16 %v488, %v487
          %vm493 = vcmask 261120
          %v495 = vsel %vm493, %v476, 0
          %497 = vmatprep.subr.bf16.mxu0 0
          %498 = vmatpush1.bf16.msra.mxu0 0
          %499 = vmatprep.subr.bf16.mxu0 0
          %500 = vmatpush1.bf16.msra.mxu0 0
          %501 = vmatprep.subr.bf16.mxu0 0
          %502 = vmatpush1.bf16.msra.mxu0 0
          %503 = vmatprep.subr.bf16.mxu0 0
          %504 = vmatpush1.bf16.msra.mxu0 0
          %505 = vmatprep.subr.bf16.mxu0 0
          %506 = vmatpush1.bf16.msra.mxu0 0
          %507 = vmatprep.subr.bf16.mxu0 0
          %508 = vmatpush1.bf16.msra.mxu0 0
          %509 = vmatprep.subr.bf16.mxu0 0
          %510 = vmatpush1.bf16.msra.mxu0 %v490
          %511 = vmatprep.subr.bf16.mxu0 0
          %512 = vmatpush1.bf16.msra.mxu0 %v489
          %513 = vmatprep.subr.bf16.mxu0 0
          %514 = vmatpush2.bf16.msra.mxu0 0
          %515 = vmatprep.subr.bf16.mxu0 0
          %516 = vmatpush2.bf16.msra.mxu0 0
          %517 = vmatprep.subr.bf16.mxu0 0
          %518 = vmatpush2.bf16.msra.mxu0 0
          %519 = vmatprep.subr.bf16.mxu0 0
          %520 = vmatpush2.bf16.msra.mxu0 0
          %521 = vmatprep.subr.bf16.mxu0 0
          %522 = vmatpush2.bf16.msra.mxu0 0
          %523 = vmatprep.subr.bf16.mxu0 0
          %524 = vmatpush2.bf16.msra.mxu0 0
          %525 = vmatprep.subr.bf16.mxu0 0
          %526 = vmatpush2.bf16.msra.mxu0 0
          %527 = vmatprep.subr.bf16.mxu0 0
          %528 = vmatpush2.bf16.msra.mxu0 0
          %529 = vmatprep.mubr.bf16.mxu0 0
          %530 = vmatmul.mubr.bf16.gmra.mxu0 %v495
          %v531 = vpop.f32.mrf.mxu0
          %v532 = vadd.f32 0.0, %v531
          %v533 = vpop.f32.mrf.mxu0
          %v534 = vpop.f32.mrf.mxu0
          %v535 = vpop.f32.mrf.mxu0
          %536 = vdwg.mxu0
          %v537 = vmul.f32 %v532, 0.5
          %v538 = vpack.c.bf16 %v537, %v537
          %540 = vrot.lane.b32.xlu0 %v538, 124
          %v541 = vpop.permute.xlu0 %540
          %543 = vrot.lane.b32.xlu0 %v538, 120
          %v544 = vpop.permute.xlu0 %543
          %546 = vrot.lane.b32.xlu0 %v538, 116
          %v547 = vpop.permute.xlu0 %546
          %549 = vrot.lane.b32.xlu0 %v538, 112
          %v550 = vpop.permute.xlu0 %549
          %552 = vrot.lane.b32.xlu0 %v538, 108
          %v553 = vpop.permute.xlu0 %552
          %555 = vrot.lane.b32.xlu0 %v538, 104
          %v556 = vpop.permute.xlu0 %555
          %558 = vrot.lane.b32.xlu0 %v538, 100
          %v559 = vpop.permute.xlu0 %558
          %v561 = vcombine.low %v538, %v550
          %v563 = vunpack.c.l.s4 1983009808
          %v564 = vunpack.c.0.s8 %v563
          %v565 = vlaneseq
          %v566 = vshrl.u32 %v565, 7
          %v567 = vsub.s32 %v564, %v566
          %v568 = vrot.slane %v561, %v567
          %v569 = vcombine.low %v544, %v556
          %v571 = vunpack.c.l.s4 1983009808
          %v572 = vunpack.c.0.s8 %v571
          %v573 = vlaneseq
          %v574 = vshrl.u32 %v573, 7
          %v575 = vsub.s32 %v572, %v574
          %v576 = vrot.slane %v569, %v575
          %v577 = vcombine.low %v568, %v576
          %v578 = vcombine.high %v568, %v576
          %v580 = vunpack.c.l.s4 1934713408
          %v581 = vunpack.c.0.s8 %v580
          %v582 = vlaneseq
          %v583 = vshrl.u32 %v582, 7
          %v584 = vsub.s32 %v581, %v583
          %v585 = vrot.slane %v577, %v584
          %v587 = vunpack.c.l.s4 1934713408
          %v588 = vunpack.c.0.s8 %v587
          %v589 = vlaneseq
          %v590 = vshrl.u32 %v589, 7
          %v591 = vsub.s32 %v588, %v590
          %v592 = vrot.slane %v578, %v591
          %v593 = vcombine.high %v585, 0
          %v594 = vcombine.high %v592, 0
          %v595 = vcombine.low %v541, %v553
          %v597 = vunpack.c.l.s4 1983009808
          %v598 = vunpack.c.0.s8 %v597
          %v599 = vlaneseq
          %v600 = vshrl.u32 %v599, 7
          %v601 = vsub.s32 %v598, %v600
          %v602 = vrot.slane %v595, %v601
          %v603 = vcombine.low %v547, %v559
          %v605 = vunpack.c.l.s4 1983009808
          %v606 = vunpack.c.0.s8 %v605
          %v607 = vlaneseq
          %v608 = vshrl.u32 %v607, 7
          %v609 = vsub.s32 %v606, %v608
          %v610 = vrot.slane %v603, %v609
          %v611 = vcombine.low %v602, %v610
          %v612 = vcombine.high %v602, %v610
          %v614 = vunpack.c.l.s4 1934713408
          %v615 = vunpack.c.0.s8 %v614
          %v616 = vlaneseq
          %v617 = vshrl.u32 %v616, 7
          %v618 = vsub.s32 %v615, %v617
          %v619 = vrot.slane %v611, %v618
          %v621 = vunpack.c.l.s4 1934713408
          %v622 = vunpack.c.0.s8 %v621
          %v623 = vlaneseq
          %v624 = vshrl.u32 %v623, 7
          %v625 = vsub.s32 %v622, %v624
          %v626 = vrot.slane %v612, %v625
          %v627 = vcombine.high %v619, 0
          %v628 = vcombine.high %v626, 0
          %v631 = vpack.i.b16 %v619, %v585
          %v633 = vshrl.u32 %v585, 16
          %v634 = vshrl.u32 %v619, 16
          %v635 = vpack.i.b16 %v634, %v633
          %v639 = vpack.i.b16 %v627, %v593
          %v641 = vshrl.u32 %v593, 16
          %v642 = vshrl.u32 %v627, 16
          %v643 = vpack.i.b16 %v642, %v641
          %v647 = vpack.i.b16 %v626, %v592
          %v649 = vshrl.u32 %v592, 16
          %v650 = vshrl.u32 %v626, 16
          %v651 = vpack.i.b16 %v650, %v649
          %v655 = vpack.i.b16 %v628, %v594
          %v657 = vshrl.u32 %v594, 16
          %v658 = vshrl.u32 %v628, 16
          %v659 = vpack.i.b16 %v658, %v657
          %v661 = vcombine.low %v631, %v647
          %v663 = vunpack.c.l.s4 1983009808
          %v664 = vunpack.c.0.s8 %v663
          %v665 = vlaneseq
          %v666 = vshrl.u32 %v665, 7
          %v667 = vsub.s32 %v664, %v666
          %v668 = vrot.slane %v661, %v667
          %v669 = vcombine.low %v639, %v655
          %v671 = vunpack.c.l.s4 1983009808
          %v672 = vunpack.c.0.s8 %v671
          %v673 = vlaneseq
          %v674 = vshrl.u32 %v673, 7
          %v675 = vsub.s32 %v672, %v674
          %v676 = vrot.slane %v669, %v675
          %v677 = vcombine.low %v668, %v676
          %v678 = vcombine.high %v668, %v676
          %v680 = vunpack.c.l.s4 1934713408
          %v681 = vunpack.c.0.s8 %v680
          %v682 = vlaneseq
          %v683 = vshrl.u32 %v682, 7
          %v684 = vsub.s32 %v681, %v683
          %v685 = vrot.slane %v677, %v684
          %v687 = vunpack.c.l.s4 1934713408
          %v688 = vunpack.c.0.s8 %v687
          %v689 = vlaneseq
          %v690 = vshrl.u32 %v689, 7
          %v691 = vsub.s32 %v688, %v690
          %v692 = vrot.slane %v678, %v691
          %v693 = vcombine.high %v685, 0
          %v694 = vcombine.high %v692, 0
          %v695 = vcombine.low %v635, %v651
          %v697 = vunpack.c.l.s4 1983009808
          %v698 = vunpack.c.0.s8 %v697
          %v699 = vlaneseq
          %v700 = vshrl.u32 %v699, 7
          %v701 = vsub.s32 %v698, %v700
          %v702 = vrot.slane %v695, %v701
          %v703 = vcombine.low %v643, %v659
          %v705 = vunpack.c.l.s4 1983009808
          %v706 = vunpack.c.0.s8 %v705
          %v707 = vlaneseq
          %v708 = vshrl.u32 %v707, 7
          %v709 = vsub.s32 %v706, %v708
          %v710 = vrot.slane %v703, %v709
          %v711 = vcombine.low %v702, %v710
          %v712 = vcombine.high %v702, %v710
          %v714 = vunpack.c.l.s4 1934713408
          %v715 = vunpack.c.0.s8 %v714
          %v716 = vlaneseq
          %v717 = vshrl.u32 %v716, 7
          %v718 = vsub.s32 %v715, %v717
          %v719 = vrot.slane %v711, %v718
          %v721 = vunpack.c.l.s4 1934713408
          %v722 = vunpack.c.0.s8 %v721
          %v723 = vlaneseq
          %v724 = vshrl.u32 %v723, 7
          %v725 = vsub.s32 %v722, %v724
          %v726 = vrot.slane %v712, %v725
          %v727 = vcombine.high %v719, 0
          %v728 = vcombine.high %v726, 0
          %v731 = vpack.i.b16 %v719, %v685
          %v733 = vshrl.u32 %v685, 16
          %v734 = vshrl.u32 %v719, 16
          %v735 = vpack.i.b16 %v734, %v733
          %v739 = vpack.i.b16 %v727, %v693
          %v741 = vshrl.u32 %v693, 16
          %v742 = vshrl.u32 %v727, 16
          %v743 = vpack.i.b16 %v742, %v741
          %v747 = vpack.i.b16 %v726, %v692
          %v749 = vshrl.u32 %v692, 16
          %v750 = vshrl.u32 %v726, 16
          %v751 = vpack.i.b16 %v750, %v749
          %v755 = vpack.i.b16 %v728, %v694
          %v757 = vshrl.u32 %v694, 16
          %v758 = vshrl.u32 %v728, 16
          %v759 = vpack.i.b16 %v758, %v757
          %vm761 = vcmask 27648
          %762 = vst.msk [vmem:[#allocation2] sm:$0xf] %vm761, %v731
          %763 = vst.msk [vmem:[#allocation2 + $0x4] sm:$0xf] %vm761, %v735
          %764 = vst.msk [vmem:[#allocation2 + $0x8] sm:$0xf] %vm761, %v739
          %765 = vst.msk [vmem:[#allocation2 + $0xc] sm:$0xf] %vm761, %v743
          %766 = vst.msk [vmem:[#allocation2 + $0x10] sm:$0xf] %vm761, %v747
          %767 = vst.msk [vmem:[#allocation2 + $0x14] sm:$0xf] %vm761, %v751
          %768 = vst.msk [vmem:[#allocation2 + $0x18] sm:$0xf] %vm761, %v755
          %769 = vst.msk [vmem:[#allocation2 + $0x1c] sm:$0xf] %vm761, %v759
          %vm770 = vcmask 7168
          %771 = vst.msk [vmem:[#allocation3] sm:$0xff] %vm770, -inf
          %772 = vst.msk [vmem:[#allocation3 + $0x8] sm:$0xff] %vm770, -inf
          %773 = vst.msk [vmem:[#allocation3 + $0x10] sm:$0xff] %vm770, -inf
          %774 = vst.msk [vmem:[#allocation3 + $0x18] sm:$0xff] %vm770, -inf
          %775 = vst.msk [vmem:[#allocation3 + $0x20] sm:$0xff] %vm770, -inf
          %776 = vst.msk [vmem:[#allocation3 + $0x28] sm:$0xff] %vm770, -inf
          %777 = vst.msk [vmem:[#allocation3 + $0x30] sm:$0xff] %vm770, -inf
          %778 = vst.msk [vmem:[#allocation3 + $0x38] sm:$0xff] %vm770, -inf
          %779 = vst.msk [vmem:[#allocation4] sm:$0xff] %vm770, 0.0
          %780 = vst.msk [vmem:[#allocation4 + $0x8] sm:$0xff] %vm770, 0.0
          %781 = vst.msk [vmem:[#allocation4 + $0x10] sm:$0xff] %vm770, 0.0
          %782 = vst.msk [vmem:[#allocation4 + $0x18] sm:$0xff] %vm770, 0.0
          %783 = vst.msk [vmem:[#allocation4 + $0x20] sm:$0xff] %vm770, 0.0
          %784 = vst.msk [vmem:[#allocation4 + $0x28] sm:$0xff] %vm770, 0.0
          %785 = vst.msk [vmem:[#allocation4 + $0x30] sm:$0xff] %vm770, 0.0
          %786 = vst.msk [vmem:[#allocation4 + $0x38] sm:$0xff] %vm770, 0.0
          %vm787 = vcmask 31744
          %788 = vst.msk [vmem:[#allocation5] sm:$0xff] %vm787, 0.0
          %789 = vst.msk [vmem:[#allocation5 + $0x8] sm:$0xff] %vm787, 0.0
          %790 = vst.msk [vmem:[#allocation5 + $0x10] sm:$0xff] %vm787, 0.0
          %791 = vst.msk [vmem:[#allocation5 + $0x18] sm:$0xff] %vm787, 0.0
          %792 = vst.msk [vmem:[#allocation5 + $0x20] sm:$0xff] %vm787, 0.0
          %793 = vst.msk [vmem:[#allocation5 + $0x28] sm:$0xff] %vm787, 0.0
          %794 = vst.msk [vmem:[#allocation5 + $0x30] sm:$0xff] %vm787, 0.0
          %795 = vst.msk [vmem:[#allocation5 + $0x38] sm:$0xff] %vm787, 0.0
        $region84: #{tpu_custom_call.1} parent=51 // pred_fallthru
          _
        %v796 = vld [vmem:[%s400] sm:$0xff]
        %v797 = vpack.c.bf16 %v796, %v796
        %v798 = vld [vmem:[#allocation14] sm:$0xf]
        %v799 = vld [vmem:[#allocation14 + $0x4] sm:$0xf]
        %v800 = vld [vmem:[#allocation14 + $0x8] sm:$0xf]
        %v801 = vld [vmem:[#allocation14 + $0xc] sm:$0xf]
        %v806 = vunpack.c.l.b16 %v798
        %v807 = vunpack.c.l.b16 %v799
        %v808 = vunpack.c.l.b16 %v800
        %v809 = vunpack.c.l.b16 %v801
        %v810 = vpack.c.b16 %v807, %v806
        %v811 = vpack.c.b16 %v809, %v808
        %vm814 = vcmask 261120
        %v816 = vsel %vm814, %v797, 0
        %818 = vmatprep.subr.bf16.mxu0 0
        %819 = vmatpush1.bf16.msra.mxu0 0
        %820 = vmatprep.subr.bf16.mxu0 0
        %821 = vmatpush1.bf16.msra.mxu0 0
        %822 = vmatprep.subr.bf16.mxu0 0
        %823 = vmatpush1.bf16.msra.mxu0 0
        %824 = vmatprep.subr.bf16.mxu0 0
        %825 = vmatpush1.bf16.msra.mxu0 0
        %826 = vmatprep.subr.bf16.mxu0 0
        %827 = vmatpush1.bf16.msra.mxu0 0
        %828 = vmatprep.subr.bf16.mxu0 0
        %829 = vmatpush1.bf16.msra.mxu0 0
        %830 = vmatprep.subr.bf16.mxu0 0
        %831 = vmatpush1.bf16.msra.mxu0 %v811
        %832 = vmatprep.subr.bf16.mxu0 0
        %833 = vmatpush1.bf16.msra.mxu0 %v810
        %834 = vmatprep.subr.bf16.mxu0 0
        %835 = vmatpush2.bf16.msra.mxu0 0
        %836 = vmatprep.subr.bf16.mxu0 0
        %837 = vmatpush2.bf16.msra.mxu0 0
        %838 = vmatprep.subr.bf16.mxu0 0
        %839 = vmatpush2.bf16.msra.mxu0 0
        %840 = vmatprep.subr.bf16.mxu0 0
        %841 = vmatpush2.bf16.msra.mxu0 0
        %842 = vmatprep.subr.bf16.mxu0 0
        %843 = vmatpush2.bf16.msra.mxu0 0
        %844 = vmatprep.subr.bf16.mxu0 0
        %845 = vmatpush2.bf16.msra.mxu0 0
        %846 = vmatprep.subr.bf16.mxu0 0
        %847 = vmatpush2.bf16.msra.mxu0 0
        %848 = vmatprep.subr.bf16.mxu0 0
        %849 = vmatpush2.bf16.msra.mxu0 0
        %850 = vmatprep.mubr.bf16.mxu0 0
        %851 = vmatmul.mubr.bf16.gmra.mxu0 %v816
        %v852 = vpop.f32.mrf.mxu0
        %v853 = vadd.f32 0.0, %v852
        %v854 = vpop.f32.mrf.mxu0
        %v855 = vpop.f32.mrf.mxu0
        %v856 = vpop.f32.mrf.mxu0
        %857 = vdwg.mxu0
        %v858 = vpack.c.bf16 %v853, %v853
        %v859 = vld [vmem:[%s409] sm:$0xff]
        %v860 = vpack.c.bf16 %v859, %v859
        %v861 = vld [vmem:[#allocation15] sm:$0xf]
        %v862 = vld [vmem:[#allocation15 + $0x4] sm:$0xf]
        %v863 = vld [vmem:[#allocation15 + $0x8] sm:$0xf]
        %v864 = vld [vmem:[#allocation15 + $0xc] sm:$0xf]
        %v869 = vunpack.c.l.b16 %v861
        %v870 = vunpack.c.l.b16 %v862
        %v871 = vunpack.c.l.b16 %v863
        %v872 = vunpack.c.l.b16 %v864
        %v873 = vpack.c.b16 %v870, %v869
        %v874 = vpack.c.b16 %v872, %v871
        %v878 = vsel %vm814, %v860, 0
        %880 = vmatprep.subr.bf16.mxu0 0
        %881 = vmatpush1.bf16.msra.mxu0 0
        %882 = vmatprep.subr.bf16.mxu0 0
        %883 = vmatpush1.bf16.msra.mxu0 0
        %884 = vmatprep.subr.bf16.mxu0 0
        %885 = vmatpush1.bf16.msra.mxu0 0
        %886 = vmatprep.subr.bf16.mxu0 0
        %887 = vmatpush1.bf16.msra.mxu0 0
        %888 = vmatprep.subr.bf16.mxu0 0
        %889 = vmatpush1.bf16.msra.mxu0 0
        %890 = vmatprep.subr.bf16.mxu0 0
        %891 = vmatpush1.bf16.msra.mxu0 0
        %892 = vmatprep.subr.bf16.mxu0 0
        %893 = vmatpush1.bf16.msra.mxu0 %v874
        %894 = vmatprep.subr.bf16.mxu0 0
        %895 = vmatpush1.bf16.msra.mxu0 %v873
        %896 = vmatprep.subr.bf16.mxu0 0
        %897 = vmatpush2.bf16.msra.mxu0 0
        %898 = vmatprep.subr.bf16.mxu0 0
        %899 = vmatpush2.bf16.msra.mxu0 0
        %900 = vmatprep.subr.bf16.mxu0 0
        %901 = vmatpush2.bf16.msra.mxu0 0
        %902 = vmatprep.subr.bf16.mxu0 0
        %903 = vmatpush2.bf16.msra.mxu0 0
        %904 = vmatprep.subr.bf16.mxu0 0
        %905 = vmatpush2.bf16.msra.mxu0 0
        %906 = vmatprep.subr.bf16.mxu0 0
        %907 = vmatpush2.bf16.msra.mxu0 0
        %908 = vmatprep.subr.bf16.mxu0 0
        %909 = vmatpush2.bf16.msra.mxu0 0
        %910 = vmatprep.subr.bf16.mxu0 0
        %911 = vmatpush2.bf16.msra.mxu0 0
        %912 = vmatprep.mubr.bf16.mxu0 0
        %913 = vmatmul.mubr.bf16.gmra.mxu0 %v878
        %v914 = vpop.f32.mrf.mxu0
        %v915 = vadd.f32 0.0, %v914
        %v916 = vpop.f32.mrf.mxu0
        %v917 = vpop.f32.mrf.mxu0
        %v918 = vpop.f32.mrf.mxu0
        %919 = vdwg.mxu0
        %v920 = vpack.c.bf16 %v915, %v915
        %922 = vrot.lane.b32.xlu0 %v858, 124
        %v923 = vpop.permute.xlu0 %922
        %925 = vrot.lane.b32.xlu0 %v858, 120
        %v926 = vpop.permute.xlu0 %925
        %928 = vrot.lane.b32.xlu0 %v858, 116
        %v929 = vpop.permute.xlu0 %928
        %931 = vrot.lane.b32.xlu0 %v858, 112
        %v932 = vpop.permute.xlu0 %931
        %934 = vrot.lane.b32.xlu0 %v858, 108
        %v935 = vpop.permute.xlu0 %934
        %937 = vrot.lane.b32.xlu0 %v858, 104
        %v938 = vpop.permute.xlu0 %937
        %940 = vrot.lane.b32.xlu0 %v858, 100
        %v941 = vpop.permute.xlu0 %940
        %v943 = vcombine.low %v858, %v932
        %v945 = vunpack.c.l.s4 1983009808
        %v946 = vunpack.c.0.s8 %v945
        %v947 = vlaneseq
        %v948 = vshrl.u32 %v947, 7
        %v949 = vsub.s32 %v946, %v948
        %v950 = vrot.slane %v943, %v949
        %v951 = vcombine.low %v926, %v938
        %v953 = vunpack.c.l.s4 1983009808
        %v954 = vunpack.c.0.s8 %v953
        %v955 = vlaneseq
        %v956 = vshrl.u32 %v955, 7
        %v957 = vsub.s32 %v954, %v956
        %v958 = vrot.slane %v951, %v957
        %v959 = vcombine.low %v950, %v958
        %v960 = vcombine.high %v950, %v958
        %v962 = vunpack.c.l.s4 1934713408
        %v963 = vunpack.c.0.s8 %v962
        %v964 = vlaneseq
        %v965 = vshrl.u32 %v964, 7
        %v966 = vsub.s32 %v963, %v965
        %v967 = vrot.slane %v959, %v966
        %v969 = vunpack.c.l.s4 1934713408
        %v970 = vunpack.c.0.s8 %v969
        %v971 = vlaneseq
        %v972 = vshrl.u32 %v971, 7
        %v973 = vsub.s32 %v970, %v972
        %v974 = vrot.slane %v960, %v973
        %v975 = vcombine.high %v967, 0
        %v976 = vcombine.high %v974, 0
        %v977 = vcombine.low %v923, %v935
        %v979 = vunpack.c.l.s4 1983009808
        %v980 = vunpack.c.0.s8 %v979
        %v981 = vlaneseq
        %v982 = vshrl.u32 %v981, 7
        %v983 = vsub.s32 %v980, %v982
        %v984 = vrot.slane %v977, %v983
        %v985 = vcombine.low %v929, %v941
        %v987 = vunpack.c.l.s4 1983009808
        %v988 = vunpack.c.0.s8 %v987
        %v989 = vlaneseq
        %v990 = vshrl.u32 %v989, 7
        %v991 = vsub.s32 %v988, %v990
        %v992 = vrot.slane %v985, %v991
        %v993 = vcombine.low %v984, %v992
        %v994 = vcombine.high %v984, %v992
        %v996 = vunpack.c.l.s4 1934713408
        %v997 = vunpack.c.0.s8 %v996
        %v998 = vlaneseq
        %v999 = vshrl.u32 %v998, 7
        %v1000 = vsub.s32 %v997, %v999
        %v1001 = vrot.slane %v993, %v1000
        %v1003 = vunpack.c.l.s4 1934713408
        %v1004 = vunpack.c.0.s8 %v1003
        %v1005 = vlaneseq
        %v1006 = vshrl.u32 %v1005, 7
        %v1007 = vsub.s32 %v1004, %v1006
        %v1008 = vrot.slane %v994, %v1007
        %v1009 = vcombine.high %v1001, 0
        %v1010 = vcombine.high %v1008, 0
        %v1013 = vpack.i.b16 %v1001, %v967
        %v1015 = vshrl.u32 %v967, 16
        %v1016 = vshrl.u32 %v1001, 16
        %v1017 = vpack.i.b16 %v1016, %v1015
        %v1021 = vpack.i.b16 %v1009, %v975
        %v1023 = vshrl.u32 %v975, 16
        %v1024 = vshrl.u32 %v1009, 16
        %v1025 = vpack.i.b16 %v1024, %v1023
        %v1029 = vpack.i.b16 %v1008, %v974
        %v1031 = vshrl.u32 %v974, 16
        %v1032 = vshrl.u32 %v1008, 16
        %v1033 = vpack.i.b16 %v1032, %v1031
        %v1037 = vpack.i.b16 %v1010, %v976
        %v1039 = vshrl.u32 %v976, 16
        %v1040 = vshrl.u32 %v1010, 16
        %v1041 = vpack.i.b16 %v1040, %v1039
        %v1043 = vcombine.low %v1013, %v1029
        %v1045 = vunpack.c.l.s4 1983009808
        %v1046 = vunpack.c.0.s8 %v1045
        %v1047 = vlaneseq
        %v1048 = vshrl.u32 %v1047, 7
        %v1049 = vsub.s32 %v1046, %v1048
        %v1050 = vrot.slane %v1043, %v1049
        %v1051 = vcombine.low %v1021, %v1037
        %v1053 = vunpack.c.l.s4 1983009808
        %v1054 = vunpack.c.0.s8 %v1053
        %v1055 = vlaneseq
        %v1056 = vshrl.u32 %v1055, 7
        %v1057 = vsub.s32 %v1054, %v1056
        %v1058 = vrot.slane %v1051, %v1057
        %v1059 = vcombine.low %v1050, %v1058
        %v1060 = vcombine.high %v1050, %v1058
        %v1062 = vunpack.c.l.s4 1934713408
        %v1063 = vunpack.c.0.s8 %v1062
        %v1064 = vlaneseq
        %v1065 = vshrl.u32 %v1064, 7
        %v1066 = vsub.s32 %v1063, %v1065
        %v1067 = vrot.slane %v1059, %v1066
        %v1069 = vunpack.c.l.s4 1934713408
        %v1070 = vunpack.c.0.s8 %v1069
        %v1071 = vlaneseq
        %v1072 = vshrl.u32 %v1071, 7
        %v1073 = vsub.s32 %v1070, %v1072
        %v1074 = vrot.slane %v1060, %v1073
        %v1075 = vcombine.high %v1067, 0
        %v1076 = vcombine.high %v1074, 0
        %v1077 = vcombine.low %v1017, %v1033
        %v1079 = vunpack.c.l.s4 1983009808
        %v1080 = vunpack.c.0.s8 %v1079
        %v1081 = vlaneseq
        %v1082 = vshrl.u32 %v1081, 7
        %v1083 = vsub.s32 %v1080, %v1082
        %v1084 = vrot.slane %v1077, %v1083
        %v1085 = vcombine.low %v1025, %v1041
        %v1087 = vunpack.c.l.s4 1983009808
        %v1088 = vunpack.c.0.s8 %v1087
        %v1089 = vlaneseq
        %v1090 = vshrl.u32 %v1089, 7
        %v1091 = vsub.s32 %v1088, %v1090
        %v1092 = vrot.slane %v1085, %v1091
        %v1093 = vcombine.low %v1084, %v1092
        %v1094 = vcombine.high %v1084, %v1092
        %v1096 = vunpack.c.l.s4 1934713408
        %v1097 = vunpack.c.0.s8 %v1096
        %v1098 = vlaneseq
        %v1099 = vshrl.u32 %v1098, 7
        %v1100 = vsub.s32 %v1097, %v1099
        %v1101 = vrot.slane %v1093, %v1100
        %v1103 = vunpack.c.l.s4 1934713408
        %v1104 = vunpack.c.0.s8 %v1103
        %v1105 = vlaneseq
        %v1106 = vshrl.u32 %v1105, 7
        %v1107 = vsub.s32 %v1104, %v1106
        %v1108 = vrot.slane %v1094, %v1107
        %v1109 = vcombine.high %v1101, 0
        %v1110 = vcombine.high %v1108, 0
        %v1113 = vpack.i.b16 %v1101, %v1067
        %v1114 = vshrl.u32 %v1067, 16
        %v1115 = vshrl.u32 %v1101, 16
        %v1116 = vpack.i.b16 %v1115, %v1114
        %v1119 = vpack.i.b16 %v1109, %v1075
        %v1120 = vshrl.u32 %v1075, 16
        %v1121 = vshrl.u32 %v1109, 16
        %v1122 = vpack.i.b16 %v1121, %v1120
        %v1125 = vpack.i.b16 %v1108, %v1074
        %v1126 = vshrl.u32 %v1074, 16
        %v1127 = vshrl.u32 %v1108, 16
        %v1128 = vpack.i.b16 %v1127, %v1126
        %v1131 = vpack.i.b16 %v1110, %v1076
        %v1132 = vshrl.u32 %v1076, 16
        %v1133 = vshrl.u32 %v1110, 16
        %v1134 = vpack.i.b16 %v1133, %v1132
        %1136 = vrot.lane.b32.xlu0 %v920, 124
        %v1137 = vpop.permute.xlu0 %1136
        %1139 = vrot.lane.b32.xlu0 %v920, 120
        %v1140 = vpop.permute.xlu0 %1139
        %1142 = vrot.lane.b32.xlu0 %v920, 116
        %v1143 = vpop.permute.xlu0 %1142
        %1145 = vrot.lane.b32.xlu0 %v920, 112
        %v1146 = vpop.permute.xlu0 %1145
        %1148 = vrot.lane.b32.xlu0 %v920, 108
        %v1149 = vpop.permute.xlu0 %1148
        %1151 = vrot.lane.b32.xlu0 %v920, 104
        %v1152 = vpop.permute.xlu0 %1151
        %1154 = vrot.lane.b32.xlu0 %v920, 100
        %v1155 = vpop.permute.xlu0 %1154
        %v1157 = vcombine.low %v920, %v1146
        %v1159 = vunpack.c.l.s4 1983009808
        %v1160 = vunpack.c.0.s8 %v1159
        %v1161 = vlaneseq
        %v1162 = vshrl.u32 %v1161, 7
        %v1163 = vsub.s32 %v1160, %v1162
        %v1164 = vrot.slane %v1157, %v1163
        %v1165 = vcombine.low %v1140, %v1152
        %v1167 = vunpack.c.l.s4 1983009808
        %v1168 = vunpack.c.0.s8 %v1167
        %v1169 = vlaneseq
        %v1170 = vshrl.u32 %v1169, 7
        %v1171 = vsub.s32 %v1168, %v1170
        %v1172 = vrot.slane %v1165, %v1171
        %v1173 = vcombine.low %v1164, %v1172
        %v1174 = vcombine.high %v1164, %v1172
        %v1176 = vunpack.c.l.s4 1934713408
        %v1177 = vunpack.c.0.s8 %v1176
        %v1178 = vlaneseq
        %v1179 = vshrl.u32 %v1178, 7
        %v1180 = vsub.s32 %v1177, %v1179
        %v1181 = vrot.slane %v1173, %v1180
        %v1183 = vunpack.c.l.s4 1934713408
        %v1184 = vunpack.c.0.s8 %v1183
        %v1185 = vlaneseq
        %v1186 = vshrl.u32 %v1185, 7
        %v1187 = vsub.s32 %v1184, %v1186
        %v1188 = vrot.slane %v1174, %v1187
        %v1189 = vcombine.high %v1181, 0
        %v1190 = vcombine.high %v1188, 0
        %v1191 = vcombine.low %v1137, %v1149
        %v1193 = vunpack.c.l.s4 1983009808
        %v1194 = vunpack.c.0.s8 %v1193
        %v1195 = vlaneseq
        %v1196 = vshrl.u32 %v1195, 7
        %v1197 = vsub.s32 %v1194, %v1196
        %v1198 = vrot.slane %v1191, %v1197
        %v1199 = vcombine.low %v1143, %v1155
        %v1201 = vunpack.c.l.s4 1983009808
        %v1202 = vunpack.c.0.s8 %v1201
        %v1203 = vlaneseq
        %v1204 = vshrl.u32 %v1203, 7
        %v1205 = vsub.s32 %v1202, %v1204
        %v1206 = vrot.slane %v1199, %v1205
        %v1207 = vcombine.low %v1198, %v1206
        %v1208 = vcombine.high %v1198, %v1206
        %v1210 = vunpack.c.l.s4 1934713408
        %v1211 = vunpack.c.0.s8 %v1210
        %v1212 = vlaneseq
        %v1213 = vshrl.u32 %v1212, 7
        %v1214 = vsub.s32 %v1211, %v1213
        %v1215 = vrot.slane %v1207, %v1214
        %v1217 = vunpack.c.l.s4 1934713408
        %v1218 = vunpack.c.0.s8 %v1217
        %v1219 = vlaneseq
        %v1220 = vshrl.u32 %v1219, 7
        %v1221 = vsub.s32 %v1218, %v1220
        %v1222 = vrot.slane %v1208, %v1221
        %v1223 = vcombine.high %v1215, 0
        %v1224 = vcombine.high %v1222, 0
        %v1227 = vpack.i.b16 %v1215, %v1181
        %v1229 = vshrl.u32 %v1181, 16
        %v1230 = vshrl.u32 %v1215, 16
        %v1231 = vpack.i.b16 %v1230, %v1229
        %v1235 = vpack.i.b16 %v1223, %v1189
        %v1237 = vshrl.u32 %v1189, 16
        %v1238 = vshrl.u32 %v1223, 16
        %v1239 = vpack.i.b16 %v1238, %v1237
        %v1243 = vpack.i.b16 %v1222, %v1188
        %v1245 = vshrl.u32 %v1188, 16
        %v1246 = vshrl.u32 %v1222, 16
        %v1247 = vpack.i.b16 %v1246, %v1245
        %v1251 = vpack.i.b16 %v1224, %v1190
        %v1253 = vshrl.u32 %v1190, 16
        %v1254 = vshrl.u32 %v1224, 16
        %v1255 = vpack.i.b16 %v1254, %v1253
        %v1257 = vcombine.low %v1227, %v1243
        %v1259 = vunpack.c.l.s4 1983009808
        %v1260 = vunpack.c.0.s8 %v1259
        %v1261 = vlaneseq
        %v1262 = vshrl.u32 %v1261, 7
        %v1263 = vsub.s32 %v1260, %v1262
        %v1264 = vrot.slane %v1257, %v1263
        %v1265 = vcombine.low %v1235, %v1251
        %v1267 = vunpack.c.l.s4 1983009808
        %v1268 = vunpack.c.0.s8 %v1267
        %v1269 = vlaneseq
        %v1270 = vshrl.u32 %v1269, 7
        %v1271 = vsub.s32 %v1268, %v1270
        %v1272 = vrot.slane %v1265, %v1271
        %v1273 = vcombine.low %v1264, %v1272
        %v1274 = vcombine.high %v1264, %v1272
        %v1276 = vunpack.c.l.s4 1934713408
        %v1277 = vunpack.c.0.s8 %v1276
        %v1278 = vlaneseq
        %v1279 = vshrl.u32 %v1278, 7
        %v1280 = vsub.s32 %v1277, %v1279
        %v1281 = vrot.slane %v1273, %v1280
        %v1283 = vunpack.c.l.s4 1934713408
        %v1284 = vunpack.c.0.s8 %v1283
        %v1285 = vlaneseq
        %v1286 = vshrl.u32 %v1285, 7
        %v1287 = vsub.s32 %v1284, %v1286
        %v1288 = vrot.slane %v1274, %v1287
        %v1289 = vcombine.high %v1281, 0
        %v1290 = vcombine.high %v1288, 0
        %v1291 = vcombine.low %v1231, %v1247
        %v1293 = vunpack.c.l.s4 1983009808
        %v1294 = vunpack.c.0.s8 %v1293
        %v1295 = vlaneseq
        %v1296 = vshrl.u32 %v1295, 7
        %v1297 = vsub.s32 %v1294, %v1296
        %v1298 = vrot.slane %v1291, %v1297
        %v1299 = vcombine.low %v1239, %v1255
        %v1301 = vunpack.c.l.s4 1983009808
        %v1302 = vunpack.c.0.s8 %v1301
        %v1303 = vlaneseq
        %v1304 = vshrl.u32 %v1303, 7
        %v1305 = vsub.s32 %v1302, %v1304
        %v1306 = vrot.slane %v1299, %v1305
        %v1307 = vcombine.low %v1298, %v1306
        %v1308 = vcombine.high %v1298, %v1306
        %v1310 = vunpack.c.l.s4 1934713408
        %v1311 = vunpack.c.0.s8 %v1310
        %v1312 = vlaneseq
        %v1313 = vshrl.u32 %v1312, 7
        %v1314 = vsub.s32 %v1311, %v1313
        %v1315 = vrot.slane %v1307, %v1314
        %v1317 = vunpack.c.l.s4 1934713408
        %v1318 = vunpack.c.0.s8 %v1317
        %v1319 = vlaneseq
        %v1320 = vshrl.u32 %v1319, 7
        %v1321 = vsub.s32 %v1318, %v1320
        %v1322 = vrot.slane %v1308, %v1321
        %v1323 = vcombine.high %v1315, 0
        %v1324 = vcombine.high %v1322, 0
        %v1327 = vpack.i.b16 %v1315, %v1281
        %v1328 = vshrl.u32 %v1281, 16
        %v1329 = vshrl.u32 %v1315, 16
        %v1330 = vpack.i.b16 %v1329, %v1328
        %v1333 = vpack.i.b16 %v1323, %v1289
        %v1334 = vshrl.u32 %v1289, 16
        %v1335 = vshrl.u32 %v1323, 16
        %v1336 = vpack.i.b16 %v1335, %v1334
        %v1339 = vpack.i.b16 %v1322, %v1288
        %v1340 = vshrl.u32 %v1288, 16
        %v1341 = vshrl.u32 %v1322, 16
        %v1342 = vpack.i.b16 %v1341, %v1340
        %v1345 = vpack.i.b16 %v1324, %v1290
        %v1346 = vshrl.u32 %v1290, 16
        %v1347 = vshrl.u32 %v1324, 16
        %v1348 = vpack.i.b16 %v1347, %v1346
        %v1349 = vld [vmem:[#allocation2] sm:$0xf]
        %v1350 = vld [vmem:[#allocation2 + $0x4] sm:$0xf]
        %v1351 = vld [vmem:[#allocation2 + $0x8] sm:$0xf]
        %v1352 = vld [vmem:[#allocation2 + $0xc] sm:$0xf]
        %v1353 = vld [vmem:[#allocation2 + $0x10] sm:$0xf]
        %v1354 = vld [vmem:[#allocation2 + $0x14] sm:$0xf]
        %v1355 = vld [vmem:[#allocation2 + $0x18] sm:$0xf]
        %v1356 = vld [vmem:[#allocation2 + $0x1c] sm:$0xf]
        %vm1357 = vcmask 31744
        %v1359 = vsel %vm1357, %v1349, 0
        %v1362 = vsel %vm1357, %v1113, 0
        %1364 = vmatprep.subr.bf16.mxu0 0
        %1365 = vmatpush1.bf16.xpose.msra.mxu0 0
        %1366 = vmatprep.subr.bf16.mxu0 0
        %1367 = vmatpush1.bf16.xpose.msra.mxu0 0
        %1368 = vmatprep.subr.bf16.mxu0 0
        %1369 = vmatpush1.bf16.xpose.msra.mxu0 0
        %1370 = vmatprep.subr.bf16.mxu0 0
        %1371 = vmatpush1.bf16.xpose.msra.mxu0 0
        %1372 = vmatprep.subr.bf16.mxu0 0
        %1373 = vmatpush1.bf16.xpose.msra.mxu0 0
        %1374 = vmatprep.subr.bf16.mxu0 0
        %1375 = vmatpush1.bf16.xpose.msra.mxu0 0
        %1376 = vmatprep.subr.bf16.mxu0 0
        %1377 = vmatpush1.bf16.xpose.msra.mxu0 0
        %1378 = vmatprep.subr.bf16.mxu0 0
        %1379 = vmatpush1.bf16.xpose.msra.mxu0 %v1362
        %1380 = vmatprep.subr.bf16.mxu0 0
        %1381 = vmatpush2.bf16.xpose.msra.mxu0 0
        %1382 = vmatprep.subr.bf16.mxu0 0
        %1383 = vmatpush2.bf16.xpose.msra.mxu0 0
        %1384 = vmatprep.subr.bf16.mxu0 0
        %1385 = vmatpush2.bf16.xpose.msra.mxu0 0
        %1386 = vmatprep.subr.bf16.mxu0 0
        %1387 = vmatpush2.bf16.xpose.msra.mxu0 0
        %1388 = vmatprep.subr.bf16.mxu0 0
        %1389 = vmatpush2.bf16.xpose.msra.mxu0 0
        %1390 = vmatprep.subr.bf16.mxu0 0
        %1391 = vmatpush2.bf16.xpose.msra.mxu0 0
        %1392 = vmatprep.subr.bf16.mxu0 0
        %1393 = vmatpush2.bf16.xpose.msra.mxu0 0
        %1394 = vmatprep.subr.bf16.mxu0 0
        %1395 = vmatpush2.bf16.xpose.msra.mxu0 0
        %1396 = vmatprep.mubr.bf16.mxu0 0
        %1397 = vmatmul.mubr.bf16.gmra.mxu0 %v1359
        %v1398 = vpop.f32.mrf.mxu0
        %v1399 = vadd.f32 0.0, %v1398
        %v1400 = vpop.f32.mrf.mxu0
        %v1401 = vpop.f32.mrf.mxu0
        %v1402 = vpop.f32.mrf.mxu0
        %1403 = vdwg.mxu0
        %v1405 = vsel %vm1357, %v1350, 0
        %v1408 = vsel %vm1357, %v1116, 0
        %1410 = vmatprep.subr.bf16.mxu0 0
        %1411 = vmatpush1.bf16.xpose.msra.mxu0 0
        %1412 = vmatprep.subr.bf16.mxu0 0
        %1413 = vmatpush1.bf16.xpose.msra.mxu0 0
        %1414 = vmatprep.subr.bf16.mxu0 0
        %1415 = vmatpush1.bf16.xpose.msra.mxu0 0
        %1416 = vmatprep.subr.bf16.mxu0 0
        %1417 = vmatpush1.bf16.xpose.msra.mxu0 0
        %1418 = vmatprep.subr.bf16.mxu0 0
        %1419 = vmatpush1.bf16.xpose.msra.mxu0 0
        %1420 = vmatprep.subr.bf16.mxu0 0
        %1421 = vmatpush1.bf16.xpose.msra.mxu0 0
        %1422 = vmatprep.subr.bf16.mxu0 0
        %1423 = vmatpush1.bf16.xpose.msra.mxu0 0
        %1424 = vmatprep.subr.bf16.mxu0 0
        %1425 = vmatpush1.bf16.xpose.msra.mxu0 %v1408
        %1426 = vmatprep.subr.bf16.mxu0 0
        %1427 = vmatpush2.bf16.xpose.msra.mxu0 0
        %1428 = vmatprep.subr.bf16.mxu0 0
        %1429 = vmatpush2.bf16.xpose.msra.mxu0 0
        %1430 = vmatprep.subr.bf16.mxu0 0
        %1431 = vmatpush2.bf16.xpose.msra.mxu0 0
        %1432 = vmatprep.subr.bf16.mxu0 0
        %1433 = vmatpush2.bf16.xpose.msra.mxu0 0
        %1434 = vmatprep.subr.bf16.mxu0 0
        %1435 = vmatpush2.bf16.xpose.msra.mxu0 0
        %1436 = vmatprep.subr.bf16.mxu0 0
        %1437 = vmatpush2.bf16.xpose.msra.mxu0 0
        %1438 = vmatprep.subr.bf16.mxu0 0
        %1439 = vmatpush2.bf16.xpose.msra.mxu0 0
        %1440 = vmatprep.subr.bf16.mxu0 0
        %1441 = vmatpush2.bf16.xpose.msra.mxu0 0
        %1442 = vmatprep.mubr.bf16.mxu0 0
        %1443 = vmatmul.mubr.bf16.gmra.mxu0 %v1405
        %v1444 = vpop.f32.mrf.mxu0
        %v1445 = vadd.f32 0.0, %v1444
        %v1446 = vpop.f32.mrf.mxu0
        %v1447 = vpop.f32.mrf.mxu0
        %v1448 = vpop.f32.mrf.mxu0
        %1449 = vdwg.mxu0
        %v1451 = vsel %vm1357, %v1351, 0
        %v1454 = vsel %vm1357, %v1119, 0
        %1456 = vmatprep.subr.bf16.mxu0 0
        %1457 = vmatpush1.bf16.xpose.msra.mxu0 0
        %1458 = vmatprep.subr.bf16.mxu0 0
        %1459 = vmatpush1.bf16.xpose.msra.mxu0 0
        %1460 = vmatprep.subr.bf16.mxu0 0
        %1461 = vmatpush1.bf16.xpose.msra.mxu0 0
        %1462 = vmatprep.subr.bf16.mxu0 0
        %1463 = vmatpush1.bf16.xpose.msra.mxu0 0
        %1464 = vmatprep.subr.bf16.mxu0 0
        %1465 = vmatpush1.bf16.xpose.msra.mxu0 0
        %1466 = vmatprep.subr.bf16.mxu0 0
        %1467 = vmatpush1.bf16.xpose.msra.mxu0 0
        %1468 = vmatprep.subr.bf16.mxu0 0
        %1469 = vmatpush1.bf16.xpose.msra.mxu0 0
        %1470 = vmatprep.subr.bf16.mxu0 0
        %1471 = vmatpush1.bf16.xpose.msra.mxu0 %v1454
        %1472 = vmatprep.subr.bf16.mxu0 0
        %1473 = vmatpush2.bf16.xpose.msra.mxu0 0
        %1474 = vmatprep.subr.bf16.mxu0 0
        %1475 = vmatpush2.bf16.xpose.msra.mxu0 0
        %1476 = vmatprep.subr.bf16.mxu0 0
        %1477 = vmatpush2.bf16.xpose.msra.mxu0 0
        %1478 = vmatprep.subr.bf16.mxu0 0
        %1479 = vmatpush2.bf16.xpose.msra.mxu0 0
        %1480 = vmatprep.subr.bf16.mxu0 0
        %1481 = vmatpush2.bf16.xpose.msra.mxu0 0
        %1482 = vmatprep.subr.bf16.mxu0 0
        %1483 = vmatpush2.bf16.xpose.msra.mxu0 0
        %1484 = vmatprep.subr.bf16.mxu0 0
        %1485 = vmatpush2.bf16.xpose.msra.mxu0 0
        %1486 = vmatprep.subr.bf16.mxu0 0
        %1487 = vmatpush2.bf16.xpose.msra.mxu0 0
        %1488 = vmatprep.mubr.bf16.mxu0 0
        %1489 = vmatmul.mubr.bf16.gmra.mxu0 %v1451
        %v1490 = vpop.f32.mrf.mxu0
        %v1491 = vadd.f32 0.0, %v1490
        %v1492 = vpop.f32.mrf.mxu0
        %v1493 = vpop.f32.mrf.mxu0
        %v1494 = vpop.f32.mrf.mxu0
        %1495 = vdwg.mxu0
        %v1497 = vsel %vm1357, %v1352, 0
        %v1500 = vsel %vm1357, %v1122, 0
        %1502 = vmatprep.subr.bf16.mxu0 0
        %1503 = vmatpush1.bf16.xpose.msra.mxu0 0
        %1504 = vmatprep.subr.bf16.mxu0 0
        %1505 = vmatpush1.bf16.xpose.msra.mxu0 0
        %1506 = vmatprep.subr.bf16.mxu0 0
        %1507 = vmatpush1.bf16.xpose.msra.mxu0 0
        %1508 = vmatprep.subr.bf16.mxu0 0
        %1509 = vmatpush1.bf16.xpose.msra.mxu0 0
        %1510 = vmatprep.subr.bf16.mxu0 0
        %1511 = vmatpush1.bf16.xpose.msra.mxu0 0
        %1512 = vmatprep.subr.bf16.mxu0 0
        %1513 = vmatpush1.bf16.xpose.msra.mxu0 0
        %1514 = vmatprep.subr.bf16.mxu0 0
        %1515 = vmatpush1.bf16.xpose.msra.mxu0 0
        %1516 = vmatprep.subr.bf16.mxu0 0
        %1517 = vmatpush1.bf16.xpose.msra.mxu0 %v1500
        %1518 = vmatprep.subr.bf16.mxu0 0
        %1519 = vmatpush2.bf16.xpose.msra.mxu0 0
        %1520 = vmatprep.subr.bf16.mxu0 0
        %1521 = vmatpush2.bf16.xpose.msra.mxu0 0
        %1522 = vmatprep.subr.bf16.mxu0 0
        %1523 = vmatpush2.bf16.xpose.msra.mxu0 0
        %1524 = vmatprep.subr.bf16.mxu0 0
        %1525 = vmatpush2.bf16.xpose.msra.mxu0 0
        %1526 = vmatprep.subr.bf16.mxu0 0
        %1527 = vmatpush2.bf16.xpose.msra.mxu0 0
        %1528 = vmatprep.subr.bf16.mxu0 0
        %1529 = vmatpush2.bf16.xpose.msra.mxu0 0
        %1530 = vmatprep.subr.bf16.mxu0 0
        %1531 = vmatpush2.bf16.xpose.msra.mxu0 0
        %1532 = vmatprep.subr.bf16.mxu0 0
        %1533 = vmatpush2.bf16.xpose.msra.mxu0 0
        %1534 = vmatprep.mubr.bf16.mxu0 0
        %1535 = vmatmul.mubr.bf16.gmra.mxu0 %v1497
        %v1536 = vpop.f32.mrf.mxu0
        %v1537 = vadd.f32 0.0, %v1536
        %v1538 = vpop.f32.mrf.mxu0
        %v1539 = vpop.f32.mrf.mxu0
        %v1540 = vpop.f32.mrf.mxu0
        %1541 = vdwg.mxu0
        %v1543 = vsel %vm1357, %v1353, 0
        %v1546 = vsel %vm1357, %v1125, 0
        %1548 = vmatprep.subr.bf16.mxu0 0
        %1549 = vmatpush1.bf16.xpose.msra.mxu0 0
        %1550 = vmatprep.subr.bf16.mxu0 0
        %1551 = vmatpush1.bf16.xpose.msra.mxu0 0
        %1552 = vmatprep.subr.bf16.mxu0 0
        %1553 = vmatpush1.bf16.xpose.msra.mxu0 0
        %1554 = vmatprep.subr.bf16.mxu0 0
        %1555 = vmatpush1.bf16.xpose.msra.mxu0 0
        %1556 = vmatprep.subr.bf16.mxu0 0
        %1557 = vmatpush1.bf16.xpose.msra.mxu0 0
        %1558 = vmatprep.subr.bf16.mxu0 0
        %1559 = vmatpush1.bf16.xpose.msra.mxu0 0
        %1560 = vmatprep.subr.bf16.mxu0 0
        %1561 = vmatpush1.bf16.xpose.msra.mxu0 0
        %1562 = vmatprep.subr.bf16.mxu0 0
        %1563 = vmatpush1.bf16.xpose.msra.mxu0 %v1546
        %1564 = vmatprep.subr.bf16.mxu0 0
        %1565 = vmatpush2.bf16.xpose.msra.mxu0 0
        %1566 = vmatprep.subr.bf16.mxu0 0
        %1567 = vmatpush2.bf16.xpose.msra.mxu0 0
        %1568 = vmatprep.subr.bf16.mxu0 0
        %1569 = vmatpush2.bf16.xpose.msra.mxu0 0
        %1570 = vmatprep.subr.bf16.mxu0 0
        %1571 = vmatpush2.bf16.xpose.msra.mxu0 0
        %1572 = vmatprep.subr.bf16.mxu0 0
        %1573 = vmatpush2.bf16.xpose.msra.mxu0 0
        %1574 = vmatprep.subr.bf16.mxu0 0
        %1575 = vmatpush2.bf16.xpose.msra.mxu0 0
        %1576 = vmatprep.subr.bf16.mxu0 0
        %1577 = vmatpush2.bf16.xpose.msra.mxu0 0
        %1578 = vmatprep.subr.bf16.mxu0 0
        %1579 = vmatpush2.bf16.xpose.msra.mxu0 0
        %1580 = vmatprep.mubr.bf16.mxu0 0
        %1581 = vmatmul.mubr.bf16.gmra.mxu0 %v1543
        %v1582 = vpop.f32.mrf.mxu0
        %v1583 = vadd.f32 0.0, %v1582
        %v1584 = vpop.f32.mrf.mxu0
        %v1585 = vpop.f32.mrf.mxu0
        %v1586 = vpop.f32.mrf.mxu0
        %1587 = vdwg.mxu0
        %v1589 = vsel %vm1357, %v1354, 0
        %v1592 = vsel %vm1357, %v1128, 0
        %1594 = vmatprep.subr.bf16.mxu0 0
        %1595 = vmatpush1.bf16.xpose.msra.mxu0 0
        %1596 = vmatprep.subr.bf16.mxu0 0
        %1597 = vmatpush1.bf16.xpose.msra.mxu0 0
        %1598 = vmatprep.subr.bf16.mxu0 0
        %1599 = vmatpush1.bf16.xpose.msra.mxu0 0
        %1600 = vmatprep.subr.bf16.mxu0 0
        %1601 = vmatpush1.bf16.xpose.msra.mxu0 0
        %1602 = vmatprep.subr.bf16.mxu0 0
        %1603 = vmatpush1.bf16.xpose.msra.mxu0 0
        %1604 = vmatprep.subr.bf16.mxu0 0
        %1605 = vmatpush1.bf16.xpose.msra.mxu0 0
        %1606 = vmatprep.subr.bf16.mxu0 0
        %1607 = vmatpush1.bf16.xpose.msra.mxu0 0
        %1608 = vmatprep.subr.bf16.mxu0 0
        %1609 = vmatpush1.bf16.xpose.msra.mxu0 %v1592
        %1610 = vmatprep.subr.bf16.mxu0 0
        %1611 = vmatpush2.bf16.xpose.msra.mxu0 0
        %1612 = vmatprep.subr.bf16.mxu0 0
        %1613 = vmatpush2.bf16.xpose.msra.mxu0 0
        %1614 = vmatprep.subr.bf16.mxu0 0
        %1615 = vmatpush2.bf16.xpose.msra.mxu0 0
        %1616 = vmatprep.subr.bf16.mxu0 0
        %1617 = vmatpush2.bf16.xpose.msra.mxu0 0
        %1618 = vmatprep.subr.bf16.mxu0 0
        %1619 = vmatpush2.bf16.xpose.msra.mxu0 0
        %1620 = vmatprep.subr.bf16.mxu0 0
        %1621 = vmatpush2.bf16.xpose.msra.mxu0 0
        %1622 = vmatprep.subr.bf16.mxu0 0
        %1623 = vmatpush2.bf16.xpose.msra.mxu0 0
        %1624 = vmatprep.subr.bf16.mxu0 0
        %1625 = vmatpush2.bf16.xpose.msra.mxu0 0
        %1626 = vmatprep.mubr.bf16.mxu0 0
        %1627 = vmatmul.mubr.bf16.gmra.mxu0 %v1589
        %v1628 = vpop.f32.mrf.mxu0
        %v1629 = vadd.f32 0.0, %v1628
        %v1630 = vpop.f32.mrf.mxu0
        %v1631 = vpop.f32.mrf.mxu0
        %v1632 = vpop.f32.mrf.mxu0
        %1633 = vdwg.mxu0
        %v1635 = vsel %vm1357, %v1355, 0
        %v1638 = vsel %vm1357, %v1131, 0
        %1640 = vmatprep.subr.bf16.mxu0 0
        %1641 = vmatpush1.bf16.xpose.msra.mxu0 0
        %1642 = vmatprep.subr.bf16.mxu0 0
        %1643 = vmatpush1.bf16.xpose.msra.mxu0 0
        %1644 = vmatprep.subr.bf16.mxu0 0
        %1645 = vmatpush1.bf16.xpose.msra.mxu0 0
        %1646 = vmatprep.subr.bf16.mxu0 0
        %1647 = vmatpush1.bf16.xpose.msra.mxu0 0
        %1648 = vmatprep.subr.bf16.mxu0 0
        %1649 = vmatpush1.bf16.xpose.msra.mxu0 0
        %1650 = vmatprep.subr.bf16.mxu0 0
        %1651 = vmatpush1.bf16.xpose.msra.mxu0 0
        %1652 = vmatprep.subr.bf16.mxu0 0
        %1653 = vmatpush1.bf16.xpose.msra.mxu0 0
        %1654 = vmatprep.subr.bf16.mxu0 0
        %1655 = vmatpush1.bf16.xpose.msra.mxu0 %v1638
        %1656 = vmatprep.subr.bf16.mxu0 0
        %1657 = vmatpush2.bf16.xpose.msra.mxu0 0
        %1658 = vmatprep.subr.bf16.mxu0 0
        %1659 = vmatpush2.bf16.xpose.msra.mxu0 0
        %1660 = vmatprep.subr.bf16.mxu0 0
        %1661 = vmatpush2.bf16.xpose.msra.mxu0 0
        %1662 = vmatprep.subr.bf16.mxu0 0
        %1663 = vmatpush2.bf16.xpose.msra.mxu0 0
        %1664 = vmatprep.subr.bf16.mxu0 0
        %1665 = vmatpush2.bf16.xpose.msra.mxu0 0
        %1666 = vmatprep.subr.bf16.mxu0 0
        %1667 = vmatpush2.bf16.xpose.msra.mxu0 0
        %1668 = vmatprep.subr.bf16.mxu0 0
        %1669 = vmatpush2.bf16.xpose.msra.mxu0 0
        %1670 = vmatprep.subr.bf16.mxu0 0
        %1671 = vmatpush2.bf16.xpose.msra.mxu0 0
        %1672 = vmatprep.mubr.bf16.mxu0 0
        %1673 = vmatmul.mubr.bf16.gmra.mxu0 %v1635
        %v1674 = vpop.f32.mrf.mxu0
        %v1675 = vadd.f32 0.0, %v1674
        %v1676 = vpop.f32.mrf.mxu0
        %v1677 = vpop.f32.mrf.mxu0
        %v1678 = vpop.f32.mrf.mxu0
        %1679 = vdwg.mxu0
        %v1681 = vsel %vm1357, %v1356, 0
        %v1684 = vsel %vm1357, %v1134, 0
        %1686 = vmatprep.subr.bf16.mxu0 0
        %1687 = vmatpush1.bf16.xpose.msra.mxu0 0
        %1688 = vmatprep.subr.bf16.mxu0 0
        %1689 = vmatpush1.bf16.xpose.msra.mxu0 0
        %1690 = vmatprep.subr.bf16.mxu0 0
        %1691 = vmatpush1.bf16.xpose.msra.mxu0 0
        %1692 = vmatprep.subr.bf16.mxu0 0
        %1693 = vmatpush1.bf16.xpose.msra.mxu0 0
        %1694 = vmatprep.subr.bf16.mxu0 0
        %1695 = vmatpush1.bf16.xpose.msra.mxu0 0
        %1696 = vmatprep.subr.bf16.mxu0 0
        %1697 = vmatpush1.bf16.xpose.msra.mxu0 0
        %1698 = vmatprep.subr.bf16.mxu0 0
        %1699 = vmatpush1.bf16.xpose.msra.mxu0 0
        %1700 = vmatprep.subr.bf16.mxu0 0
        %1701 = vmatpush1.bf16.xpose.msra.mxu0 %v1684
        %1702 = vmatprep.subr.bf16.mxu0 0
        %1703 = vmatpush2.bf16.xpose.msra.mxu0 0
        %1704 = vmatprep.subr.bf16.mxu0 0
        %1705 = vmatpush2.bf16.xpose.msra.mxu0 0
        %1706 = vmatprep.subr.bf16.mxu0 0
        %1707 = vmatpush2.bf16.xpose.msra.mxu0 0
        %1708 = vmatprep.subr.bf16.mxu0 0
        %1709 = vmatpush2.bf16.xpose.msra.mxu0 0
        %1710 = vmatprep.subr.bf16.mxu0 0
        %1711 = vmatpush2.bf16.xpose.msra.mxu0 0
        %1712 = vmatprep.subr.bf16.mxu0 0
        %1713 = vmatpush2.bf16.xpose.msra.mxu0 0
        %1714 = vmatprep.subr.bf16.mxu0 0
        %1715 = vmatpush2.bf16.xpose.msra.mxu0 0
        %1716 = vmatprep.subr.bf16.mxu0 0
        %1717 = vmatpush2.bf16.xpose.msra.mxu0 0
        %1718 = vmatprep.mubr.bf16.mxu0 0
        %1719 = vmatmul.mubr.bf16.gmra.mxu0 %v1681
        %v1720 = vpop.f32.mrf.mxu0
        %v1721 = vadd.f32 0.0, %v1720
        %v1722 = vpop.f32.mrf.mxu0
        %v1723 = vpop.f32.mrf.mxu0
        %v1724 = vpop.f32.mrf.mxu0
        %1725 = vdwg.mxu0
        %v1726 = vld [vmem:[#allocation3] sm:$0xff]
        %v1727 = vld [vmem:[#allocation3 + $0x8] sm:$0xff]
        %v1728 = vld [vmem:[#allocation3 + $0x10] sm:$0xff]
        %v1729 = vld [vmem:[#allocation3 + $0x18] sm:$0xff]
        %v1730 = vld [vmem:[#allocation3 + $0x20] sm:$0xff]
        %v1731 = vld [vmem:[#allocation3 + $0x28] sm:$0xff]
        %v1732 = vld [vmem:[#allocation3 + $0x30] sm:$0xff]
        %v1733 = vld [vmem:[#allocation3 + $0x38] sm:$0xff]
        %vm1734 = vcmask 64512
        %v1735 = vsel %vm1734, %v1399, -inf
        %1736 = vmax.xlane.f32.xlu0 %v1735
        %v1737 = vpop.xlane.xlu0 %1736
        %v1738 = vsel %vm1734, %v1445, -inf
        %1739 = vmax.xlane.f32.xlu0 %v1738
        %v1740 = vpop.xlane.xlu0 %1739
        %v1741 = vsel %vm1734, %v1491, -inf
        %1742 = vmax.xlane.f32.xlu0 %v1741
        %v1743 = vpop.xlane.xlu0 %1742
        %v1744 = vsel %vm1734, %v1537, -inf
        %1745 = vmax.xlane.f32.xlu0 %v1744
        %v1746 = vpop.xlane.xlu0 %1745
        %v1747 = vsel %vm1734, %v1583, -inf
        %1748 = vmax.xlane.f32.xlu0 %v1747
        %v1749 = vpop.xlane.xlu0 %1748
        %v1750 = vsel %vm1734, %v1629, -inf
        %1751 = vmax.xlane.f32.xlu0 %v1750
        %v1752 = vpop.xlane.xlu0 %1751
        %v1753 = vsel %vm1734, %v1675, -inf
        %1754 = vmax.xlane.f32.xlu0 %v1753
        %v1755 = vpop.xlane.xlu0 %1754
        %v1756 = vsel %vm1734, %v1721, -inf
        %1757 = vmax.xlane.f32.xlu0 %v1756
        %v1758 = vpop.xlane.xlu0 %1757
        %v1759 = vmax.f32 %v1726, %v1737
        %v1760 = vmax.f32 %v1727, %v1740
        %v1761 = vmax.f32 %v1728, %v1743
        %v1762 = vmax.f32 %v1729, %v1746
        %v1763 = vmax.f32 %v1730, %v1749
        %v1764 = vmax.f32 %v1731, %v1752
        %v1765 = vmax.f32 %v1732, %v1755
        %v1766 = vmax.f32 %v1733, %v1758
        %v1767 = vsub.f32 %v1726, %v1759
        %v1768 = vsub.f32 %v1727, %v1760
        %v1769 = vsub.f32 %v1728, %v1761
        %v1770 = vsub.f32 %v1729, %v1762
        %v1771 = vsub.f32 %v1730, %v1763
        %v1772 = vsub.f32 %v1731, %v1764
        %v1773 = vsub.f32 %v1732, %v1765
        %v1774 = vsub.f32 %v1733, %v1766
        %v1775 = vmul.f32 %v1767, 1.442695
        %v1776 = vpow.pop %v1775
        %v1777 = vmul.f32 %v1768, 1.442695
        %v1778 = vpow.pop %v1777
        %v1779 = vmul.f32 %v1769, 1.442695
        %v1780 = vpow.pop %v1779
        %v1781 = vmul.f32 %v1770, 1.442695
        %v1782 = vpow.pop %v1781
        %v1783 = vmul.f32 %v1771, 1.442695
        %v1784 = vpow.pop %v1783
        %v1785 = vmul.f32 %v1772, 1.442695
        %v1786 = vpow.pop %v1785
        %v1787 = vmul.f32 %v1773, 1.442695
        %v1788 = vpow.pop %v1787
        %v1789 = vmul.f32 %v1774, 1.442695
        %v1790 = vpow.pop %v1789
        %1792 = vset.pattern.permute.xlu0 0
        %1793 = vperm.xlu0 %1792, %v1759
        %v1794 = vpop.permute.xlu0 %1793
        %1797 = vset.pattern.permute.xlu0 0
        %1798 = vperm.xlu0 %1797, %v1760
        %v1799 = vpop.permute.xlu0 %1798
        %1802 = vset.pattern.permute.xlu0 0
        %1803 = vperm.xlu0 %1802, %v1761
        %v1804 = vpop.permute.xlu0 %1803
        %1807 = vset.pattern.permute.xlu0 0
        %1808 = vperm.xlu0 %1807, %v1762
        %v1809 = vpop.permute.xlu0 %1808
        %1812 = vset.pattern.permute.xlu0 0
        %1813 = vperm.xlu0 %1812, %v1763
        %v1814 = vpop.permute.xlu0 %1813
        %1817 = vset.pattern.permute.xlu0 0
        %1818 = vperm.xlu0 %1817, %v1764
        %v1819 = vpop.permute.xlu0 %1818
        %1822 = vset.pattern.permute.xlu0 0
        %1823 = vperm.xlu0 %1822, %v1765
        %v1824 = vpop.permute.xlu0 %1823
        %1827 = vset.pattern.permute.xlu0 0
        %1828 = vperm.xlu0 %1827, %v1766
        %v1829 = vpop.permute.xlu0 %1828
        %v1831 = vsub.f32 %v1399, %v1794
        %v1832 = vsub.f32 %v1445, %v1799
        %v1833 = vsub.f32 %v1491, %v1804
        %v1834 = vsub.f32 %v1537, %v1809
        %v1835 = vsub.f32 %v1583, %v1814
        %v1836 = vsub.f32 %v1629, %v1819
        %v1837 = vsub.f32 %v1675, %v1824
        %v1838 = vsub.f32 %v1721, %v1829
        %v1839 = vmul.f32 %v1831, 1.442695
        %v1840 = vpow.pop %v1839
        %v1841 = vmul.f32 %v1832, 1.442695
        %v1842 = vpow.pop %v1841
        %v1843 = vmul.f32 %v1833, 1.442695
        %v1844 = vpow.pop %v1843
        %v1845 = vmul.f32 %v1834, 1.442695
        %v1846 = vpow.pop %v1845
        %v1847 = vmul.f32 %v1835, 1.442695
        %v1848 = vpow.pop %v1847
        %v1849 = vmul.f32 %v1836, 1.442695
        %v1850 = vpow.pop %v1849
        %v1851 = vmul.f32 %v1837, 1.442695
        %v1852 = vpow.pop %v1851
        %v1853 = vmul.f32 %v1838, 1.442695
        %v1854 = vpow.pop %v1853
        %v1855 = vld [vmem:[#allocation4] sm:$0xff]
        %v1856 = vld [vmem:[#allocation4 + $0x8] sm:$0xff]
        %v1857 = vld [vmem:[#allocation4 + $0x10] sm:$0xff]
        %v1858 = vld [vmem:[#allocation4 + $0x18] sm:$0xff]
        %v1859 = vld [vmem:[#allocation4 + $0x20] sm:$0xff]
        %v1860 = vld [vmem:[#allocation4 + $0x28] sm:$0xff]
        %v1861 = vld [vmem:[#allocation4 + $0x30] sm:$0xff]
        %v1862 = vld [vmem:[#allocation4 + $0x38] sm:$0xff]
        %v1863 = vmul.f32 %v1776, %v1855
        %v1864 = vmul.f32 %v1778, %v1856
        %v1865 = vmul.f32 %v1780, %v1857
        %v1866 = vmul.f32 %v1782, %v1858
        %v1867 = vmul.f32 %v1784, %v1859
        %v1868 = vmul.f32 %v1786, %v1860
        %v1869 = vmul.f32 %v1788, %v1861
        %v1870 = vmul.f32 %v1790, %v1862
        %v1871 = vsel %vm1734, %v1840, 0.0
        %1872 = vadd.xlane.f32.xlu0 %v1871
        %v1873 = vpop.xlane.xlu0 %1872
        %v1874 = vsel %vm1734, %v1842, 0.0
        %1875 = vadd.xlane.f32.xlu0 %v1874
        %v1876 = vpop.xlane.xlu0 %1875
        %v1877 = vsel %vm1734, %v1844, 0.0
        %1878 = vadd.xlane.f32.xlu0 %v1877
        %v1879 = vpop.xlane.xlu0 %1878
        %v1880 = vsel %vm1734, %v1846, 0.0
        %1881 = vadd.xlane.f32.xlu0 %v1880
        %v1882 = vpop.xlane.xlu0 %1881
        %v1883 = vsel %vm1734, %v1848, 0.0
        %1884 = vadd.xlane.f32.xlu0 %v1883
        %v1885 = vpop.xlane.xlu0 %1884
        %v1886 = vsel %vm1734, %v1850, 0.0
        %1887 = vadd.xlane.f32.xlu0 %v1886
        %v1888 = vpop.xlane.xlu0 %1887
        %v1889 = vsel %vm1734, %v1852, 0.0
        %1890 = vadd.xlane.f32.xlu0 %v1889
        %v1891 = vpop.xlane.xlu0 %1890
        %v1892 = vsel %vm1734, %v1854, 0.0
        %1893 = vadd.xlane.f32.xlu0 %v1892
        %v1894 = vpop.xlane.xlu0 %1893
        %v1895 = vadd.f32 %v1863, %v1873
        %v1896 = vadd.f32 %v1864, %v1876
        %v1897 = vadd.f32 %v1865, %v1879
        %v1898 = vadd.f32 %v1866, %v1882
        %v1899 = vadd.f32 %v1867, %v1885
        %v1900 = vadd.f32 %v1868, %v1888
        %v1901 = vadd.f32 %v1869, %v1891
        %v1902 = vadd.f32 %v1870, %v1894
        %vm1903 = vcmask 7168
        %1904 = vst.msk [vmem:[#allocation4] sm:$0xff] %vm1903, %v1895
        %1905 = vst.msk [vmem:[#allocation4 + $0x8] sm:$0xff] %vm1903, %v1896
        %1906 = vst.msk [vmem:[#allocation4 + $0x10] sm:$0xff] %vm1903, %v1897
        %1907 = vst.msk [vmem:[#allocation4 + $0x18] sm:$0xff] %vm1903, %v1898
        %1908 = vst.msk [vmem:[#allocation4 + $0x20] sm:$0xff] %vm1903, %v1899
        %1909 = vst.msk [vmem:[#allocation4 + $0x28] sm:$0xff] %vm1903, %v1900
        %1910 = vst.msk [vmem:[#allocation4 + $0x30] sm:$0xff] %vm1903, %v1901
        %1911 = vst.msk [vmem:[#allocation4 + $0x38] sm:$0xff] %vm1903, %v1902
        %v1912 = vld [vmem:[#allocation5] sm:$0xff]
        %v1913 = vld [vmem:[#allocation5 + $0x8] sm:$0xff]
        %v1914 = vld [vmem:[#allocation5 + $0x10] sm:$0xff]
        %v1915 = vld [vmem:[#allocation5 + $0x18] sm:$0xff]
        %v1916 = vld [vmem:[#allocation5 + $0x20] sm:$0xff]
        %v1917 = vld [vmem:[#allocation5 + $0x28] sm:$0xff]
        %v1918 = vld [vmem:[#allocation5 + $0x30] sm:$0xff]
        %v1919 = vld [vmem:[#allocation5 + $0x38] sm:$0xff]
        %1921 = vset.pattern.permute.xlu0 0
        %1922 = vperm.xlu0 %1921, %v1776
        %v1923 = vpop.permute.xlu0 %1922
        %1926 = vset.pattern.permute.xlu0 0
        %1927 = vperm.xlu0 %1926, %v1778
        %v1928 = vpop.permute.xlu0 %1927
        %1931 = vset.pattern.permute.xlu0 0
        %1932 = vperm.xlu0 %1931, %v1780
        %v1933 = vpop.permute.xlu0 %1932
        %1936 = vset.pattern.permute.xlu0 0
        %1937 = vperm.xlu0 %1936, %v1782
        %v1938 = vpop.permute.xlu0 %1937
        %1941 = vset.pattern.permute.xlu0 0
        %1942 = vperm.xlu0 %1941, %v1784
        %v1943 = vpop.permute.xlu0 %1942
        %1946 = vset.pattern.permute.xlu0 0
        %1947 = vperm.xlu0 %1946, %v1786
        %v1948 = vpop.permute.xlu0 %1947
        %1951 = vset.pattern.permute.xlu0 0
        %1952 = vperm.xlu0 %1951, %v1788
        %v1953 = vpop.permute.xlu0 %1952
        %1956 = vset.pattern.permute.xlu0 0
        %1957 = vperm.xlu0 %1956, %v1790
        %v1958 = vpop.permute.xlu0 %1957
        %v1960 = vmul.f32 %v1923, %v1912
        %v1961 = vmul.f32 %v1928, %v1913
        %v1962 = vmul.f32 %v1933, %v1914
        %v1963 = vmul.f32 %v1938, %v1915
        %v1964 = vmul.f32 %v1943, %v1916
        %v1965 = vmul.f32 %v1948, %v1917
        %v1966 = vmul.f32 %v1953, %v1918
        %v1967 = vmul.f32 %v1958, %v1919
        %v1968 = vpack.c.bf16 %v1840, %v1840
        %v1969 = vpack.c.bf16 %v1842, %v1842
        %v1970 = vpack.c.bf16 %v1844, %v1844
        %v1971 = vpack.c.bf16 %v1846, %v1846
        %v1972 = vpack.c.bf16 %v1848, %v1848
        %v1973 = vpack.c.bf16 %v1850, %v1850
        %v1974 = vpack.c.bf16 %v1852, %v1852
        %v1975 = vpack.c.bf16 %v1854, %v1854
        %v1977 = vsel %vm1734, %v1968, 0
        %vm1979 = vcmask 1043456
        %v1981 = vsel %vm1979, %v1327, 0
        %1983 = vmatprep.subr.bf16.mxu0 0
        %1984 = vmatpush1.bf16.msra.mxu0 0
        %1985 = vmatprep.subr.bf16.mxu0 0
        %1986 = vmatpush1.bf16.msra.mxu0 0
        %1987 = vmatprep.subr.bf16.mxu0 0
        %1988 = vmatpush1.bf16.msra.mxu0 0
        %1989 = vmatprep.subr.bf16.mxu0 0
        %1990 = vmatpush1.bf16.msra.mxu0 0
        %1991 = vmatprep.subr.bf16.mxu0 0
        %1992 = vmatpush1.bf16.msra.mxu0 0
        %1993 = vmatprep.subr.bf16.mxu0 0
        %1994 = vmatpush1.bf16.msra.mxu0 0
        %1995 = vmatprep.subr.bf16.mxu0 0
        %1996 = vmatpush1.bf16.msra.mxu0 0
        %1997 = vmatprep.subr.bf16.mxu0 0
        %1998 = vmatpush1.bf16.msra.mxu0 %v1981
        %1999 = vmatprep.subr.bf16.mxu0 0
        %2000 = vmatpush2.bf16.msra.mxu0 0
        %2001 = vmatprep.subr.bf16.mxu0 0
        %2002 = vmatpush2.bf16.msra.mxu0 0
        %2003 = vmatprep.subr.bf16.mxu0 0
        %2004 = vmatpush2.bf16.msra.mxu0 0
        %2005 = vmatprep.subr.bf16.mxu0 0
        %2006 = vmatpush2.bf16.msra.mxu0 0
        %2007 = vmatprep.subr.bf16.mxu0 0
        %2008 = vmatpush2.bf16.msra.mxu0 0
        %2009 = vmatprep.subr.bf16.mxu0 0
        %2010 = vmatpush2.bf16.msra.mxu0 0
        %2011 = vmatprep.subr.bf16.mxu0 0
        %2012 = vmatpush2.bf16.msra.mxu0 0
        %2013 = vmatprep.subr.bf16.mxu0 0
        %2014 = vmatpush2.bf16.msra.mxu0 0
        %2015 = vmatprep.mubr.bf16.mxu0 0
        %2016 = vmatmul.mubr.bf16.gmra.mxu0 %v1977
        %v2017 = vpop.f32.mrf.mxu0
        %v2018 = vadd.f32 0.0, %v2017
        %v2019 = vpop.f32.mrf.mxu0
        %v2020 = vpop.f32.mrf.mxu0
        %v2021 = vpop.f32.mrf.mxu0
        %2022 = vdwg.mxu0
        %v2024 = vsel %vm1734, %v1969, 0
        %v2027 = vsel %vm1979, %v1330, 0
        %2029 = vmatprep.subr.bf16.mxu0 0
        %2030 = vmatpush1.bf16.msra.mxu0 0
        %2031 = vmatprep.subr.bf16.mxu0 0
        %2032 = vmatpush1.bf16.msra.mxu0 0
        %2033 = vmatprep.subr.bf16.mxu0 0
        %2034 = vmatpush1.bf16.msra.mxu0 0
        %2035 = vmatprep.subr.bf16.mxu0 0
        %2036 = vmatpush1.bf16.msra.mxu0 0
        %2037 = vmatprep.subr.bf16.mxu0 0
        %2038 = vmatpush1.bf16.msra.mxu0 0
        %2039 = vmatprep.subr.bf16.mxu0 0
        %2040 = vmatpush1.bf16.msra.mxu0 0
        %2041 = vmatprep.subr.bf16.mxu0 0
        %2042 = vmatpush1.bf16.msra.mxu0 0
        %2043 = vmatprep.subr.bf16.mxu0 0
        %2044 = vmatpush1.bf16.msra.mxu0 %v2027
        %2045 = vmatprep.subr.bf16.mxu0 0
        %2046 = vmatpush2.bf16.msra.mxu0 0
        %2047 = vmatprep.subr.bf16.mxu0 0
        %2048 = vmatpush2.bf16.msra.mxu0 0
        %2049 = vmatprep.subr.bf16.mxu0 0
        %2050 = vmatpush2.bf16.msra.mxu0 0
        %2051 = vmatprep.subr.bf16.mxu0 0
        %2052 = vmatpush2.bf16.msra.mxu0 0
        %2053 = vmatprep.subr.bf16.mxu0 0
        %2054 = vmatpush2.bf16.msra.mxu0 0
        %2055 = vmatprep.subr.bf16.mxu0 0
        %2056 = vmatpush2.bf16.msra.mxu0 0
        %2057 = vmatprep.subr.bf16.mxu0 0
        %2058 = vmatpush2.bf16.msra.mxu0 0
        %2059 = vmatprep.subr.bf16.mxu0 0
        %2060 = vmatpush2.bf16.msra.mxu0 0
        %2061 = vmatprep.mubr.bf16.mxu0 0
        %2062 = vmatmul.mubr.bf16.gmra.mxu0 %v2024
        %v2063 = vpop.f32.mrf.mxu0
        %v2064 = vadd.f32 0.0, %v2063
        %v2065 = vpop.f32.mrf.mxu0
        %v2066 = vpop.f32.mrf.mxu0
        %v2067 = vpop.f32.mrf.mxu0
        %2068 = vdwg.mxu0
        %v2070 = vsel %vm1734, %v1970, 0
        %v2073 = vsel %vm1979, %v1333, 0
        %2075 = vmatprep.subr.bf16.mxu0 0
        %2076 = vmatpush1.bf16.msra.mxu0 0
        %2077 = vmatprep.subr.bf16.mxu0 0
        %2078 = vmatpush1.bf16.msra.mxu0 0
        %2079 = vmatprep.subr.bf16.mxu0 0
        %2080 = vmatpush1.bf16.msra.mxu0 0
        %2081 = vmatprep.subr.bf16.mxu0 0
        %2082 = vmatpush1.bf16.msra.mxu0 0
        %2083 = vmatprep.subr.bf16.mxu0 0
        %2084 = vmatpush1.bf16.msra.mxu0 0
        %2085 = vmatprep.subr.bf16.mxu0 0
        %2086 = vmatpush1.bf16.msra.mxu0 0
        %2087 = vmatprep.subr.bf16.mxu0 0
        %2088 = vmatpush1.bf16.msra.mxu0 0
        %2089 = vmatprep.subr.bf16.mxu0 0
        %2090 = vmatpush1.bf16.msra.mxu0 %v2073
        %2091 = vmatprep.subr.bf16.mxu0 0
        %2092 = vmatpush2.bf16.msra.mxu0 0
        %2093 = vmatprep.subr.bf16.mxu0 0
        %2094 = vmatpush2.bf16.msra.mxu0 0
        %2095 = vmatprep.subr.bf16.mxu0 0
        %2096 = vmatpush2.bf16.msra.mxu0 0
        %2097 = vmatprep.subr.bf16.mxu0 0
        %2098 = vmatpush2.bf16.msra.mxu0 0
        %2099 = vmatprep.subr.bf16.mxu0 0
        %2100 = vmatpush2.bf16.msra.mxu0 0
        %2101 = vmatprep.subr.bf16.mxu0 0
        %2102 = vmatpush2.bf16.msra.mxu0 0
        %2103 = vmatprep.subr.bf16.mxu0 0
        %2104 = vmatpush2.bf16.msra.mxu0 0
        %2105 = vmatprep.subr.bf16.mxu0 0
        %2106 = vmatpush2.bf16.msra.mxu0 0
        %2107 = vmatprep.mubr.bf16.mxu0 0
        %2108 = vmatmul.mubr.bf16.gmra.mxu0 %v2070
        %v2109 = vpop.f32.mrf.mxu0
        %v2110 = vadd.f32 0.0, %v2109
        %v2111 = vpop.f32.mrf.mxu0
        %v2112 = vpop.f32.mrf.mxu0
        %v2113 = vpop.f32.mrf.mxu0
        %2114 = vdwg.mxu0
        %v2116 = vsel %vm1734, %v1971, 0
        %v2119 = vsel %vm1979, %v1336, 0
        %2121 = vmatprep.subr.bf16.mxu0 0
        %2122 = vmatpush1.bf16.msra.mxu0 0
        %2123 = vmatprep.subr.bf16.mxu0 0
        %2124 = vmatpush1.bf16.msra.mxu0 0
        %2125 = vmatprep.subr.bf16.mxu0 0
        %2126 = vmatpush1.bf16.msra.mxu0 0
        %2127 = vmatprep.subr.bf16.mxu0 0
        %2128 = vmatpush1.bf16.msra.mxu0 0
        %2129 = vmatprep.subr.bf16.mxu0 0
        %2130 = vmatpush1.bf16.msra.mxu0 0
        %2131 = vmatprep.subr.bf16.mxu0 0
        %2132 = vmatpush1.bf16.msra.mxu0 0
        %2133 = vmatprep.subr.bf16.mxu0 0
        %2134 = vmatpush1.bf16.msra.mxu0 0
        %2135 = vmatprep.subr.bf16.mxu0 0
        %2136 = vmatpush1.bf16.msra.mxu0 %v2119
        %2137 = vmatprep.subr.bf16.mxu0 0
        %2138 = vmatpush2.bf16.msra.mxu0 0
        %2139 = vmatprep.subr.bf16.mxu0 0
        %2140 = vmatpush2.bf16.msra.mxu0 0
        %2141 = vmatprep.subr.bf16.mxu0 0
        %2142 = vmatpush2.bf16.msra.mxu0 0
        %2143 = vmatprep.subr.bf16.mxu0 0
        %2144 = vmatpush2.bf16.msra.mxu0 0
        %2145 = vmatprep.subr.bf16.mxu0 0
        %2146 = vmatpush2.bf16.msra.mxu0 0
        %2147 = vmatprep.subr.bf16.mxu0 0
        %2148 = vmatpush2.bf16.msra.mxu0 0
        %2149 = vmatprep.subr.bf16.mxu0 0
        %2150 = vmatpush2.bf16.msra.mxu0 0
        %2151 = vmatprep.subr.bf16.mxu0 0
        %2152 = vmatpush2.bf16.msra.mxu0 0
        %2153 = vmatprep.mubr.bf16.mxu0 0
        %2154 = vmatmul.mubr.bf16.gmra.mxu0 %v2116
        %v2155 = vpop.f32.mrf.mxu0
        %v2156 = vadd.f32 0.0, %v2155
        %v2157 = vpop.f32.mrf.mxu0
        %v2158 = vpop.f32.mrf.mxu0
        %v2159 = vpop.f32.mrf.mxu0
        %2160 = vdwg.mxu0
        %v2162 = vsel %vm1734, %v1972, 0
        %v2165 = vsel %vm1979, %v1339, 0
        %2167 = vmatprep.subr.bf16.mxu0 0
        %2168 = vmatpush1.bf16.msra.mxu0 0
        %2169 = vmatprep.subr.bf16.mxu0 0
        %2170 = vmatpush1.bf16.msra.mxu0 0
        %2171 = vmatprep.subr.bf16.mxu0 0
        %2172 = vmatpush1.bf16.msra.mxu0 0
        %2173 = vmatprep.subr.bf16.mxu0 0
        %2174 = vmatpush1.bf16.msra.mxu0 0
        %2175 = vmatprep.subr.bf16.mxu0 0
        %2176 = vmatpush1.bf16.msra.mxu0 0
        %2177 = vmatprep.subr.bf16.mxu0 0
        %2178 = vmatpush1.bf16.msra.mxu0 0
        %2179 = vmatprep.subr.bf16.mxu0 0
        %2180 = vmatpush1.bf16.msra.mxu0 0
        %2181 = vmatprep.subr.bf16.mxu0 0
        %2182 = vmatpush1.bf16.msra.mxu0 %v2165
        %2183 = vmatprep.subr.bf16.mxu0 0
        %2184 = vmatpush2.bf16.msra.mxu0 0
        %2185 = vmatprep.subr.bf16.mxu0 0
        %2186 = vmatpush2.bf16.msra.mxu0 0
        %2187 = vmatprep.subr.bf16.mxu0 0
        %2188 = vmatpush2.bf16.msra.mxu0 0
        %2189 = vmatprep.subr.bf16.mxu0 0
        %2190 = vmatpush2.bf16.msra.mxu0 0
        %2191 = vmatprep.subr.bf16.mxu0 0
        %2192 = vmatpush2.bf16.msra.mxu0 0
        %2193 = vmatprep.subr.bf16.mxu0 0
        %2194 = vmatpush2.bf16.msra.mxu0 0
        %2195 = vmatprep.subr.bf16.mxu0 0
        %2196 = vmatpush2.bf16.msra.mxu0 0
        %2197 = vmatprep.subr.bf16.mxu0 0
        %2198 = vmatpush2.bf16.msra.mxu0 0
        %2199 = vmatprep.mubr.bf16.mxu0 0
        %2200 = vmatmul.mubr.bf16.gmra.mxu0 %v2162
        %v2201 = vpop.f32.mrf.mxu0
        %v2202 = vadd.f32 0.0, %v2201
        %v2203 = vpop.f32.mrf.mxu0
        %v2204 = vpop.f32.mrf.mxu0
        %v2205 = vpop.f32.mrf.mxu0
        %2206 = vdwg.mxu0
        %v2208 = vsel %vm1734, %v1973, 0
        %v2211 = vsel %vm1979, %v1342, 0
        %2213 = vmatprep.subr.bf16.mxu0 0
        %2214 = vmatpush1.bf16.msra.mxu0 0
        %2215 = vmatprep.subr.bf16.mxu0 0
        %2216 = vmatpush1.bf16.msra.mxu0 0
        %2217 = vmatprep.subr.bf16.mxu0 0
        %2218 = vmatpush1.bf16.msra.mxu0 0
        %2219 = vmatprep.subr.bf16.mxu0 0
        %2220 = vmatpush1.bf16.msra.mxu0 0
        %2221 = vmatprep.subr.bf16.mxu0 0
        %2222 = vmatpush1.bf16.msra.mxu0 0
        %2223 = vmatprep.subr.bf16.mxu0 0
        %2224 = vmatpush1.bf16.msra.mxu0 0
        %2225 = vmatprep.subr.bf16.mxu0 0
        %2226 = vmatpush1.bf16.msra.mxu0 0
        %2227 = vmatprep.subr.bf16.mxu0 0
        %2228 = vmatpush1.bf16.msra.mxu0 %v2211
        %2229 = vmatprep.subr.bf16.mxu0 0
        %2230 = vmatpush2.bf16.msra.mxu0 0
        %2231 = vmatprep.subr.bf16.mxu0 0
        %2232 = vmatpush2.bf16.msra.mxu0 0
        %2233 = vmatprep.subr.bf16.mxu0 0
        %2234 = vmatpush2.bf16.msra.mxu0 0
        %2235 = vmatprep.subr.bf16.mxu0 0
        %2236 = vmatpush2.bf16.msra.mxu0 0
        %2237 = vmatprep.subr.bf16.mxu0 0
        %2238 = vmatpush2.bf16.msra.mxu0 0
        %2239 = vmatprep.subr.bf16.mxu0 0
        %2240 = vmatpush2.bf16.msra.mxu0 0
        %2241 = vmatprep.subr.bf16.mxu0 0
        %2242 = vmatpush2.bf16.msra.mxu0 0
        %2243 = vmatprep.subr.bf16.mxu0 0
        %2244 = vmatpush2.bf16.msra.mxu0 0
        %2245 = vmatprep.mubr.bf16.mxu0 0
        %2246 = vmatmul.mubr.bf16.gmra.mxu0 %v2208
        %v2247 = vpop.f32.mrf.mxu0
        %v2248 = vadd.f32 0.0, %v2247
        %v2249 = vpop.f32.mrf.mxu0
        %v2250 = vpop.f32.mrf.mxu0
        %v2251 = vpop.f32.mrf.mxu0
        %2252 = vdwg.mxu0
        %v2254 = vsel %vm1734, %v1974, 0
        %v2257 = vsel %vm1979, %v1345, 0
        %2259 = vmatprep.subr.bf16.mxu0 0
        %2260 = vmatpush1.bf16.msra.mxu0 0
        %2261 = vmatprep.subr.bf16.mxu0 0
        %2262 = vmatpush1.bf16.msra.mxu0 0
        %2263 = vmatprep.subr.bf16.mxu0 0
        %2264 = vmatpush1.bf16.msra.mxu0 0
        %2265 = vmatprep.subr.bf16.mxu0 0
        %2266 = vmatpush1.bf16.msra.mxu0 0
        %2267 = vmatprep.subr.bf16.mxu0 0
        %2268 = vmatpush1.bf16.msra.mxu0 0
        %2269 = vmatprep.subr.bf16.mxu0 0
        %2270 = vmatpush1.bf16.msra.mxu0 0
        %2271 = vmatprep.subr.bf16.mxu0 0
        %2272 = vmatpush1.bf16.msra.mxu0 0
        %2273 = vmatprep.subr.bf16.mxu0 0
        %2274 = vmatpush1.bf16.msra.mxu0 %v2257
        %2275 = vmatprep.subr.bf16.mxu0 0
        %2276 = vmatpush2.bf16.msra.mxu0 0
        %2277 = vmatprep.subr.bf16.mxu0 0
        %2278 = vmatpush2.bf16.msra.mxu0 0
        %2279 = vmatprep.subr.bf16.mxu0 0
        %2280 = vmatpush2.bf16.msra.mxu0 0
        %2281 = vmatprep.subr.bf16.mxu0 0
        %2282 = vmatpush2.bf16.msra.mxu0 0
        %2283 = vmatprep.subr.bf16.mxu0 0
        %2284 = vmatpush2.bf16.msra.mxu0 0
        %2285 = vmatprep.subr.bf16.mxu0 0
        %2286 = vmatpush2.bf16.msra.mxu0 0
        %2287 = vmatprep.subr.bf16.mxu0 0
        %2288 = vmatpush2.bf16.msra.mxu0 0
        %2289 = vmatprep.subr.bf16.mxu0 0
        %2290 = vmatpush2.bf16.msra.mxu0 0
        %2291 = vmatprep.mubr.bf16.mxu0 0
        %2292 = vmatmul.mubr.bf16.gmra.mxu0 %v2254
        %v2293 = vpop.f32.mrf.mxu0
        %v2294 = vadd.f32 0.0, %v2293
        %v2295 = vpop.f32.mrf.mxu0
        %v2296 = vpop.f32.mrf.mxu0
        %v2297 = vpop.f32.mrf.mxu0
        %2298 = vdwg.mxu0
        %v2300 = vsel %vm1734, %v1975, 0
        %v2303 = vsel %vm1979, %v1348, 0
        %2305 = vmatprep.subr.bf16.mxu0 0
        %2306 = vmatpush1.bf16.msra.mxu0 0
        %2307 = vmatprep.subr.bf16.mxu0 0
        %2308 = vmatpush1.bf16.msra.mxu0 0
        %2309 = vmatprep.subr.bf16.mxu0 0
        %2310 = vmatpush1.bf16.msra.mxu0 0
        %2311 = vmatprep.subr.bf16.mxu0 0
        %2312 = vmatpush1.bf16.msra.mxu0 0
        %2313 = vmatprep.subr.bf16.mxu0 0
        %2314 = vmatpush1.bf16.msra.mxu0 0
        %2315 = vmatprep.subr.bf16.mxu0 0
        %2316 = vmatpush1.bf16.msra.mxu0 0
        %2317 = vmatprep.subr.bf16.mxu0 0
        %2318 = vmatpush1.bf16.msra.mxu0 0
        %2319 = vmatprep.subr.bf16.mxu0 0
        %2320 = vmatpush1.bf16.msra.mxu0 %v2303
        %2321 = vmatprep.subr.bf16.mxu0 0
        %2322 = vmatpush2.bf16.msra.mxu0 0
        %2323 = vmatprep.subr.bf16.mxu0 0
        %2324 = vmatpush2.bf16.msra.mxu0 0
        %2325 = vmatprep.subr.bf16.mxu0 0
        %2326 = vmatpush2.bf16.msra.mxu0 0
        %2327 = vmatprep.subr.bf16.mxu0 0
        %2328 = vmatpush2.bf16.msra.mxu0 0
        %2329 = vmatprep.subr.bf16.mxu0 0
        %2330 = vmatpush2.bf16.msra.mxu0 0
        %2331 = vmatprep.subr.bf16.mxu0 0
        %2332 = vmatpush2.bf16.msra.mxu0 0
        %2333 = vmatprep.subr.bf16.mxu0 0
        %2334 = vmatpush2.bf16.msra.mxu0 0
        %2335 = vmatprep.subr.bf16.mxu0 0
        %2336 = vmatpush2.bf16.msra.mxu0 0
        %2337 = vmatprep.mubr.bf16.mxu0 0
        %2338 = vmatmul.mubr.bf16.gmra.mxu0 %v2300
        %v2339 = vpop.f32.mrf.mxu0
        %v2340 = vadd.f32 0.0, %v2339
        %v2341 = vpop.f32.mrf.mxu0
        %v2342 = vpop.f32.mrf.mxu0
        %v2343 = vpop.f32.mrf.mxu0
        %2344 = vdwg.mxu0
        %v2345 = vadd.f32 %v1960, %v2018
        %v2346 = vadd.f32 %v1961, %v2064
        %v2347 = vadd.f32 %v1962, %v2110
        %v2348 = vadd.f32 %v1963, %v2156
        %v2349 = vadd.f32 %v1964, %v2202
        %v2350 = vadd.f32 %v1965, %v2248
        %v2351 = vadd.f32 %v1966, %v2294
        %v2352 = vadd.f32 %v1967, %v2340
        %2353 = vst.msk [vmem:[#allocation5] sm:$0xff] %vm1357, %v2345
        %2354 = vst.msk [vmem:[#allocation5 + $0x8] sm:$0xff] %vm1357, %v2346
        %2355 = vst.msk [vmem:[#allocation5 + $0x10] sm:$0xff] %vm1357, %v2347
        %2356 = vst.msk [vmem:[#allocation5 + $0x18] sm:$0xff] %vm1357, %v2348
        %2357 = vst.msk [vmem:[#allocation5 + $0x20] sm:$0xff] %vm1357, %v2349
        %2358 = vst.msk [vmem:[#allocation5 + $0x28] sm:$0xff] %vm1357, %v2350
        %2359 = vst.msk [vmem:[#allocation5 + $0x30] sm:$0xff] %vm1357, %v2351
        %2360 = vst.msk [vmem:[#allocation5 + $0x38] sm:$0xff] %vm1357, %v2352
        %2361 = vst.msk [vmem:[#allocation3] sm:$0xff] %vm1903, %v1759
        %2362 = vst.msk [vmem:[#allocation3 + $0x8] sm:$0xff] %vm1903, %v1760
        %2363 = vst.msk [vmem:[#allocation3 + $0x10] sm:$0xff] %vm1903, %v1761
        %2364 = vst.msk [vmem:[#allocation3 + $0x18] sm:$0xff] %vm1903, %v1762
        %2365 = vst.msk [vmem:[#allocation3 + $0x20] sm:$0xff] %vm1903, %v1763
        %2366 = vst.msk [vmem:[#allocation3 + $0x28] sm:$0xff] %vm1903, %v1764
        %2367 = vst.msk [vmem:[#allocation3 + $0x30] sm:$0xff] %vm1903, %v1765
        %2368 = vst.msk [vmem:[#allocation3 + $0x38] sm:$0xff] %vm1903, %v1766
        // Predicated region
        $region85: #{tpu_custom_call.1} parent=51 // pred_check
          %p2369 = pneg %p471
        $region86: #{tpu_custom_call.1} parent=51 // pred_check_branch
          %2371 = sbr.rel (%p2369) target = $region88
        $region87: #{tpu_custom_call.1} parent=51 // pred_region
          %v2372 = vld [vmem:[#allocation5] sm:$0xff]
          %v2373 = vld [vmem:[#allocation5 + $0x8] sm:$0xff]
          %v2374 = vld [vmem:[#allocation5 + $0x10] sm:$0xff]
          %v2375 = vld [vmem:[#allocation5 + $0x18] sm:$0xff]
          %v2376 = vld [vmem:[#allocation5 + $0x20] sm:$0xff]
          %v2377 = vld [vmem:[#allocation5 + $0x28] sm:$0xff]
          %v2378 = vld [vmem:[#allocation5 + $0x30] sm:$0xff]
          %v2379 = vld [vmem:[#allocation5 + $0x38] sm:$0xff]
          %v2380 = vld [vmem:[#allocation4] sm:$0xff]
          %v2381 = vld [vmem:[#allocation4 + $0x8] sm:$0xff]
          %v2382 = vld [vmem:[#allocation4 + $0x10] sm:$0xff]
          %v2383 = vld [vmem:[#allocation4 + $0x18] sm:$0xff]
          %v2384 = vld [vmem:[#allocation4 + $0x20] sm:$0xff]
          %v2385 = vld [vmem:[#allocation4 + $0x28] sm:$0xff]
          %v2386 = vld [vmem:[#allocation4 + $0x30] sm:$0xff]
          %v2387 = vld [vmem:[#allocation4 + $0x38] sm:$0xff]
          %v2388 = vrcp.pop %v2380
          %v2389 = vrcp.pop %v2381
          %v2390 = vrcp.pop %v2382
          %v2391 = vrcp.pop %v2383
          %v2392 = vrcp.pop %v2384
          %v2393 = vrcp.pop %v2385
          %v2394 = vrcp.pop %v2386
          %v2395 = vrcp.pop %v2387
          %2397 = vset.pattern.permute.xlu0 0
          %2398 = vperm.xlu0 %2397, %v2388
          %v2399 = vpop.permute.xlu0 %2398
          %2402 = vset.pattern.permute.xlu0 0
          %2403 = vperm.xlu0 %2402, %v2389
          %v2404 = vpop.permute.xlu0 %2403
          %2407 = vset.pattern.permute.xlu0 0
          %2408 = vperm.xlu0 %2407, %v2390
          %v2409 = vpop.permute.xlu0 %2408
          %2412 = vset.pattern.permute.xlu0 0
          %2413 = vperm.xlu0 %2412, %v2391
          %v2414 = vpop.permute.xlu0 %2413
          %2417 = vset.pattern.permute.xlu0 0
          %2418 = vperm.xlu0 %2417, %v2392
          %v2419 = vpop.permute.xlu0 %2418
          %2422 = vset.pattern.permute.xlu0 0
          %2423 = vperm.xlu0 %2422, %v2393
          %v2424 = vpop.permute.xlu0 %2423
          %2427 = vset.pattern.permute.xlu0 0
          %2428 = vperm.xlu0 %2427, %v2394
          %v2429 = vpop.permute.xlu0 %2428
          %2432 = vset.pattern.permute.xlu0 0
          %2433 = vperm.xlu0 %2432, %v2395
          %v2434 = vpop.permute.xlu0 %2433
          %v2436 = vmul.f32 %v2372, %v2399
          %v2437 = vmul.f32 %v2373, %v2404
          %v2438 = vmul.f32 %v2374, %v2409
          %v2439 = vmul.f32 %v2375, %v2414
          %v2440 = vmul.f32 %v2376, %v2419
          %v2441 = vmul.f32 %v2377, %v2424
          %v2442 = vmul.f32 %v2378, %v2429
          %v2443 = vmul.f32 %v2379, %v2434
          %v2444 = vpack.c.bf16 %v2436, %v2436
          %v2445 = vpack.c.bf16 %v2437, %v2437
          %v2446 = vpack.c.bf16 %v2438, %v2438
          %v2447 = vpack.c.bf16 %v2439, %v2439
          %v2448 = vpack.c.bf16 %v2440, %v2440
          %v2449 = vpack.c.bf16 %v2441, %v2441
          %v2450 = vpack.c.bf16 %v2442, %v2442
          %v2451 = vpack.c.bf16 %v2443, %v2443
          %v2452 = vcombine.low %v2444, %v2448
          %v2454 = vunpack.c.l.s4 1983009808
          %v2455 = vunpack.c.0.s8 %v2454
          %v2456 = vlaneseq
          %v2457 = vshrl.u32 %v2456, 7
          %v2458 = vsub.s32 %v2455, %v2457
          %v2459 = vrot.slane %v2452, %v2458
          %v2460 = vcombine.low %v2446, %v2450
          %v2462 = vunpack.c.l.s4 1983009808
          %v2463 = vunpack.c.0.s8 %v2462
          %v2464 = vlaneseq
          %v2465 = vshrl.u32 %v2464, 7
          %v2466 = vsub.s32 %v2463, %v2465
          %v2467 = vrot.slane %v2460, %v2466
          %v2468 = vcombine.low %v2459, %v2467
          %v2469 = vcombine.high %v2459, %v2467
          %v2471 = vunpack.c.l.s4 1934713408
          %v2472 = vunpack.c.0.s8 %v2471
          %v2473 = vlaneseq
          %v2474 = vshrl.u32 %v2473, 7
          %v2475 = vsub.s32 %v2472, %v2474
          %v2476 = vrot.slane %v2468, %v2475
          %v2478 = vunpack.c.l.s4 1934713408
          %v2479 = vunpack.c.0.s8 %v2478
          %v2480 = vlaneseq
          %v2481 = vshrl.u32 %v2480, 7
          %v2482 = vsub.s32 %v2479, %v2481
          %v2483 = vrot.slane %v2469, %v2482
          %v2484 = vcombine.high %v2476, 0
          %v2485 = vcombine.high %v2483, 0
          %v2486 = vcombine.low %v2445, %v2449
          %v2488 = vunpack.c.l.s4 1983009808
          %v2489 = vunpack.c.0.s8 %v2488
          %v2490 = vlaneseq
          %v2491 = vshrl.u32 %v2490, 7
          %v2492 = vsub.s32 %v2489, %v2491
          %v2493 = vrot.slane %v2486, %v2492
          %v2494 = vcombine.low %v2447, %v2451
          %v2496 = vunpack.c.l.s4 1983009808
          %v2497 = vunpack.c.0.s8 %v2496
          %v2498 = vlaneseq
          %v2499 = vshrl.u32 %v2498, 7
          %v2500 = vsub.s32 %v2497, %v2499
          %v2501 = vrot.slane %v2494, %v2500
          %v2502 = vcombine.low %v2493, %v2501
          %v2503 = vcombine.high %v2493, %v2501
          %v2505 = vunpack.c.l.s4 1934713408
          %v2506 = vunpack.c.0.s8 %v2505
          %v2507 = vlaneseq
          %v2508 = vshrl.u32 %v2507, 7
          %v2509 = vsub.s32 %v2506, %v2508
          %v2510 = vrot.slane %v2502, %v2509
          %v2512 = vunpack.c.l.s4 1934713408
          %v2513 = vunpack.c.0.s8 %v2512
          %v2514 = vlaneseq
          %v2515 = vshrl.u32 %v2514, 7
          %v2516 = vsub.s32 %v2513, %v2515
          %v2517 = vrot.slane %v2503, %v2516
          %v2518 = vcombine.high %v2510, 0
          %v2519 = vcombine.high %v2517, 0
          %v2522 = vpack.i.b16 %v2510, %v2476
          %v2524 = vshrl.u32 %v2476, 16
          %v2525 = vshrl.u32 %v2510, 16
          %v2526 = vpack.i.b16 %v2525, %v2524
          %v2530 = vpack.i.b16 %v2518, %v2484
          %v2532 = vshrl.u32 %v2484, 16
          %v2533 = vshrl.u32 %v2518, 16
          %v2534 = vpack.i.b16 %v2533, %v2532
          %v2538 = vpack.i.b16 %v2517, %v2483
          %v2540 = vshrl.u32 %v2483, 16
          %v2541 = vshrl.u32 %v2517, 16
          %v2542 = vpack.i.b16 %v2541, %v2540
          %v2546 = vpack.i.b16 %v2519, %v2485
          %v2548 = vshrl.u32 %v2485, 16
          %v2549 = vshrl.u32 %v2519, 16
          %v2550 = vpack.i.b16 %v2549, %v2548
          %v2552 = vcombine.low %v2522, %v2538
          %v2554 = vunpack.c.l.s4 1983009808
          %v2555 = vunpack.c.0.s8 %v2554
          %v2556 = vlaneseq
          %v2557 = vshrl.u32 %v2556, 7
          %v2558 = vsub.s32 %v2555, %v2557
          %v2559 = vrot.slane %v2552, %v2558
          %v2560 = vcombine.low %v2530, %v2546
          %v2562 = vunpack.c.l.s4 1983009808
          %v2563 = vunpack.c.0.s8 %v2562
          %v2564 = vlaneseq
          %v2565 = vshrl.u32 %v2564, 7
          %v2566 = vsub.s32 %v2563, %v2565
          %v2567 = vrot.slane %v2560, %v2566
          %v2568 = vcombine.low %v2559, %v2567
          %v2569 = vcombine.high %v2559, %v2567
          %v2571 = vunpack.c.l.s4 1934713408
          %v2572 = vunpack.c.0.s8 %v2571
          %v2573 = vlaneseq
          %v2574 = vshrl.u32 %v2573, 7
          %v2575 = vsub.s32 %v2572, %v2574
          %v2576 = vrot.slane %v2568, %v2575
          %v2578 = vunpack.c.l.s4 1934713408
          %v2579 = vunpack.c.0.s8 %v2578
          %v2580 = vlaneseq
          %v2581 = vshrl.u32 %v2580, 7
          %v2582 = vsub.s32 %v2579, %v2581
          %v2583 = vrot.slane %v2569, %v2582
          %v2584 = vcombine.high %v2576, 0
          %v2585 = vcombine.high %v2583, 0
          %v2586 = vcombine.low %v2526, %v2542
          %v2588 = vunpack.c.l.s4 1983009808
          %v2589 = vunpack.c.0.s8 %v2588
          %v2590 = vlaneseq
          %v2591 = vshrl.u32 %v2590, 7
          %v2592 = vsub.s32 %v2589, %v2591
          %v2593 = vrot.slane %v2586, %v2592
          %v2594 = vcombine.low %v2534, %v2550
          %v2596 = vunpack.c.l.s4 1983009808
          %v2597 = vunpack.c.0.s8 %v2596
          %v2598 = vlaneseq
          %v2599 = vshrl.u32 %v2598, 7
          %v2600 = vsub.s32 %v2597, %v2599
          %v2601 = vrot.slane %v2594, %v2600
          %v2602 = vcombine.low %v2593, %v2601
          %v2603 = vcombine.high %v2593, %v2601
          %v2605 = vunpack.c.l.s4 1934713408
          %v2606 = vunpack.c.0.s8 %v2605
          %v2607 = vlaneseq
          %v2608 = vshrl.u32 %v2607, 7
          %v2609 = vsub.s32 %v2606, %v2608
          %v2610 = vrot.slane %v2602, %v2609
          %v2612 = vunpack.c.l.s4 1934713408
          %v2613 = vunpack.c.0.s8 %v2612
          %v2614 = vlaneseq
          %v2615 = vshrl.u32 %v2614, 7
          %v2616 = vsub.s32 %v2613, %v2615
          %v2617 = vrot.slane %v2603, %v2616
          %v2618 = vcombine.high %v2610, 0
          %v2619 = vcombine.high %v2617, 0
          %v2622 = vpack.i.b16 %v2610, %v2576
          %v2623 = vshrl.u32 %v2576, 16
          %v2624 = vshrl.u32 %v2610, 16
          %v2625 = vpack.i.b16 %v2624, %v2623
          %v2628 = vpack.i.b16 %v2618, %v2584
          %v2629 = vshrl.u32 %v2584, 16
          %v2630 = vshrl.u32 %v2618, 16
          %v2631 = vpack.i.b16 %v2630, %v2629
          %v2634 = vpack.i.b16 %v2617, %v2583
          %v2635 = vshrl.u32 %v2583, 16
          %v2636 = vshrl.u32 %v2617, 16
          %v2637 = vpack.i.b16 %v2636, %v2635
          %v2640 = vpack.i.b16 %v2619, %v2585
          %v2641 = vshrl.u32 %v2585, 16
          %v2642 = vshrl.u32 %v2619, 16
          %v2643 = vpack.i.b16 %v2642, %v2641
          %2644 = vrot.lane.b32.xlu0 %v2625, 4
          %v2645 = vpop.permute.xlu0 %2644
          %2646 = vrot.lane.b32.xlu0 %v2628, 8
          %v2647 = vpop.permute.xlu0 %2646
          %2648 = vrot.lane.b32.xlu0 %v2631, 12
          %v2649 = vpop.permute.xlu0 %2648
          %2650 = vrot.lane.b32.xlu0 %v2634, 16
          %v2651 = vpop.permute.xlu0 %2650
          %2652 = vrot.lane.b32.xlu0 %v2637, 20
          %v2653 = vpop.permute.xlu0 %2652
          %2654 = vrot.lane.b32.xlu0 %v2640, 24
          %v2655 = vpop.permute.xlu0 %2654
          %2656 = vrot.lane.b32.xlu0 %v2643, 28
          %v2657 = vpop.permute.xlu0 %2656
          %v2660 = vsel %vm1357, %v2622, %v2645
          %v2662 = vsel %vm1734, %v2660, %v2647
          %vm2663 = vcmask 97280
          %v2665 = vsel %vm2663, %v2662, %v2649
          %vm2666 = vcmask 130048
          %v2668 = vsel %vm2666, %v2665, %v2651
          %vm2669 = vcmask 162816
          %v2671 = vsel %vm2669, %v2668, %v2653
          %vm2672 = vcmask 195584
          %v2674 = vsel %vm2672, %v2671, %v2655
          %vm2675 = vcmask 228352
          %v2677 = vsel %vm2675, %v2674, %v2657
          %v2678 = vld [vmem:[#allocation17] sm:$0xf]
          %v2679 = vld [vmem:[#allocation17 + $0x4] sm:$0xf]
          %v2680 = vld [vmem:[#allocation17 + $0x8] sm:$0xf]
          %v2681 = vld [vmem:[#allocation17 + $0xc] sm:$0xf]
          %v2682 = vld [vmem:[%s7] sm:$0x1]
          %v2684 = vlaneseq
          %v2685 = vshrl.u32 %v2684, 7
          %v2686 = vsub.s32 0, %v2685
          %v2687 = vrot.slane %v2682, %v2686
          %v2693 = vunpack.c.l.b16 %v2678
          %v2694 = vunpack.c.l.b16 %v2679
          %v2695 = vunpack.c.l.b16 %v2680
          %v2696 = vunpack.c.l.b16 %v2681
          %v2697 = vpack.c.b16 %v2694, %v2693
          %v2698 = vpack.c.b16 %v2696, %v2695
          %v2701 = vsel %vm814, %v2677, 0
          %2703 = vmatprep.subr.bf16.mxu0 0
          %2704 = vmatpush1.bf16.msra.mxu0 0
          %2705 = vmatprep.subr.bf16.mxu0 0
          %2706 = vmatpush1.bf16.msra.mxu0 0
          %2707 = vmatprep.subr.bf16.mxu0 0
          %2708 = vmatpush1.bf16.msra.mxu0 0
          %2709 = vmatprep.subr.bf16.mxu0 0
          %2710 = vmatpush1.bf16.msra.mxu0 0
          %2711 = vmatprep.subr.bf16.mxu0 0
          %2712 = vmatpush1.bf16.msra.mxu0 0
          %2713 = vmatprep.subr.bf16.mxu0 0
          %2714 = vmatpush1.bf16.msra.mxu0 0
          %2715 = vmatprep.subr.bf16.mxu0 0
          %2716 = vmatpush1.bf16.msra.mxu0 %v2698
          %2717 = vmatprep.subr.bf16.mxu0 0
          %2718 = vmatpush1.bf16.msra.mxu0 %v2697
          %2719 = vmatprep.subr.bf16.mxu0 0
          %2720 = vmatpush2.bf16.msra.mxu0 0
          %2721 = vmatprep.subr.bf16.mxu0 0
          %2722 = vmatpush2.bf16.msra.mxu0 0
          %2723 = vmatprep.subr.bf16.mxu0 0
          %2724 = vmatpush2.bf16.msra.mxu0 0
          %2725 = vmatprep.subr.bf16.mxu0 0
          %2726 = vmatpush2.bf16.msra.mxu0 0
          %2727 = vmatprep.subr.bf16.mxu0 0
          %2728 = vmatpush2.bf16.msra.mxu0 0
          %2729 = vmatprep.subr.bf16.mxu0 0
          %2730 = vmatpush2.bf16.msra.mxu0 0
          %2731 = vmatprep.subr.bf16.mxu0 0
          %2732 = vmatpush2.bf16.msra.mxu0 0
          %2733 = vmatprep.subr.bf16.mxu0 0
          %2734 = vmatpush2.bf16.msra.mxu0 0
          %2735 = vmatprep.mubr.bf16.mxu0 0
          %2736 = vmatmul.mubr.bf16.gmra.mxu0 %v2701
          %v2737 = vpop.f32.mrf.mxu0
          %v2738 = vadd.f32 %v2687, %v2737
          %v2739 = vpop.f32.mrf.mxu0
          %v2740 = vpop.f32.mrf.mxu0
          %v2741 = vpop.f32.mrf.mxu0
          %2742 = vdwg.mxu0
          %2743 = vst.msk [vmem:[%s467] sm:$0xff] %vm814, %v2738
        $region88: #{tpu_custom_call.1} parent=51 // pred_fallthru
          _
        %s2744 = sand.u32 %s237, 1
        %s2745 = scalar_lea.sflag [#allocation8], %s2744
        %s2746 = sand.u32 %s237, 1
        %s2747 = smul.addr %s2746, 8
        %s2748 = scalar_lea.vmem [#allocation18], %s2747
        // Predicated region
        $region89: #{tpu_custom_call.1} parent=51 // pred_check
          %p2749 = pneg %p247
        $region90: #{tpu_custom_call.1} parent=51 // pred_check_branch
          %2751 = sbr.rel (%p2749) target = $region92
        $region91: #{tpu_custom_call.1} parent=51 // pred_region
          %s2753 = ssub.s32 128, 128
          %2754 = vsyncadd %s2745, %s2753
          %s2755 = smul.addr %s34, 128
          %s2756 = scalar_lea.hbm %s8, %s2755
          %s2758 = sshll.u32 %s2748, 4
          %s2759 = int_to_ptr.vmem [resolvable:$true] %s2758
          %2761 = dma.vmem_to_hbm [thread:$0]  %s2759, 128, %s2756, %s2745
        $region92: #{tpu_custom_call.1} parent=51 // pred_fallthru
          _
      $region52: #{tpu_custom_call.1} parent=5 // pred_fallthru
        _
      %p2762 = scmp.le.s32.totalorder 2, %s25
      // Predicated region
      $region93: #{tpu_custom_call.1} parent=5 // pred_check
        %p2763 = pneg %p2762
      $region94: #{tpu_custom_call.1} parent=5 // pred_check_branch
        %2765 = sbr.rel (%p2763) target = $region96
      $region95: #{tpu_custom_call.1} parent=5 // pred_region
        %s2766 = ssub.s32 %s25, 2
        // Predicated region
        $region97: #{tpu_custom_call.1} parent=95 // pred_check
          %p2767 = pneg %p253
        $region98: #{tpu_custom_call.1} parent=95 // pred_check_branch
          %2769 = sbr.rel (%p2767) target = $region100
        $region99: #{tpu_custom_call.1} parent=95 // pred_region
          %s2770 = sand.u32 %s238, 1
          %s2771 = scalar_lea.sflag [#allocation8], %s2770
          %s2772 = sand.u32 %s238, 1
          %s2773 = smul.addr %s2772, 8
          %s2774 = scalar_lea.vmem [#allocation18], %s2773
          %2775 = dma.done %s2771, 128
        $region100: #{tpu_custom_call.1} parent=95 // pred_fallthru
          _
      $region96: #{tpu_custom_call.1} parent=5 // pred_fallthru
        _
    $region6: #{tpu_custom_call.1} parent=1 // loop_footer
      %s29 = sadd.s32 1, %s25
    $region7: #{tpu_custom_call.1} parent=1 // loop_footer_branch
      %24 = sbr.rel target = $region3
    $region8: #{tpu_custom_call.1} parent=1 // loop_exit
      _
    %2776 = vsyncpa [#allocation7], 1
    %s2777 = scalar_lea.sflag [#allocation7], 1
    %2778 = vsyncpa %s2777, 1
    %2779 = vsyncpa [#allocation10], 1
    %s2780 = scalar_lea.sflag [#allocation10], 1
    %2781 = vsyncpa %s2780, 1
    %2782 = vsyncpa [#allocation13], 1
    %2783 = vsyncpa [#allocation16], 1
    %2784 = vsyncpa [#allocation8], 1
    %s2785 = scalar_lea.sflag [#allocation8], 1
    %2786 = vsyncpa %s2785, 1

// kernel: tpu_custom_call.1
$region0: #{tpu_custom_call.1}
  #allocation0 [shape = 'u32[]', space=smem, size = 0x4, offset = 0x4, fixed_abs, tag = 'smem constant byte address 0x4 - core index']
  #allocation1 [shape = 'u32[144,128]{1,0:T(1,128)}', space=vmem, size = 0x12000, scoped, tag = 'internal scratch']
  #allocation2 [shape = 'bf16[8,8,4]{2,1,0:T(8,128)(2,1)}', space=vmem, size = 0x4000, scoped, tag = 'scratch operand']
  #allocation3 [shape = 'f32[8,8,1]{2,1,0:T(8,128)}', space=vmem, size = 0x8000, scoped, tag = 'scratch operand']
  #allocation4 [shape = 'f32[8,8,1]{2,1,0:T(8,128)}', space=vmem, size = 0x8000, scoped, tag = 'scratch operand']
  #allocation5 [shape = 'f32[8,8,4]{2,1,0:T(8,128)}', space=vmem, size = 0x8000, scoped, tag = 'scratch operand']
  %s0 = inlined_call_operand.hbm [shape: f32[16,32], index: 0, kind: input, shape index: {}]
  %s1 = inlined_call_operand.hbm [shape: f32[16,32], index: 1, kind: input, shape index: {}]
  %s2 = inlined_call_operand.hbm [shape: f32[16,32], index: 2, kind: input, shape index: {}]
  %s3 = inlined_call_operand.hbm [shape: bf16[32,32], index: 3, kind: input, shape index: {}]
  %s4 = inlined_call_operand.hbm [shape: bf16[32,32], index: 4, kind: input, shape index: {}]
  %s5 = inlined_call_operand.hbm [shape: bf16[32,32], index: 5, kind: input, shape index: {}]
  %s6 = inlined_call_operand.hbm [shape: bf16[32,32], index: 6, kind: input, shape index: {}]
  %s7 = inlined_call_operand.vmem [shape: f32[1,32], index: 7, kind: input, shape index: {}]
  %s8 = inlined_call_operand.hbm [shape: f32[16,32], index: 8, kind: output, shape index: {}]
  %s9 = sld [smem:[#allocation0]]
  $region101: #{tpu_custom_call.1} parent=0
    _
  %s11 = ssub.s32 1, %s9
  %s12 = scalar_select 0, %s11, %s9
  $region1: #{tpu_custom_call.1} parent=0
    #allocation6 [shape = 'u8[8192]{0}', space=vmem, size = 0x2000, scoped, tag = 'input window, operand 0']
    #allocation7 [shape = 's32[2]{0}', space=sflag, size = 0x8, scoped, tag = 'scoped memory for tpu_custom_call.1']
    #allocation8 [shape = 's32[2]{0}', space=sflag, size = 0x8, scoped, tag = 'scoped memory for tpu_custom_call.1']
    #allocation9 [shape = 'u8[8192]{0}', space=vmem, size = 0x2000, scoped, tag = 'input window, operand 1']
    #allocation10 [shape = 's32[2]{0}', space=sflag, size = 0x8, scoped, tag = 'scoped memory for tpu_custom_call.1']
    #allocation11 [shape = 'u8[8192]{0}', space=vmem, size = 0x2000, scoped, tag = 'input window, operand 2']
    #allocation12 [shape = 'u8[8192]{0}', space=vmem, size = 0x2000, scoped, tag = 'input window, operand 3, single buffered']
    #allocation13 [shape = 's32[1]{0}', space=sflag, size = 0x4, scoped, tag = 'scoped memory for tpu_custom_call.1']
    #allocation14 [shape = 'u8[8192]{0}', space=vmem, size = 0x2000, scoped, tag = 'input window, operand 4, single buffered']
    #allocation15 [shape = 'u8[8192]{0}', space=vmem, size = 0x2000, scoped, tag = 'input window, operand 5, single buffered']
    #allocation16 [shape = 's32[1]{0}', space=sflag, size = 0x4, scoped, tag = 'scoped memory for tpu_custom_call.1']
    #allocation17 [shape = 'u8[8192]{0}', space=vmem, size = 0x2000, scoped, tag = 'input window, operand 6, single buffered']
    #allocation18 [shape = 'u8[8192]{0}', space=vmem, size = 0x2000, scoped, tag = 'output window, operand 0']
    %13 = vsyncpa [#allocation7], 0
    %s14 = scalar_lea.sflag [#allocation7], 1
    %15 = vsyncpa %s14, 0
    %16 = vsyncpa [#allocation10], 0
    %s17 = scalar_lea.sflag [#allocation10], 1
    %18 = vsyncpa %s17, 0
    %19 = vsyncpa [#allocation13], 0
    %20 = vsyncpa [#allocation16], 0
    %21 = vsyncpa [#allocation8], 0
    %s22 = scalar_lea.sflag [#allocation8], 1
    %23 = vsyncpa %s22, 0
    loop: start=0, step=1, limit=4
    $region2: #{tpu_custom_call.1} parent=1 // loop_pre_header
      _
    $region3: #{tpu_custom_call.1} parent=1 // loop_header
      %s25 = sphi 0, %s29
      %p26 = scmp.ge.s32.totalorder %s25, 4
      %s32 = sphi 0, %s44
      %s33 = sphi 0, %s40
      %s34 = sphi 0, %s32
      %s35 = sphi 0, %s33
      %s36 = sphi 0, %s34
      %s37 = sphi 0, %s35
      %s47 = sphi 0, %s49
      %s50 = sphi 0, %s47
      %s51 = sphi 0, %s50
      %s67 = sphi 0, %s51
      %s75 = sphi 0, %s77
      %s78 = sphi 0, %s75
      %s79 = sphi 0, %s78
      %s95 = sphi 0, %s79
      %s103 = sphi 0, %s105
      %s106 = sphi 0, %s103
      %s107 = sphi 0, %s106
      %s123 = sphi 0, %s107
      %s127 = sphi 0, %s127
      %s129 = sphi 0, %s127
      %s130 = sphi 0, %s129
      %s144 = sphi 0, %s130
      %s148 = sphi 0, %s148
      %s150 = sphi 0, %s148
      %s151 = sphi 0, %s150
      %s165 = sphi 0, %s151
      %s169 = sphi 0, %s169
      %s171 = sphi 0, %s169
      %s172 = sphi 0, %s171
      %s186 = sphi 0, %s172
      %s190 = sphi 0, %s190
      %s192 = sphi 0, %s190
      %s193 = sphi 0, %s192
      %s207 = sphi 0, %s193
      %s211 = sphi 0, %s211
      %s213 = sphi 0, %s211
      %s214 = sphi 0, %s213
      %s228 = sphi 0, %s214
      %s234 = sphi 0, %s236
      %s237 = sphi 0, %s234
      %s238 = sphi 0, %s237
      %s254 = sphi 0, %s238
    $region4: #{tpu_custom_call.1} parent=1 // loop_header_branch
      %28 = sbr.rel (%p26) target = $region8
    $region5: #{tpu_custom_call.1} parent=1 // loop_body
      %s30 = ssub.s32 %s25, 1
      %s31 = ssub.s32 %s25, 2
      %s38 = sadd.s32 1, %s33
      %p39 = scmp.ge.s32.totalorder %s38, 1
      %s40 = scalar_select %p39, 0, %s38
      %s41 = sadd.s32 1, %s32
      %s42 = scalar_select %p39, %s41, %s32
      %p43 = scmp.ge.s32.totalorder %s42, 2
      %s44 = scalar_select %p43, 0, %s42
      %s45 = ssub.s32 %s32, %s44
      %p46 = scmp.eq.s32.totalorder %s45, 0
      %s48 = sadd.s32 %s47, 1
      %s49 = scalar_select %p46, %s47, %s48
      %p52 = pneg %p46
      %p53 = scmp.eq.s32.totalorder %s25, 1
      %p54 = por %p52, %p53
      %p55 = scmp.ne.s32.totalorder %s47, %s50
      %p56 = scmp.eq.s32.totalorder %s25, 0
      %p57 = por %p55, %p56
      %p58 = scmp.ne.s32.totalorder %s47, %s50
      %p59 = scmp.eq.s32.totalorder %s30, 1
      %p60 = por %p58, %p59
      %p61 = scmp.ne.s32.totalorder %s50, %s51
      %p62 = scmp.eq.s32.totalorder %s30, 0
      %p63 = por %p61, %p62
      %p64 = scmp.ne.s32.totalorder %s50, %s51
      %p65 = scmp.eq.s32.totalorder %s31, 1
      %p66 = por %p64, %p65
      %p68 = scmp.ne.s32.totalorder %s51, %s67
      %p69 = scmp.eq.s32.totalorder %s31, 0
      %p70 = por %p68, %p69
      %s71 = sadd.s32 %s32, %s33
      %s72 = sadd.s32 %s44, %s40
      %s73 = ssub.s32 %s71, %s72
      %p74 = scmp.eq.s32.totalorder %s73, 0
      %s76 = sadd.s32 %s75, 1
      %s77 = scalar_select %p74, %s75, %s76
      %p80 = pneg %p74
      %p81 = scmp.eq.s32.totalorder %s25, 1
      %p82 = por %p80, %p81
      %p83 = scmp.ne.s32.totalorder %s75, %s78
      %p84 = scmp.eq.s32.totalorder %s25, 0
      %p85 = por %p83, %p84
      %p86 = scmp.ne.s32.totalorder %s75, %s78
      %p87 = scmp.eq.s32.totalorder %s30, 1
      %p88 = por %p86, %p87
      %p89 = scmp.ne.s32.totalorder %s78, %s79
      %p90 = scmp.eq.s32.totalorder %s30, 0
      %p91 = por %p89, %p90
      %p92 = scmp.ne.s32.totalorder %s78, %s79
      %p93 = scmp.eq.s32.totalorder %s31, 1
      %p94 = por %p92, %p93
      %p96 = scmp.ne.s32.totalorder %s79, %s95
      %p97 = scmp.eq.s32.totalorder %s31, 0
      %p98 = por %p96, %p97
      %s99 = sadd.s32 %s32, %s33
      %s100 = sadd.s32 %s44, %s40
      %s101 = ssub.s32 %s99, %s100
      %p102 = scmp.eq.s32.totalorder %s101, 0
      %s104 = sadd.s32 %s103, 1
      %s105 = scalar_select %p102, %s103, %s104
      %p108 = pneg %p102
      %p109 = scmp.eq.s32.totalorder %s25, 1
      %p110 = por %p108, %p109
      %p111 = scmp.ne.s32.totalorder %s103, %s106
      %p112 = scmp.eq.s32.totalorder %s25, 0
      %p113 = por %p111, %p112
      %p114 = scmp.ne.s32.totalorder %s103, %s106
      %p115 = scmp.eq.s32.totalorder %s30, 1
      %p116 = por %p114, %p115
      %p117 = scmp.ne.s32.totalorder %s106, %s107
      %p118 = scmp.eq.s32.totalorder %s30, 0
      %p119 = por %p117, %p118
      %p120 = scmp.ne.s32.totalorder %s106, %s107
      %p121 = scmp.eq.s32.totalorder %s31, 1
      %p122 = por %p120, %p121
      %p124 = scmp.ne.s32.totalorder %s107, %s123
      %p125 = scmp.eq.s32.totalorder %s31, 0
      %p126 = por %p124, %p125
      %s128 = sadd.s32 %s127, 1
      %p131 = scmp.eq.s32.totalorder %s25, 1
      %p132 = scmp.ne.s32.totalorder %s127, %s129
      %p133 = scmp.eq.s32.totalorder %s25, 0
      %p134 = por %p132, %p133
      %p135 = scmp.ne.s32.totalorder %s127, %s129
      %p136 = scmp.eq.s32.totalorder %s30, 1
      %p137 = por %p135, %p136
      %p138 = scmp.ne.s32.totalorder %s129, %s130
      %p139 = scmp.eq.s32.totalorder %s30, 0
      %p140 = por %p138, %p139
      %p141 = scmp.ne.s32.totalorder %s129, %s130
      %p142 = scmp.eq.s32.totalorder %s31, 1
      %p143 = por %p141, %p142
      %p145 = scmp.ne.s32.totalorder %s130, %s144
      %p146 = scmp.eq.s32.totalorder %s31, 0
      %p147 = por %p145, %p146
      %s149 = sadd.s32 %s148, 1
      %p152 = scmp.eq.s32.totalorder %s25, 1
      %p153 = scmp.ne.s32.totalorder %s148, %s150
      %p154 = scmp.eq.s32.totalorder %s25, 0
      %p155 = por %p153, %p154
      %p156 = scmp.ne.s32.totalorder %s148, %s150
      %p157 = scmp.eq.s32.totalorder %s30, 1
      %p158 = por %p156, %p157
      %p159 = scmp.ne.s32.totalorder %s150, %s151
      %p160 = scmp.eq.s32.totalorder %s30, 0
      %p161 = por %p159, %p160
      %p162 = scmp.ne.s32.totalorder %s150, %s151
      %p163 = scmp.eq.s32.totalorder %s31, 1
      %p164 = por %p162, %p163
      %p166 = scmp.ne.s32.totalorder %s151, %s165
      %p167 = scmp.eq.s32.totalorder %s31, 0
      %p168 = por %p166, %p167
      %s170 = sadd.s32 %s169, 1
      %p173 = scmp.eq.s32.totalorder %s25, 1
      %p174 = scmp.ne.s32.totalorder %s169, %s171
      %p175 = scmp.eq.s32.totalorder %s25, 0
      %p176 = por %p174, %p175
      %p177 = scmp.ne.s32.totalorder %s169, %s171
      %p178 = scmp.eq.s32.totalorder %s30, 1
      %p179 = por %p177, %p178
      %p180 = scmp.ne.s32.totalorder %s171, %s172
      %p181 = scmp.eq.s32.totalorder %s30, 0
      %p182 = por %p180, %p181
      %p183 = scmp.ne.s32.totalorder %s171, %s172
      %p184 = scmp.eq.s32.totalorder %s31, 1
      %p185 = por %p183, %p184
      %p187 = scmp.ne.s32.totalorder %s172, %s186
      %p188 = scmp.eq.s32.totalorder %s31, 0
      %p189 = por %p187, %p188
      %s191 = sadd.s32 %s190, 1
      %p194 = scmp.eq.s32.totalorder %s25, 1
      %p195 = scmp.ne.s32.totalorder %s190, %s192
      %p196 = scmp.eq.s32.totalorder %s25, 0
      %p197 = por %p195, %p196
      %p198 = scmp.ne.s32.totalorder %s190, %s192
      %p199 = scmp.eq.s32.totalorder %s30, 1
      %p200 = por %p198, %p199
      %p201 = scmp.ne.s32.totalorder %s192, %s193
      %p202 = scmp.eq.s32.totalorder %s30, 0
      %p203 = por %p201, %p202
      %p204 = scmp.ne.s32.totalorder %s192, %s193
      %p205 = scmp.eq.s32.totalorder %s31, 1
      %p206 = por %p204, %p205
      %p208 = scmp.ne.s32.totalorder %s193, %s207
      %p209 = scmp.eq.s32.totalorder %s31, 0
      %p210 = por %p208, %p209
      %s212 = sadd.s32 %s211, 1
      %p215 = scmp.eq.s32.totalorder %s25, 1
      %p216 = scmp.ne.s32.totalorder %s211, %s213
      %p217 = scmp.eq.s32.totalorder %s25, 0
      %p218 = por %p216, %p217
      %p219 = scmp.ne.s32.totalorder %s211, %s213
      %p220 = scmp.eq.s32.totalorder %s30, 1
      %p221 = por %p219, %p220
      %p222 = scmp.ne.s32.totalorder %s213, %s214
      %p223 = scmp.eq.s32.totalorder %s30, 0
      %p224 = por %p222, %p223
      %p225 = scmp.ne.s32.totalorder %s213, %s214
      %p226 = scmp.eq.s32.totalorder %s31, 1
      %p227 = por %p225, %p226
      %p229 = scmp.ne.s32.totalorder %s214, %s228
      %p230 = scmp.eq.s32.totalorder %s31, 0
      %p231 = por %p229, %p230
      %s232 = ssub.s32 %s32, %s44
      %p233 = scmp.eq.s32.totalorder %s232, 0
      %s235 = sadd.s32 %s234, 1
      %s236 = scalar_select %p233, %s234, %s235
      %p239 = pneg %p233
      %p240 = scmp.eq.s32.totalorder %s25, 1
      %p241 = por %p239, %p240
      %p242 = scmp.ne.s32.totalorder %s234, %s237
      %p243 = scmp.eq.s32.totalorder %s25, 0
      %p244 = por %p242, %p243
      %p245 = scmp.ne.s32.totalorder %s234, %s237
      %p246 = scmp.eq.s32.totalorder %s30, 1
      %p247 = por %p245, %p246
      %p248 = scmp.ne.s32.totalorder %s237, %s238
      %p249 = scmp.eq.s32.totalorder %s30, 0
      %p250 = por %p248, %p249
      %p251 = scmp.ne.s32.totalorder %s237, %s238
      %p252 = scmp.eq.s32.totalorder %s31, 1
      %p253 = por %p251, %p252
      %p255 = scmp.ne.s32.totalorder %s238, %s254
      %p256 = scmp.eq.s32.totalorder %s31, 0
      %p257 = por %p255, %p256
      %p258 = scmp.le.s32.totalorder 1, %s25
      %p259 = scmp.lt.s32.totalorder %s25, 3
      %p260 = pnand %p258, %p259
      %p261 = pneg %p260
      // Predicated region
      $region9: #{tpu_custom_call.1} parent=5 // pred_check
        _
      $region10: #{tpu_custom_call.1} parent=5 // pred_check_branch
        %263 = sbr.rel (%p260) target = $region12
      $region11: #{tpu_custom_call.1} parent=5 // pred_region
        %s264 = ssub.s32 %s25, 1
        // Predicated region
        $region13: #{tpu_custom_call.1} parent=11 // pred_check
          %p265 = pneg %p140
        $region14: #{tpu_custom_call.1} parent=11 // pred_check_branch
          %267 = sbr.rel (%p265) target = $region16
        $region15: #{tpu_custom_call.1} parent=11 // pred_region
          %s269 = ssub.s32 256, 256
          %270 = vsyncadd [#allocation13], %s269
          %s271 = sshll.u32 [#allocation12], 4
          %s272 = int_to_ptr.vmem [resolvable:$true] %s271
          %277 = dma.hbm_to_vmem [thread:$0]  %s3, 256, %s272, [#allocation13], 64, 64, 4
        $region16: #{tpu_custom_call.1} parent=11 // pred_fallthru
          _
        // Predicated region
        $region17: #{tpu_custom_call.1} parent=11 // pred_check
          %p278 = pneg %p161
        $region18: #{tpu_custom_call.1} parent=11 // pred_check_branch
          %280 = sbr.rel (%p278) target = $region20
        $region19: #{tpu_custom_call.1} parent=11 // pred_region
          %s282 = ssub.s32 256, 256
          %283 = vsyncadd [#allocation13], %s282
          %s284 = sshll.u32 [#allocation14], 4
          %s285 = int_to_ptr.vmem [resolvable:$true] %s284
          %290 = dma.hbm_to_vmem [thread:$0]  %s4, 256, %s285, [#allocation13], 64, 64, 4
        $region20: #{tpu_custom_call.1} parent=11 // pred_fallthru
          _
        // Predicated region
        $region21: #{tpu_custom_call.1} parent=11 // pred_check
          %p291 = pneg %p182
        $region22: #{tpu_custom_call.1} parent=11 // pred_check_branch
          %293 = sbr.rel (%p291) target = $region24
        $region23: #{tpu_custom_call.1} parent=11 // pred_region
          %s295 = ssub.s32 256, 256
          %296 = vsyncadd [#allocation16], %s295
          %s297 = sshll.u32 [#allocation15], 4
          %s298 = int_to_ptr.vmem [resolvable:$true] %s297
          %303 = dma.hbm_to_vmem [thread:$0]  %s5, 256, %s298, [#allocation16], 64, 64, 4
        $region24: #{tpu_custom_call.1} parent=11 // pred_fallthru
          _
        // Predicated region
        $region25: #{tpu_custom_call.1} parent=11 // pred_check
          %p304 = pneg %p203
        $region26: #{tpu_custom_call.1} parent=11 // pred_check_branch
          %306 = sbr.rel (%p304) target = $region28
        $region27: #{tpu_custom_call.1} parent=11 // pred_region
          %s308 = ssub.s32 256, 256
          %309 = vsyncadd [#allocation16], %s308
          %s310 = sshll.u32 [#allocation17], 4
          %s311 = int_to_ptr.vmem [resolvable:$true] %s310
          %316 = dma.hbm_to_vmem [thread:$0]  %s6, 256, %s311, [#allocation16], 64, 64, 4
        $region28: #{tpu_custom_call.1} parent=11 // pred_fallthru
          _
        // Predicated region
        $region29: #{tpu_custom_call.1} parent=11 // pred_check
          %p317 = pneg %p224
        $region30: #{tpu_custom_call.1} parent=11 // pred_check_branch
          %319 = sbr.rel (%p317) target = $region32
        $region31: #{tpu_custom_call.1} parent=11 // pred_region
          _
        $region32: #{tpu_custom_call.1} parent=11 // pred_fallthru
          _
      $region12: #{tpu_custom_call.1} parent=5 // pred_fallthru
        _
      %p320 = scmp.lt.s32.totalorder %s25, 2
      // Predicated region
      $region33: #{tpu_custom_call.1} parent=5 // pred_check
        %p321 = pneg %p320
      $region34: #{tpu_custom_call.1} parent=5 // pred_check_branch
        %323 = sbr.rel (%p321) target = $region36
      $region35: #{tpu_custom_call.1} parent=5 // pred_region
        // Predicated region
        $region37: #{tpu_custom_call.1} parent=35 // pred_check
          %p324 = pneg %p57
        $region38: #{tpu_custom_call.1} parent=35 // pred_check_branch
          %326 = sbr.rel (%p324) target = $region40
        $region39: #{tpu_custom_call.1} parent=35 // pred_region
          %s327 = sand.u32 %s47, 1
          %s328 = scalar_lea.sflag [#allocation7], %s327
          %s329 = sand.u32 %s47, 1
          %s330 = smul.addr %s329, 8
          %s331 = scalar_lea.vmem [#allocation6], %s330
          %s333 = ssub.s32 128, 128
          %334 = vsyncadd %s328, %s333
          %s335 = smul.addr %s32, 128
          %s336 = scalar_lea.hbm %s0, %s335
          %s338 = sshll.u32 %s331, 4
          %s339 = int_to_ptr.vmem [resolvable:$true] %s338
          %341 = dma.hbm_to_vmem [thread:$0]  %s336, 128, %s339, %s328
        $region40: #{tpu_custom_call.1} parent=35 // pred_fallthru
          _
        // Predicated region
        $region41: #{tpu_custom_call.1} parent=35 // pred_check
          %p342 = pneg %p85
        $region42: #{tpu_custom_call.1} parent=35 // pred_check_branch
          %344 = sbr.rel (%p342) target = $region44
        $region43: #{tpu_custom_call.1} parent=35 // pred_region
          %s345 = sand.u32 %s25, 1
          %s346 = scalar_lea.sflag [#allocation10], %s345
          %s347 = sand.u32 %s75, 1
          %s348 = smul.addr %s347, 8
          %s349 = scalar_lea.vmem [#allocation9], %s348
          %s350 = sadd.s32 %s32, %s33
          %s352 = ssub.s32 128, 128
          %353 = vsyncadd %s346, %s352
          %s354 = smul.addr %s350, 128
          %s355 = scalar_lea.hbm %s1, %s354
          %s357 = sshll.u32 %s349, 4
          %s358 = int_to_ptr.vmem [resolvable:$true] %s357
          %360 = dma.hbm_to_vmem [thread:$0]  %s355, 128, %s358, %s346
        $region44: #{tpu_custom_call.1} parent=35 // pred_fallthru
          _
        // Predicated region
        $region45: #{tpu_custom_call.1} parent=35 // pred_check
          %p361 = pneg %p113
        $region46: #{tpu_custom_call.1} parent=35 // pred_check_branch
          %363 = sbr.rel (%p361) target = $region48
        $region47: #{tpu_custom_call.1} parent=35 // pred_region
          %s364 = sand.u32 %s25, 1
          %s365 = scalar_lea.sflag [#allocation10], %s364
          %s366 = sand.u32 %s103, 1
          %s367 = smul.addr %s366, 8
          %s368 = scalar_lea.vmem [#allocation11], %s367
          %s369 = sadd.s32 %s32, %s33
          %s371 = ssub.s32 128, 128
          %372 = vsyncadd %s365, %s371
          %s373 = smul.addr %s369, 128
          %s374 = scalar_lea.hbm %s2, %s373
          %s376 = sshll.u32 %s368, 4
          %s377 = int_to_ptr.vmem [resolvable:$true] %s376
          %379 = dma.hbm_to_vmem [thread:$0]  %s374, 128, %s377, %s365
        $region48: #{tpu_custom_call.1} parent=35 // pred_fallthru
          _
      $region36: #{tpu_custom_call.1} parent=5 // pred_fallthru
        _
      %p380 = scmp.le.s32.totalorder 1, %s25
      %p381 = scmp.lt.s32.totalorder %s25, 3
      %p382 = pnand %p380, %p381
      %p383 = pneg %p382
      // Predicated region
      $region49: #{tpu_custom_call.1} parent=5 // pred_check
        _
      $region50: #{tpu_custom_call.1} parent=5 // pred_check_branch
        %385 = sbr.rel (%p382) target = $region52
      $region51: #{tpu_custom_call.1} parent=5 // pred_region
        %s386 = ssub.s32 %s25, 1
        %s387 = sand.u32 %s50, 1
        %s388 = scalar_lea.sflag [#allocation7], %s387
        %s389 = sand.u32 %s50, 1
        %s390 = smul.addr %s389, 8
        %s391 = scalar_lea.vmem [#allocation6], %s390
        // Predicated region
        $region53: #{tpu_custom_call.1} parent=51 // pred_check
          %p392 = pneg %p63
        $region54: #{tpu_custom_call.1} parent=51 // pred_check_branch
          %394 = sbr.rel (%p392) target = $region56
        $region55: #{tpu_custom_call.1} parent=51 // pred_region
          %395 = dma.done %s388, 128
        $region56: #{tpu_custom_call.1} parent=51 // pred_fallthru
          _
        %s396 = sand.u32 %s30, 1
        %s397 = scalar_lea.sflag [#allocation10], %s396
        %s398 = sand.u32 %s78, 1
        %s399 = smul.addr %s398, 8
        %s400 = scalar_lea.vmem [#allocation9], %s399
        // Predicated region
        $region57: #{tpu_custom_call.1} parent=51 // pred_check
          %p401 = pneg %p91
        $region58: #{tpu_custom_call.1} parent=51 // pred_check_branch
          %403 = sbr.rel (%p401) target = $region60
        $region59: #{tpu_custom_call.1} parent=51 // pred_region
          %404 = dma.done %s397, 128
        $region60: #{tpu_custom_call.1} parent=51 // pred_fallthru
          _
        %s405 = sand.u32 %s30, 1
        %s406 = scalar_lea.sflag [#allocation10], %s405
        %s407 = sand.u32 %s106, 1
        %s408 = smul.addr %s407, 8
        %s409 = scalar_lea.vmem [#allocation11], %s408
        // Predicated region
        $region61: #{tpu_custom_call.1} parent=51 // pred_check
          %p410 = pneg %p119
        $region62: #{tpu_custom_call.1} parent=51 // pred_check_branch
          %412 = sbr.rel (%p410) target = $region64
        $region63: #{tpu_custom_call.1} parent=51 // pred_region
          %413 = dma.done %s406, 128
        $region64: #{tpu_custom_call.1} parent=51 // pred_fallthru
          _
        // Predicated region
        $region65: #{tpu_custom_call.1} parent=51 // pred_check
          %p414 = pneg %p140
        $region66: #{tpu_custom_call.1} parent=51 // pred_check_branch
          %416 = sbr.rel (%p414) target = $region68
        $region67: #{tpu_custom_call.1} parent=51 // pred_region
          %417 = dma.done [#allocation13], 256
        $region68: #{tpu_custom_call.1} parent=51 // pred_fallthru
          _
        // Predicated region
        $region69: #{tpu_custom_call.1} parent=51 // pred_check
          %p418 = pneg %p161
        $region70: #{tpu_custom_call.1} parent=51 // pred_check_branch
          %420 = sbr.rel (%p418) target = $region72
        $region71: #{tpu_custom_call.1} parent=51 // pred_region
          %421 = dma.done [#allocation13], 256
        $region72: #{tpu_custom_call.1} parent=51 // pred_fallthru
          _
        // Predicated region
        $region73: #{tpu_custom_call.1} parent=51 // pred_check
          %p422 = pneg %p182
        $region74: #{tpu_custom_call.1} parent=51 // pred_check_branch
          %424 = sbr.rel (%p422) target = $region76
        $region75: #{tpu_custom_call.1} parent=51 // pred_region
          %425 = dma.done [#allocation16], 256
        $region76: #{tpu_custom_call.1} parent=51 // pred_fallthru
          _
        // Predicated region
        $region77: #{tpu_custom_call.1} parent=51 // pred_check
          %p426 = pneg %p203
        $region78: #{tpu_custom_call.1} parent=51 // pred_check_branch
          %428 = sbr.rel (%p426) target = $region80
        $region79: #{tpu_custom_call.1} parent=51 // pred_region
          %429 = dma.done [#allocation16], 256
        $region80: #{tpu_custom_call.1} parent=51 // pred_fallthru
          _
        %s430 = sand.u32 %s50, 1
        %s431 = scalar_lea.sflag [#allocation7], %s430
        %s432 = sand.u32 %s50, 1
        %s433 = smul.addr %s432, 8
        %s434 = scalar_lea.vmem [#allocation6], %s433
        %p435 = pneg %p63
        %p436 = pneg %p60
        %s437 = sand.u32 %s30, 1
        %s438 = scalar_lea.sflag [#allocation10], %s437
        %s439 = sand.u32 %s78, 1
        %s440 = smul.addr %s439, 8
        %s441 = scalar_lea.vmem [#allocation9], %s440
        %p442 = pneg %p91
        %p443 = pneg %p88
        %s444 = sand.u32 %s30, 1
        %s445 = scalar_lea.sflag [#allocation10], %s444
        %s446 = sand.u32 %s106, 1
        %s447 = smul.addr %s446, 8
        %s448 = scalar_lea.vmem [#allocation11], %s447
        %p449 = pneg %p119
        %p450 = pneg %p116
        %p451 = pneg %p140
        %p452 = pneg %p137
        %p453 = pneg %p161
        %p454 = pneg %p158
        %p455 = pneg %p182
        %p456 = pneg %p179
        %p457 = pneg %p203
        %p458 = pneg %p200
        %p459 = pneg %p224
        %p460 = pneg %p221
        %p461 = pneg %p250
        %p462 = pneg %p247
        %s463 = sand.u32 %s237, 1
        %s464 = scalar_lea.sflag [#allocation8], %s463
        %s465 = sand.u32 %s237, 1
        %s466 = smul.addr %s465, 8
        %s467 = scalar_lea.vmem [#allocation18], %s466
        %s468 = sadd.s32 %s34, %s35
        %s469 = sadd.s32 %s34, %s35
        %p471 = scmp.eq.s32.totalorder %s35, 0
        // Predicated region
        $region81: #{tpu_custom_call.1} parent=51 // pred_check
          %p472 = pneg %p471
        $region82: #{tpu_custom_call.1} parent=51 // pred_check_branch
          %474 = sbr.rel (%p472) target = $region84
        $region83: #{tpu_custom_call.1} parent=51 // pred_region
          %v475 = vld [vmem:[%s391] sm:$0xff]
          %v476 = vpack.c.bf16 %v475, %v475
          %v477 = vld [vmem:[#allocation12] sm:$0xf]
          %v478 = vld [vmem:[#allocation12 + $0x4] sm:$0xf]
          %v479 = vld [vmem:[#allocation12 + $0x8] sm:$0xf]
          %v480 = vld [vmem:[#allocation12 + $0xc] sm:$0xf]
          %v485 = vunpack.c.l.b16 %v477
          %v486 = vunpack.c.l.b16 %v478
          %v487 = vunpack.c.l.b16 %v479
          %v488 = vunpack.c.l.b16 %v480
          %v489 = vpack.c.b16 %v486, %v485
          %v490 = vpack.c.b16 %v488, %v487
          %vm493 = vcmask 261120
          %v495 = vsel %vm493, %v476, 0
          %497 = vmatprep.subr.bf16.mxu0 0
          %498 = vmatpush1.bf16.msra.mxu0 0
          %499 = vmatprep.subr.bf16.mxu0 0
          %500 = vmatpush1.bf16.msra.mxu0 0
          %501 = vmatprep.subr.bf16.mxu0 0
          %502 = vmatpush1.bf16.msra.mxu0 0
          %503 = vmatprep.subr.bf16.mxu0 0
          %504 = vmatpush1.bf16.msra.mxu0 0
          %505 = vmatprep.subr.bf16.mxu0 0
          %506 = vmatpush1.bf16.msra.mxu0 0
          %507 = vmatprep.subr.bf16.mxu0 0
          %508 = vmatpush1.bf16.msra.mxu0 0
          %509 = vmatprep.subr.bf16.mxu0 0
          %510 = vmatpush1.bf16.msra.mxu0 %v490
          %511 = vmatprep.subr.bf16.mxu0 0
          %512 = vmatpush1.bf16.msra.mxu0 %v489
          %513 = vmatprep.subr.bf16.mxu0 0
          %514 = vmatpush2.bf16.msra.mxu0 0
          %515 = vmatprep.subr.bf16.mxu0 0
          %516 = vmatpush2.bf16.msra.mxu0 0
          %517 = vmatprep.subr.bf16.mxu0 0
          %518 = vmatpush2.bf16.msra.mxu0 0
          %519 = vmatprep.subr.bf16.mxu0 0
          %520 = vmatpush2.bf16.msra.mxu0 0
          %521 = vmatprep.subr.bf16.mxu0 0
          %522 = vmatpush2.bf16.msra.mxu0 0
          %523 = vmatprep.subr.bf16.mxu0 0
          %524 = vmatpush2.bf16.msra.mxu0 0
          %525 = vmatprep.subr.bf16.mxu0 0
          %526 = vmatpush2.bf16.msra.mxu0 0
          %527 = vmatprep.subr.bf16.mxu0 0
          %528 = vmatpush2.bf16.msra.mxu0 0
          %529 = vmatprep.mubr.bf16.mxu0 0
          %530 = vmatmul.mubr.bf16.gmra.mxu0 %v495
          %v531 = vpop.f32.mrf.mxu0
          %v532 = vadd.f32 0.0, %v531
          %v533 = vpop.f32.mrf.mxu0
          %v534 = vpop.f32.mrf.mxu0
          %v535 = vpop.f32.mrf.mxu0
          %536 = vdwg.mxu0
          %v537 = vmul.f32 %v532, 0.5
          %v538 = vpack.c.bf16 %v537, %v537
          %540 = vrot.lane.b32.xlu0 %v538, 124
          %v541 = vpop.permute.xlu0 %540
          %543 = vrot.lane.b32.xlu0 %v538, 120
          %v544 = vpop.permute.xlu0 %543
          %546 = vrot.lane.b32.xlu0 %v538, 116
          %v547 = vpop.permute.xlu0 %546
          %549 = vrot.lane.b32.xlu0 %v538, 112
          %v550 = vpop.permute.xlu0 %549
          %552 = vrot.lane.b32.xlu0 %v538, 108
          %v553 = vpop.permute.xlu0 %552
          %555 = vrot.lane.b32.xlu0 %v538, 104
          %v556 = vpop.permute.xlu0 %555
          %558 = vrot.lane.b32.xlu0 %v538, 100
          %v559 = vpop.permute.xlu0 %558
          %v561 = vcombine.low %v538, %v550
          %v563 = vunpack.c.l.s4 1983009808
          %v564 = vunpack.c.0.s8 %v563
          %v565 = vlaneseq
          %v566 = vshrl.u32 %v565, 7
          %v567 = vsub.s32 %v564, %v566
          %v568 = vrot.slane %v561, %v567
          %v569 = vcombine.low %v544, %v556
          %v571 = vunpack.c.l.s4 1983009808
          %v572 = vunpack.c.0.s8 %v571
          %v573 = vlaneseq
          %v574 = vshrl.u32 %v573, 7
          %v575 = vsub.s32 %v572, %v574
          %v576 = vrot.slane %v569, %v575
          %v577 = vcombine.low %v568, %v576
          %v578 = vcombine.high %v568, %v576
          %v580 = vunpack.c.l.s4 1934713408
          %v581 = vunpack.c.0.s8 %v580
          %v582 = vlaneseq
          %v583 = vshrl.u32 %v582, 7
          %v584 = vsub.s32 %v581, %v583
          %v585 = vrot.slane %v577, %v584
          %v587 = vunpack.c.l.s4 1934713408
          %v588 = vunpack.c.0.s8 %v587
          %v589 = vlaneseq
          %v590 = vshrl.u32 %v589, 7
          %v591 = vsub.s32 %v588, %v590
          %v592 = vrot.slane %v578, %v591
          %v593 = vcombine.high %v585, 0
          %v594 = vcombine.high %v592, 0
          %v595 = vcombine.low %v541, %v553
          %v597 = vunpack.c.l.s4 1983009808
          %v598 = vunpack.c.0.s8 %v597
          %v599 = vlaneseq
          %v600 = vshrl.u32 %v599, 7
          %v601 = vsub.s32 %v598, %v600
          %v602 = vrot.slane %v595, %v601
          %v603 = vcombine.low %v547, %v559
          %v605 = vunpack.c.l.s4 1983009808
          %v606 = vunpack.c.0.s8 %v605
          %v607 = vlaneseq
          %v608 = vshrl.u32 %v607, 7
          %v609 = vsub.s32 %v606, %v608
          %v610 = vrot.slane %v603, %v609
          %v611 = vcombine.low %v602, %v610
          %v612 = vcombine.high %v602, %v610
          %v614 = vunpack.c.l.s4 1934713408
          %v615 = vunpack.c.0.s8 %v614
          %v616 = vlaneseq
          %v617 = vshrl.u32 %v616, 7
          %v618 = vsub.s32 %v615, %v617
          %v619 = vrot.slane %v611, %v618
          %v621 = vunpack.c.l.s4 1934713408
          %v622 = vunpack.c.0.s8 %v621
          %v623 = vlaneseq
          %v624 = vshrl.u32 %v623, 7
          %v625 = vsub.s32 %v622, %v624
          %v626 = vrot.slane %v612, %v625
          %v627 = vcombine.high %v619, 0
          %v628 = vcombine.high %v626, 0
          %v631 = vpack.i.b16 %v619, %v585
          %v633 = vshrl.u32 %v585, 16
          %v634 = vshrl.u32 %v619, 16
          %v635 = vpack.i.b16 %v634, %v633
          %v639 = vpack.i.b16 %v627, %v593
          %v641 = vshrl.u32 %v593, 16
          %v642 = vshrl.u32 %v627, 16
          %v643 = vpack.i.b16 %v642, %v641
          %v647 = vpack.i.b16 %v626, %v592
          %v649 = vshrl.u32 %v592, 16
          %v650 = vshrl.u32 %v626, 16
          %v651 = vpack.i.b16 %v650, %v649
          %v655 = vpack.i.b16 %v628, %v594
          %v657 = vshrl.u32 %v594, 16
          %v658 = vshrl.u32 %v628, 16
          %v659 = vpack.i.b16 %v658, %v657
          %v661 = vcombine.low %v631, %v647
          %v663 = vunpack.c.l.s4 1983009808
          %v664 = vunpack.c.0.s8 %v663
          %v665 = vlaneseq
          %v666 = vshrl.u32 %v665, 7
          %v667 = vsub.s32 %v664, %v666
          %v668 = vrot.slane %v661, %v667
          %v669 = vcombine.low %v639, %v655
          %v671 = vunpack.c.l.s4 1983009808
          %v672 = vunpack.c.0.s8 %v671
          %v673 = vlaneseq
          %v674 = vshrl.u32 %v673, 7
          %v675 = vsub.s32 %v672, %v674
          %v676 = vrot.slane %v669, %v675
          %v677 = vcombine.low %v668, %v676
          %v678 = vcombine.high %v668, %v676
          %v680 = vunpack.c.l.s4 1934713408
          %v681 = vunpack.c.0.s8 %v680
          %v682 = vlaneseq
          %v683 = vshrl.u32 %v682, 7
          %v684 = vsub.s32 %v681, %v683
          %v685 = vrot.slane %v677, %v684
          %v687 = vunpack.c.l.s4 1934713408
          %v688 = vunpack.c.0.s8 %v687
          %v689 = vlaneseq
          %v690 = vshrl.u32 %v689, 7
          %v691 = vsub.s32 %v688, %v690
          %v692 = vrot.slane %v678, %v691
          %v693 = vcombine.high %v685, 0
          %v694 = vcombine.high %v692, 0
          %v695 = vcombine.low %v635, %v651
          %v697 = vunpack.c.l.s4 1983009808
          %v698 = vunpack.c.0.s8 %v697
          %v699 = vlaneseq
          %v700 = vshrl.u32 %v699, 7
          %v701 = vsub.s32 %v698, %v700
          %v702 = vrot.slane %v695, %v701
          %v703 = vcombine.low %v643, %v659
          %v705 = vunpack.c.l.s4 1983009808
          %v706 = vunpack.c.0.s8 %v705
          %v707 = vlaneseq
          %v708 = vshrl.u32 %v707, 7
          %v709 = vsub.s32 %v706, %v708
          %v710 = vrot.slane %v703, %v709
          %v711 = vcombine.low %v702, %v710
          %v712 = vcombine.high %v702, %v710
          %v714 = vunpack.c.l.s4 1934713408
          %v715 = vunpack.c.0.s8 %v714
          %v716 = vlaneseq
          %v717 = vshrl.u32 %v716, 7
          %v718 = vsub.s32 %v715, %v717
          %v719 = vrot.slane %v711, %v718
          %v721 = vunpack.c.l.s4 1934713408
          %v722 = vunpack.c.0.s8 %v721
          %v723 = vlaneseq
          %v724 = vshrl.u32 %v723, 7
          %v725 = vsub.s32 %v722, %v724
          %v726 = vrot.slane %v712, %v725
          %v727 = vcombine.high %v719, 0
          %v728 = vcombine.high %v726, 0
          %v731 = vpack.i.b16 %v719, %v685
          %v733 = vshrl.u32 %v685, 16
          %v734 = vshrl.u32 %v719, 16
          %v735 = vpack.i.b16 %v734, %v733
          %v739 = vpack.i.b16 %v727, %v693
          %v741 = vshrl.u32 %v693, 16
          %v742 = vshrl.u32 %v727, 16
          %v743 = vpack.i.b16 %v742, %v741
          %v747 = vpack.i.b16 %v726, %v692
          %v749 = vshrl.u32 %v692, 16
          %v750 = vshrl.u32 %v726, 16
          %v751 = vpack.i.b16 %v750, %v749
          %v755 = vpack.i.b16 %v728, %v694
          %v757 = vshrl.u32 %v694, 16
          %v758 = vshrl.u32 %v728, 16
          %v759 = vpack.i.b16 %v758, %v757
          %vm761 = vcmask 27648
          %762 = vst.msk [vmem:[#allocation2] sm:$0xf] %vm761, %v731
          %763 = vst.msk [vmem:[#allocation2 + $0x4] sm:$0xf] %vm761, %v735
          %764 = vst.msk [vmem:[#allocation2 + $0x8] sm:$0xf] %vm761, %v739
          %765 = vst.msk [vmem:[#allocation2 + $0xc] sm:$0xf] %vm761, %v743
          %766 = vst.msk [vmem:[#allocation2 + $0x10] sm:$0xf] %vm761, %v747
          %767 = vst.msk [vmem:[#allocation2 + $0x14] sm:$0xf] %vm761, %v751
          %768 = vst.msk [vmem:[#allocation2 + $0x18] sm:$0xf] %vm761, %v755
          %769 = vst.msk [vmem:[#allocation2 + $0x1c] sm:$0xf] %vm761, %v759
          %vm770 = vcmask 7168
          %771 = vst.msk [vmem:[#allocation3] sm:$0xff] %vm770, -inf
          %772 = vst.msk [vmem:[#allocation3 + $0x8] sm:$0xff] %vm770, -inf
          %773 = vst.msk [vmem:[#allocation3 + $0x10] sm:$0xff] %vm770, -inf
          %774 = vst.msk [vmem:[#allocation3 + $0x18] sm:$0xff] %vm770, -inf
          %775 = vst.msk [vmem:[#allocation3 + $0x20] sm:$0xff] %vm770, -inf
          %776 = vst.msk [vmem:[#allocation3 + $0x28] sm:$0xff] %vm770, -inf
          %777 = vst.msk [vmem:[#allocation3 + $0x30] sm:$0xff] %vm770, -inf
          %778 = vst.msk [vmem:[#allocation3 + $0x38] sm:$0xff] %vm770, -inf
          %779 = vst.msk [vmem:[#allocation4] sm:$0xff] %vm770, 0.0
          %780 = vst.msk [vmem:[#allocation4 + $0x8] sm:$0xff] %vm770, 0.0
          %781 = vst.msk [vmem:[#allocation4 + $0x10] sm:$0xff] %vm770, 0.0
          %782 = vst.msk [vmem:[#allocation4 + $0x18] sm:$0xff] %vm770, 0.0
          %783 = vst.msk [vmem:[#allocation4 + $0x20] sm:$0xff] %vm770, 0.0
          %784 = vst.msk [vmem:[#allocation4 + $0x28] sm:$0xff] %vm770, 0.0
          %785 = vst.msk [vmem:[#allocation4 + $0x30] sm:$0xff] %vm770, 0.0
          %786 = vst.msk [vmem:[#allocation4 + $0x38] sm:$0xff] %vm770, 0.0
          %vm787 = vcmask 31744
          %788 = vst.msk [vmem:[#allocation5] sm:$0xff] %vm787, 0.0
          %789 = vst.msk [vmem:[#allocation5 + $0x8] sm:$0xff] %vm787, 0.0
          %790 = vst.msk [vmem:[#allocation5 + $0x10] sm:$0xff] %vm787, 0.0
          %791 = vst.msk [vmem:[#allocation5 + $0x18] sm:$0xff] %vm787, 0.0
          %792 = vst.msk [vmem:[#allocation5 + $0x20] sm:$0xff] %vm787, 0.0
          %793 = vst.msk [vmem:[#allocation5 + $0x28] sm:$0xff] %vm787, 0.0
          %794 = vst.msk [vmem:[#allocation5 + $0x30] sm:$0xff] %vm787, 0.0
          %795 = vst.msk [vmem:[#allocation5 + $0x38] sm:$0xff] %vm787, 0.0
        $region84: #{tpu_custom_call.1} parent=51 // pred_fallthru
          _
        %v796 = vld [vmem:[%s400] sm:$0xff]
        %v797 = vpack.c.bf16 %v796, %v796
        %v798 = vld [vmem:[#allocation14] sm:$0xf]
        %v799 = vld [vmem:[#allocation14 + $0x4] sm:$0xf]
        %v800 = vld [vmem:[#allocation14 + $0x8] sm:$0xf]
        %v801 = vld [vmem:[#allocation14 + $0xc] sm:$0xf]
        %v806 = vunpack.c.l.b16 %v798
        %v807 = vunpack.c.l.b16 %v799
        %v808 = vunpack.c.l.b16 %v800
        %v809 = vunpack.c.l.b16 %v801
        %v810 = vpack.c.b16 %v807, %v806
        %v811 = vpack.c.b16 %v809, %v808
        %vm814 = vcmask 261120
        %v816 = vsel %vm814, %v797, 0
        %818 = vmatprep.subr.bf16.mxu0 0
        %819 = vmatpush1.bf16.msra.mxu0 0
        %820 = vmatprep.subr.bf16.mxu0 0
        %821 = vmatpush1.bf16.msra.mxu0 0
        %822 = vmatprep.subr.bf16.mxu0 0
        %823 = vmatpush1.bf16.msra.mxu0 0
        %824 = vmatprep.subr.bf16.mxu0 0
        %825 = vmatpush1.bf16.msra.mxu0 0
        %826 = vmatprep.subr.bf16.mxu0 0
        %827 = vmatpush1.bf16.msra.mxu0 0
        %828 = vmatprep.subr.bf16.mxu0 0
        %829 = vmatpush1.bf16.msra.mxu0 0
        %830 = vmatprep.subr.bf16.mxu0 0
        %831 = vmatpush1.bf16.msra.mxu0 %v811
        %832 = vmatprep.subr.bf16.mxu0 0
        %833 = vmatpush1.bf16.msra.mxu0 %v810
        %834 = vmatprep.subr.bf16.mxu0 0
        %835 = vmatpush2.bf16.msra.mxu0 0
        %836 = vmatprep.subr.bf16.mxu0 0
        %837 = vmatpush2.bf16.msra.mxu0 0
        %838 = vmatprep.subr.bf16.mxu0 0
        %839 = vmatpush2.bf16.msra.mxu0 0
        %840 = vmatprep.subr.bf16.mxu0 0
        %841 = vmatpush2.bf16.msra.mxu0 0
        %842 = vmatprep.subr.bf16.mxu0 0
        %843 = vmatpush2.bf16.msra.mxu0 0
        %844 = vmatprep.subr.bf16.mxu0 0
        %845 = vmatpush2.bf16.msra.mxu0 0
        %846 = vmatprep.subr.bf16.mxu0 0
        %847 = vmatpush2.bf16.msra.mxu0 0
        %848 = vmatprep.subr.bf16.mxu0 0
        %849 = vmatpush2.bf16.msra.mxu0 0
        %850 = vmatprep.mubr.bf16.mxu0 0
        %851 = vmatmul.mubr.bf16.gmra.mxu0 %v816
        %v852 = vpop.f32.mrf.mxu0
        %v853 = vadd.f32 0.0, %v852
        %v854 = vpop.f32.mrf.mxu0
        %v855 = vpop.f32.mrf.mxu0
        %v856 = vpop.f32.mrf.mxu0
        %857 = vdwg.mxu0
        %v858 = vpack.c.bf16 %v853, %v853
        %v859 = vld [vmem:[%s409] sm:$0xff]
        %v860 = vpack.c.bf16 %v859, %v859
        %v861 = vld [vmem:[#allocation15] sm:$0xf]
        %v862 = vld [vmem:[#allocation15 + $0x4] sm:$0xf]
        %v863 = vld [vmem:[#allocation15 + $0x8] sm:$0xf]
        %v864 = vld [vmem:[#allocation15 + $0xc] sm:$0xf]
        %v869 = vunpack.c.l.b16 %v861
        %v870 = vunpack.c.l.b16 %v862
        %v871 = vunpack.c.l.b16 %v863
        %v872 = vunpack.c.l.b16 %v864
        %v873 = vpack.c.b16 %v870, %v869
        %v874 = vpack.c.b16 %v872, %v871
        %v878 = vsel %vm814, %v860, 0
        %880 = vmatprep.subr.bf16.mxu0 0
        %881 = vmatpush1.bf16.msra.mxu0 0
        %882 = vmatprep.subr.bf16.mxu0 0
        %883 = vmatpush1.bf16.msra.mxu0 0
        %884 = vmatprep.subr.bf16.mxu0 0
        %885 = vmatpush1.bf16.msra.mxu0 0
        %886 = vmatprep.subr.bf16.mxu0 0
        %887 = vmatpush1.bf16.msra.mxu0 0
        %888 = vmatprep.subr.bf16.mxu0 0
        %889 = vmatpush1.bf16.msra.mxu0 0
        %890 = vmatprep.subr.bf16.mxu0 0
        %891 = vmatpush1.bf16.msra.mxu0 0
        %892 = vmatprep.subr.bf16.mxu0 0
        %893 = vmatpush1.bf16.msra.mxu0 %v874
        %894 = vmatprep.subr.bf16.mxu0 0
        %895 = vmatpush1.bf16.msra.mxu0 %v873
        %896 = vmatprep.subr.bf16.mxu0 0
        %897 = vmatpush2.bf16.msra.mxu0 0
        %898 = vmatprep.subr.bf16.mxu0 0
        %899 = vmatpush2.bf16.msra.mxu0 0
        %900 = vmatprep.subr.bf16.mxu0 0
        %901 = vmatpush2.bf16.msra.mxu0 0
        %902 = vmatprep.subr.bf16.mxu0 0
        %903 = vmatpush2.bf16.msra.mxu0 0
        %904 = vmatprep.subr.bf16.mxu0 0
        %905 = vmatpush2.bf16.msra.mxu0 0
        %906 = vmatprep.subr.bf16.mxu0 0
        %907 = vmatpush2.bf16.msra.mxu0 0
        %908 = vmatprep.subr.bf16.mxu0 0
        %909 = vmatpush2.bf16.msra.mxu0 0
        %910 = vmatprep.subr.bf16.mxu0 0
        %911 = vmatpush2.bf16.msra.mxu0 0
        %912 = vmatprep.mubr.bf16.mxu0 0
        %913 = vmatmul.mubr.bf16.gmra.mxu0 %v878
        %v914 = vpop.f32.mrf.mxu0
        %v915 = vadd.f32 0.0, %v914
        %v916 = vpop.f32.mrf.mxu0
        %v917 = vpop.f32.mrf.mxu0
        %v918 = vpop.f32.mrf.mxu0
        %919 = vdwg.mxu0
        %v920 = vpack.c.bf16 %v915, %v915
        %922 = vrot.lane.b32.xlu0 %v858, 124
        %v923 = vpop.permute.xlu0 %922
        %925 = vrot.lane.b32.xlu0 %v858, 120
        %v926 = vpop.permute.xlu0 %925
        %928 = vrot.lane.b32.xlu0 %v858, 116
        %v929 = vpop.permute.xlu0 %928
        %931 = vrot.lane.b32.xlu0 %v858, 112
        %v932 = vpop.permute.xlu0 %931
        %934 = vrot.lane.b32.xlu0 %v858, 108
        %v935 = vpop.permute.xlu0 %934
        %937 = vrot.lane.b32.xlu0 %v858, 104
        %v938 = vpop.permute.xlu0 %937
        %940 = vrot.lane.b32.xlu0 %v858, 100
        %v941 = vpop.permute.xlu0 %940
        %v943 = vcombine.low %v858, %v932
        %v945 = vunpack.c.l.s4 1983009808
        %v946 = vunpack.c.0.s8 %v945
        %v947 = vlaneseq
        %v948 = vshrl.u32 %v947, 7
        %v949 = vsub.s32 %v946, %v948
        %v950 = vrot.slane %v943, %v949
        %v951 = vcombine.low %v926, %v938
        %v953 = vunpack.c.l.s4 1983009808
        %v954 = vunpack.c.0.s8 %v953
        %v955 = vlaneseq
        %v956 = vshrl.u32 %v955, 7
        %v957 = vsub.s32 %v954, %v956
        %v958 = vrot.slane %v951, %v957
        %v959 = vcombine.low %v950, %v958
        %v960 = vcombine.high %v950, %v958
        %v962 = vunpack.c.l.s4 1934713408
        %v963 = vunpack.c.0.s8 %v962
        %v964 = vlaneseq
        %v965 = vshrl.u32 %v964, 7
        %v966 = vsub.s32 %v963, %v965
        %v967 = vrot.slane %v959, %v966
        %v969 = vunpack.c.l.s4 1934713408
        %v970 = vunpack.c.0.s8 %v969
        %v971 = vlaneseq
        %v972 = vshrl.u32 %v971, 7
        %v973 = vsub.s32 %v970, %v972
        %v974 = vrot.slane %v960, %v973
        %v975 = vcombine.high %v967, 0
        %v976 = vcombine.high %v974, 0
        %v977 = vcombine.low %v923, %v935
        %v979 = vunpack.c.l.s4 1983009808
        %v980 = vunpack.c.0.s8 %v979
        %v981 = vlaneseq
        %v982 = vshrl.u32 %v981, 7
        %v983 = vsub.s32 %v980, %v982
        %v984 = vrot.slane %v977, %v983
        %v985 = vcombine.low %v929, %v941
        %v987 = vunpack.c.l.s4 1983009808
        %v988 = vunpack.c.0.s8 %v987
        %v989 = vlaneseq
        %v990 = vshrl.u32 %v989, 7
        %v991 = vsub.s32 %v988, %v990
        %v992 = vrot.slane %v985, %v991
        %v993 = vcombine.low %v984, %v992
        %v994 = vcombine.high %v984, %v992
        %v996 = vunpack.c.l.s4 1934713408
        %v997 = vunpack.c.0.s8 %v996
        %v998 = vlaneseq
        %v999 = vshrl.u32 %v998, 7
        %v1000 = vsub.s32 %v997, %v999
        %v1001 = vrot.slane %v993, %v1000
        %v1003 = vunpack.c.l.s4 1934713408
        %v1004 = vunpack.c.0.s8 %v1003
        %v1005 = vlaneseq
        %v1006 = vshrl.u32 %v1005, 7
        %v1007 = vsub.s32 %v1004, %v1006
        %v1008 = vrot.slane %v994, %v1007
        %v1009 = vcombine.high %v1001, 0
        %v1010 = vcombine.high %v1008, 0
        %v1013 = vpack.i.b16 %v1001, %v967
        %v1015 = vshrl.u32 %v967, 16
        %v1016 = vshrl.u32 %v1001, 16
        %v1017 = vpack.i.b16 %v1016, %v1015
        %v1021 = vpack.i.b16 %v1009, %v975
        %v1023 = vshrl.u32 %v975, 16
        %v1024 = vshrl.u32 %v1009, 16
        %v1025 = vpack.i.b16 %v1024, %v1023
        %v1029 = vpack.i.b16 %v1008, %v974
        %v1031 = vshrl.u32 %v974, 16
        %v1032 = vshrl.u32 %v1008, 16
        %v1033 = vpack.i.b16 %v1032, %v1031
        %v1037 = vpack.i.b16 %v1010, %v976
        %v1039 = vshrl.u32 %v976, 16
        %v1040 = vshrl.u32 %v1010, 16
        %v1041 = vpack.i.b16 %v1040, %v1039
        %v1043 = vcombine.low %v1013, %v1029
        %v1045 = vunpack.c.l.s4 1983009808
        %v1046 = vunpack.c.0.s8 %v1045
        %v1047 = vlaneseq
        %v1048 = vshrl.u32 %v1047, 7
        %v1049 = vsub.s32 %v1046, %v1048
        %v1050 = vrot.slane %v1043, %v1049
        %v1051 = vcombine.low %v1021, %v1037
        %v1053 = vunpack.c.l.s4 1983009808
        %v1054 = vunpack.c.0.s8 %v1053
        %v1055 = vlaneseq
        %v1056 = vshrl.u32 %v1055, 7
        %v1057 = vsub.s32 %v1054, %v1056
        %v1058 = vrot.slane %v1051, %v1057
        %v1059 = vcombine.low %v1050, %v1058
        %v1060 = vcombine.high %v1050, %v1058
        %v1062 = vunpack.c.l.s4 1934713408
        %v1063 = vunpack.c.0.s8 %v1062
        %v1064 = vlaneseq
        %v1065 = vshrl.u32 %v1064, 7
        %v1066 = vsub.s32 %v1063, %v1065
        %v1067 = vrot.slane %v1059, %v1066
        %v1069 = vunpack.c.l.s4 1934713408
        %v1070 = vunpack.c.0.s8 %v1069
        %v1071 = vlaneseq
        %v1072 = vshrl.u32 %v1071, 7
        %v1073 = vsub.s32 %v1070, %v1072
        %v1074 = vrot.slane %v1060, %v1073
        %v1075 = vcombine.high %v1067, 0
        %v1076 = vcombine.high %v1074, 0
        %v1077 = vcombine.low %v1017, %v1033
        %v1079 = vunpack.c.l.s4 1983009808
        %v1080 = vunpack.c.0.s8 %v1079
        %v1081 = vlaneseq
        %v1082 = vshrl.u32 %v1081, 7
        %v1083 = vsub.s32 %v1080, %v1082
        %v1084 = vrot.slane %v1077, %v1083
        %v1085 = vcombine.low %v1025, %v1041
        %v1087 = vunpack.c.l.s4 1983009808
        %v1088 = vunpack.c.0.s8 %v1087
        %v1089 = vlaneseq
        %v1090 = vshrl.u32 %v1089, 7
        %v1091 = vsub.s32 %v1088, %v1090
        %v1092 = vrot.slane %v1085, %v1091
        %v1093 = vcombine.low %v1084, %v1092
        %v1094 = vcombine.high %v1084, %v1092
        %v1096 = vunpack.c.l.s4 1934713408
        %v1097 = vunpack.c.0.s8 %v1096
        %v1098 = vlaneseq
        %v1099 = vshrl.u32 %v1098, 7
        %v1100 = vsub.s32 %v1097, %v1099
        %v1101 = vrot.slane %v1093, %v1100
        %v1103 = vunpack.c.l.s4 1934713408
        %v1104 = vunpack.c.0.s8 %v1103
        %v1105 = vlaneseq
        %v1106 = vshrl.u32 %v1105, 7
        %v1107 = vsub.s32 %v1104, %v1106
        %v1108 = vrot.slane %v1094, %v1107
        %v1109 = vcombine.high %v1101, 0
        %v1110 = vcombine.high %v1108, 0
        %v1113 = vpack.i.b16 %v1101, %v1067
        %v1114 = vshrl.u32 %v1067, 16
        %v1115 = vshrl.u32 %v1101, 16
        %v1116 = vpack.i.b16 %v1115, %v1114
        %v1119 = vpack.i.b16 %v1109, %v1075
        %v1120 = vshrl.u32 %v1075, 16
        %v1121 = vshrl.u32 %v1109, 16
        %v1122 = vpack.i.b16 %v1121, %v1120
        %v1125 = vpack.i.b16 %v1108, %v1074
        %v1126 = vshrl.u32 %v1074, 16
        %v1127 = vshrl.u32 %v1108, 16
        %v1128 = vpack.i.b16 %v1127, %v1126
        %v1131 = vpack.i.b16 %v1110, %v1076
        %v1132 = vshrl.u32 %v1076, 16
        %v1133 = vshrl.u32 %v1110, 16
        %v1134 = vpack.i.b16 %v1133, %v1132
        %1136 = vrot.lane.b32.xlu0 %v920, 124
        %v1137 = vpop.permute.xlu0 %1136
        %1139 = vrot.lane.b32.xlu0 %v920, 120
        %v1140 = vpop.permute.xlu0 %1139
        %1142 = vrot.lane.b32.xlu0 %v920, 116
        %v1143 = vpop.permute.xlu0 %1142
        %1145 = vrot.lane.b32.xlu0 %v920, 112
        %v1146 = vpop.permute.xlu0 %1145
        %1148 = vrot.lane.b32.xlu0 %v920, 108
        %v1149 = vpop.permute.xlu0 %1148
        %1151 = vrot.lane.b32.xlu0 %v920, 104
        %v1152 = vpop.permute.xlu0 %1151
        %1154 = vrot.lane.b32.xlu0 %v920, 100
        %v1155 = vpop.permute.xlu0 %1154
        %v1157 = vcombine.low %v920, %v1146
        %v1159 = vunpack.c.l.s4 1983009808
        %v1160 = vunpack.c.0.s8 %v1159
        %v1161 = vlaneseq
        %v1162 = vshrl.u32 %v1161, 7
        %v1163 = vsub.s32 %v1160, %v1162
        %v1164 = vrot.slane %v1157, %v1163
        %v1165 = vcombine.low %v1140, %v1152
        %v1167 = vunpack.c.l.s4 1983009808
        %v1168 = vunpack.c.0.s8 %v1167
        %v1169 = vlaneseq
        %v1170 = vshrl.u32 %v1169, 7
        %v1171 = vsub.s32 %v1168, %v1170
        %v1172 = vrot.slane %v1165, %v1171
        %v1173 = vcombine.low %v1164, %v1172
        %v1174 = vcombine.high %v1164, %v1172
        %v1176 = vunpack.c.l.s4 1934713408
        %v1177 = vunpack.c.0.s8 %v1176
        %v1178 = vlaneseq
        %v1179 = vshrl.u32 %v1178, 7
        %v1180 = vsub.s32 %v1177, %v1179
        %v1181 = vrot.slane %v1173, %v1180
        %v1183 = vunpack.c.l.s4 1934713408
        %v1184 = vunpack.c.0.s8 %v1183
        %v1185 = vlaneseq
        %v1186 = vshrl.u32 %v1185, 7
        %v1187 = vsub.s32 %v1184, %v1186
        %v1188 = vrot.slane %v1174, %v1187
        %v1189 = vcombine.high %v1181, 0
        %v1190 = vcombine.high %v1188, 0
        %v1191 = vcombine.low %v1137, %v1149
        %v1193 = vunpack.c.l.s4 1983009808
        %v1194 = vunpack.c.0.s8 %v1193
        %v1195 = vlaneseq
        %v1196 = vshrl.u32 %v1195, 7
        %v1197 = vsub.s32 %v1194, %v1196
        %v1198 = vrot.slane %v1191, %v1197
        %v1199 = vcombine.low %v1143, %v1155
        %v1201 = vunpack.c.l.s4 1983009808
        %v1202 = vunpack.c.0.s8 %v1201
        %v1203 = vlaneseq
        %v1204 = vshrl.u32 %v1203, 7
        %v1205 = vsub.s32 %v1202, %v1204
        %v1206 = vrot.slane %v1199, %v1205
        %v1207 = vcombine.low %v1198, %v1206
        %v1208 = vcombine.high %v1198, %v1206
        %v1210 = vunpack.c.l.s4 1934713408
        %v1211 = vunpack.c.0.s8 %v1210
        %v1212 = vlaneseq
        %v1213 = vshrl.u32 %v1212, 7
        %v1214 = vsub.s32 %v1211, %v1213
        %v1215 = vrot.slane %v1207, %v1214
        %v1217 = vunpack.c.l.s4 1934713408
        %v1218 = vunpack.c.0.s8 %v1217
        %v1219 = vlaneseq
        %v1220 = vshrl.u32 %v1219, 7
        %v1221 = vsub.s32 %v1218, %v1220
        %v1222 = vrot.slane %v1208, %v1221
        %v1223 = vcombine.high %v1215, 0
        %v1224 = vcombine.high %v1222, 0
        %v1227 = vpack.i.b16 %v1215, %v1181
        %v1229 = vshrl.u32 %v1181, 16
        %v1230 = vshrl.u32 %v1215, 16
        %v1231 = vpack.i.b16 %v1230, %v1229
        %v1235 = vpack.i.b16 %v1223, %v1189
        %v1237 = vshrl.u32 %v1189, 16
        %v1238 = vshrl.u32 %v1223, 16
        %v1239 = vpack.i.b16 %v1238, %v1237
        %v1243 = vpack.i.b16 %v1222, %v1188
        %v1245 = vshrl.u32 %v1188, 16
        %v1246 = vshrl.u32 %v1222, 16
        %v1247 = vpack.i.b16 %v1246, %v1245
        %v1251 = vpack.i.b16 %v1224, %v1190
        %v1253 = vshrl.u32 %v1190, 16
        %v1254 = vshrl.u32 %v1224, 16
        %v1255 = vpack.i.b16 %v1254, %v1253
        %v1257 = vcombine.low %v1227, %v1243
        %v1259 = vunpack.c.l.s4 1983009808
        %v1260 = vunpack.c.0.s8 %v1259
        %v1261 = vlaneseq
        %v1262 = vshrl.u32 %v1261, 7
        %v1263 = vsub.s32 %v1260, %v1262
        %v1264 = vrot.slane %v1257, %v1263
        %v1265 = vcombine.low %v1235, %v1251
        %v1267 = vunpack.c.l.s4 1983009808
        %v1268 = vunpack.c.0.s8 %v1267
        %v1269 = vlaneseq
        %v1270 = vshrl.u32 %v1269, 7
        %v1271 = vsub.s32 %v1268, %v1270
        %v1272 = vrot.slane %v1265, %v1271
        %v1273 = vcombine.low %v1264, %v1272
        %v1274 = vcombine.high %v1264, %v1272
        %v1276 = vunpack.c.l.s4 1934713408
        %v1277 = vunpack.c.0.s8 %v1276
        %v1278 = vlaneseq
        %v1279 = vshrl.u32 %v1278, 7
        %v1280 = vsub.s32 %v1277, %v1279
        %v1281 = vrot.slane %v1273, %v1280
        %v1283 = vunpack.c.l.s4 1934713408
        %v1284 = vunpack.c.0.s8 %v1283
        %v1285 = vlaneseq
        %v1286 = vshrl.u32 %v1285, 7
        %v1287 = vsub.s32 %v1284, %v1286
        %v1288 = vrot.slane %v1274, %v1287
        %v1289 = vcombine.high %v1281, 0
        %v1290 = vcombine.high %v1288, 0
        %v1291 = vcombine.low %v1231, %v1247
        %v1293 = vunpack.c.l.s4 1983009808
        %v1294 = vunpack.c.0.s8 %v1293
        %v1295 = vlaneseq
        %v1296 = vshrl.u32 %v1295, 7
        %v1297 = vsub.s32 %v1294, %v1296
        %v1298 = vrot.slane %v1291, %v1297
        %v1299 = vcombine.low %v1239, %v1255
        %v1301 = vunpack.c.l.s4 1983009808
        %v1302 = vunpack.c.0.s8 %v1301
        %v1303 = vlaneseq
        %v1304 = vshrl.u32 %v1303, 7
        %v1305 = vsub.s32 %v1302, %v1304
        %v1306 = vrot.slane %v1299, %v1305
        %v1307 = vcombine.low %v1298, %v1306
        %v1308 = vcombine.high %v1298, %v1306
        %v1310 = vunpack.c.l.s4 1934713408
        %v1311 = vunpack.c.0.s8 %v1310
        %v1312 = vlaneseq
        %v1313 = vshrl.u32 %v1312, 7
        %v1314 = vsub.s32 %v1311, %v1313
        %v1315 = vrot.slane %v1307, %v1314
        %v1317 = vunpack.c.l.s4 1934713408
        %v1318 = vunpack.c.0.s8 %v1317
        %v1319 = vlaneseq
        %v1320 = vshrl.u32 %v1319, 7
        %v1321 = vsub.s32 %v1318, %v1320
        %v1322 = vrot.slane %v1308, %v1321
        %v1323 = vcombine.high %v1315, 0
        %v1324 = vcombine.high %v1322, 0
        %v1327 = vpack.i.b16 %v1315, %v1281
        %v1328 = vshrl.u32 %v1281, 16
        %v1329 = vshrl.u32 %v1315, 16
        %v1330 = vpack.i.b16 %v1329, %v1328
        %v1333 = vpack.i.b16 %v1323, %v1289
        %v1334 = vshrl.u32 %v1289, 16
        %v1335 = vshrl.u32 %v1323, 16
        %v1336 = vpack.i.b16 %v1335, %v1334
        %v1339 = vpack.i.b16 %v1322, %v1288
        %v1340 = vshrl.u32 %v1288, 16
        %v1341 = vshrl.u32 %v1322, 16
        %v1342 = vpack.i.b16 %v1341, %v1340
        %v1345 = vpack.i.b16 %v1324, %v1290
        %v1346 = vshrl.u32 %v1290, 16
        %v1347 = vshrl.u32 %v1324, 16
        %v1348 = vpack.i.b16 %v1347, %v1346
        %v1349 = vld [vmem:[#allocation2] sm:$0xf]
        %v1350 = vld [vmem:[#allocation2 + $0x4] sm:$0xf]
        %v1351 = vld [vmem:[#allocation2 + $0x8] sm:$0xf]
        %v1352 = vld [vmem:[#allocation2 + $0xc] sm:$0xf]
        %v1353 = vld [vmem:[#allocation2 + $0x10] sm:$0xf]
        %v1354 = vld [vmem:[#allocation2 + $0x14] sm:$0xf]
        %v1355 = vld [vmem:[#allocation2 + $0x18] sm:$0xf]
        %v1356 = vld [vmem:[#allocation2 + $0x1c] sm:$0xf]
        %vm1357 = vcmask 31744
        %v1359 = vsel %vm1357, %v1349, 0
        %v1362 = vsel %vm1357, %v1113, 0
        %1364 = vmatprep.subr.bf16.mxu0 0
        %1365 = vmatpush1.bf16.xpose.msra.mxu0 0
        %1366 = vmatprep.subr.bf16.mxu0 0
        %1367 = vmatpush1.bf16.xpose.msra.mxu0 0
        %1368 = vmatprep.subr.bf16.mxu0 0
        %1369 = vmatpush1.bf16.xpose.msra.mxu0 0
        %1370 = vmatprep.subr.bf16.mxu0 0
        %1371 = vmatpush1.bf16.xpose.msra.mxu0 0
        %1372 = vmatprep.subr.bf16.mxu0 0
        %1373 = vmatpush1.bf16.xpose.msra.mxu0 0
        %1374 = vmatprep.subr.bf16.mxu0 0
        %1375 = vmatpush1.bf16.xpose.msra.mxu0 0
        %1376 = vmatprep.subr.bf16.mxu0 0
        %1377 = vmatpush1.bf16.xpose.msra.mxu0 0
        %1378 = vmatprep.subr.bf16.mxu0 0
        %1379 = vmatpush1.bf16.xpose.msra.mxu0 %v1362
        %1380 = vmatprep.subr.bf16.mxu0 0
        %1381 = vmatpush2.bf16.xpose.msra.mxu0 0
        %1382 = vmatprep.subr.bf16.mxu0 0
        %1383 = vmatpush2.bf16.xpose.msra.mxu0 0
        %1384 = vmatprep.subr.bf16.mxu0 0
        %1385 = vmatpush2.bf16.xpose.msra.mxu0 0
        %1386 = vmatprep.subr.bf16.mxu0 0
        %1387 = vmatpush2.bf16.xpose.msra.mxu0 0
        %1388 = vmatprep.subr.bf16.mxu0 0
        %1389 = vmatpush2.bf16.xpose.msra.mxu0 0
        %1390 = vmatprep.subr.bf16.mxu0 0
        %1391 = vmatpush2.bf16.xpose.msra.mxu0 0
        %1392 = vmatprep.subr.bf16.mxu0 0
        %1393 = vmatpush2.bf16.xpose.msra.mxu0 0
        %1394 = vmatprep.subr.bf16.mxu0 0
        %1395 = vmatpush2.bf16.xpose.msra.mxu0 0
        %1396 = vmatprep.mubr.bf16.mxu0 0
        %1397 = vmatmul.mubr.bf16.gmra.mxu0 %v1359
        %v1398 = vpop.f32.mrf.mxu0
        %v1399 = vadd.f32 0.0, %v1398
        %v1400 = vpop.f32.mrf.mxu0
        %v1401 = vpop.f32.mrf.mxu0
        %v1402 = vpop.f32.mrf.mxu0
        %1403 = vdwg.mxu0
        %v1405 = vsel %vm1357, %v1350, 0
        %v1408 = vsel %vm1357, %v1116, 0
        %1410 = vmatprep.subr.bf16.mxu0 0
        %1411 = vmatpush1.bf16.xpose.msra.mxu0 0
        %1412 = vmatprep.subr.bf16.mxu0 0
        %1413 = vmatpush1.bf16.xpose.msra.mxu0 0
        %1414 = vmatprep.subr.bf16.mxu0 0
        %1415 = vmatpush1.bf16.xpose.msra.mxu0 0
        %1416 = vmatprep.subr.bf16.mxu0 0
        %1417 = vmatpush1.bf16.xpose.msra.mxu0 0
        %1418 = vmatprep.subr.bf16.mxu0 0
        %1419 = vmatpush1.bf16.xpose.msra.mxu0 0
        %1420 = vmatprep.subr.bf16.mxu0 0
        %1421 = vmatpush1.bf16.xpose.msra.mxu0 0
        %1422 = vmatprep.subr.bf16.mxu0 0
        %1423 = vmatpush1.bf16.xpose.msra.mxu0 0
        %1424 = vmatprep.subr.bf16.mxu0 0
        %1425 = vmatpush1.bf16.xpose.msra.mxu0 %v1408
        %1426 = vmatprep.subr.bf16.mxu0 0
        %1427 = vmatpush2.bf16.xpose.msra.mxu0 0
        %1428 = vmatprep.subr.bf16.mxu0 0
        %1429 = vmatpush2.bf16.xpose.msra.mxu0 0
        %1430 = vmatprep.subr.bf16.mxu0 0
        %1431 = vmatpush2.bf16.xpose.msra.mxu0 0
        %1432 = vmatprep.subr.bf16.mxu0 0
        %1433 = vmatpush2.bf16.xpose.msra.mxu0 0
        %1434 = vmatprep.subr.bf16.mxu0 0
        %1435 = vmatpush2.bf16.xpose.msra.mxu0 0
        %1436 = vmatprep.subr.bf16.mxu0 0
        %1437 = vmatpush2.bf16.xpose.msra.mxu0 0
        %1438 = vmatprep.subr.bf16.mxu0 0
        %1439 = vmatpush2.bf16.xpose.msra.mxu0 0
        %1440 = vmatprep.subr.bf16.mxu0 0
        %1441 = vmatpush2.bf16.xpose.msra.mxu0 0
        %1442 = vmatprep.mubr.bf16.mxu0 0
        %1443 = vmatmul.mubr.bf16.gmra.mxu0 %v1405
        %v1444 = vpop.f32.mrf.mxu0
        %v1445 = vadd.f32 0.0, %v1444
        %v1446 = vpop.f32.mrf.mxu0
        %v1447 = vpop.f32.mrf.mxu0
        %v1448 = vpop.f32.mrf.mxu0
        %1449 = vdwg.mxu0
        %v1451 = vsel %vm1357, %v1351, 0
        %v1454 = vsel %vm1357, %v1119, 0
        %1456 = vmatprep.subr.bf16.mxu0 0
        %1457 = vmatpush1.bf16.xpose.msra.mxu0 0
        %1458 = vmatprep.subr.bf16.mxu0 0
        %1459 = vmatpush1.bf16.xpose.msra.mxu0 0
        %1460 = vmatprep.subr.bf16.mxu0 0
        %1461 = vmatpush1.bf16.xpose.msra.mxu0 0
        %1462 = vmatprep.subr.bf16.mxu0 0
        %1463 = vmatpush1.bf16.xpose.msra.mxu0 0
        %1464 = vmatprep.subr.bf16.mxu0 0
        %1465 = vmatpush1.bf16.xpose.msra.mxu0 0
        %1466 = vmatprep.subr.bf16.mxu0 0
        %1467 = vmatpush1.bf16.xpose.msra.mxu0 0
        %1468 = vmatprep.subr.bf16.mxu0 0
        %1469 = vmatpush1.bf16.xpose.msra.mxu0 0
        %1470 = vmatprep.subr.bf16.mxu0 0
        %1471 = vmatpush1.bf16.xpose.msra.mxu0 %v1454
        %1472 = vmatprep.subr.bf16.mxu0 0
        %1473 = vmatpush2.bf16.xpose.msra.mxu0 0
        %1474 = vmatprep.subr.bf16.mxu0 0
        %1475 = vmatpush2.bf16.xpose.msra.mxu0 0
        %1476 = vmatprep.subr.bf16.mxu0 0
        %1477 = vmatpush2.bf16.xpose.msra.mxu0 0
        %1478 = vmatprep.subr.bf16.mxu0 0
        %1479 = vmatpush2.bf16.xpose.msra.mxu0 0
        %1480 = vmatprep.subr.bf16.mxu0 0
        %1481 = vmatpush2.bf16.xpose.msra.mxu0 0
        %1482 = vmatprep.subr.bf16.mxu0 0
        %1483 = vmatpush2.bf16.xpose.msra.mxu0 0
        %1484 = vmatprep.subr.bf16.mxu0 0
        %1485 = vmatpush2.bf16.xpose.msra.mxu0 0
        %1486 = vmatprep.subr.bf16.mxu0 0
        %1487 = vmatpush2.bf16.xpose.msra.mxu0 0
        %1488 = vmatprep.mubr.bf16.mxu0 0
        %1489 = vmatmul.mubr.bf16.gmra.mxu0 %v1451
        %v1490 = vpop.f32.mrf.mxu0
        %v1491 = vadd.f32 0.0, %v1490
        %v1492 = vpop.f32.mrf.mxu0
        %v1493 = vpop.f32.mrf.mxu0
        %v1494 = vpop.f32.mrf.mxu0
        %1495 = vdwg.mxu0
        %v1497 = vsel %vm1357, %v1352, 0
        %v1500 = vsel %vm1357, %v1122, 0
        %1502 = vmatprep.subr.bf16.mxu0 0
        %1503 = vmatpush1.bf16.xpose.msra.mxu0 0
        %1504 = vmatprep.subr.bf16.mxu0 0
        %1505 = vmatpush1.bf16.xpose.msra.mxu0 0
        %1506 = vmatprep.subr.bf16.mxu0 0
        %1507 = vmatpush1.bf16.xpose.msra.mxu0 0
        %1508 = vmatprep.subr.bf16.mxu0 0
        %1509 = vmatpush1.bf16.xpose.msra.mxu0 0
        %1510 = vmatprep.subr.bf16.mxu0 0
        %1511 = vmatpush1.bf16.xpose.msra.mxu0 0
        %1512 = vmatprep.subr.bf16.mxu0 0
        %1513 = vmatpush1.bf16.xpose.msra.mxu0 0
        %1514 = vmatprep.subr.bf16.mxu0 0
        %1515 = vmatpush1.bf16.xpose.msra.mxu0 0
        %1516 = vmatprep.subr.bf16.mxu0 0
        %1517 = vmatpush1.bf16.xpose.msra.mxu0 %v1500
        %1518 = vmatprep.subr.bf16.mxu0 0
        %1519 = vmatpush2.bf16.xpose.msra.mxu0 0
        %1520 = vmatprep.subr.bf16.mxu0 0
        %1521 = vmatpush2.bf16.xpose.msra.mxu0 0
        %1522 = vmatprep.subr.bf16.mxu0 0
        %1523 = vmatpush2.bf16.xpose.msra.mxu0 0
        %1524 = vmatprep.subr.bf16.mxu0 0
        %1525 = vmatpush2.bf16.xpose.msra.mxu0 0
        %1526 = vmatprep.subr.bf16.mxu0 0
        %1527 = vmatpush2.bf16.xpose.msra.mxu0 0
        %1528 = vmatprep.subr.bf16.mxu0 0
        %1529 = vmatpush2.bf16.xpose.msra.mxu0 0
        %1530 = vmatprep.subr.bf16.mxu0 0
        %1531 = vmatpush2.bf16.xpose.msra.mxu0 0
        %1532 = vmatprep.subr.bf16.mxu0 0
        %1533 = vmatpush2.bf16.xpose.msra.mxu0 0
        %1534 = vmatprep.mubr.bf16.mxu0 0
        %1535 = vmatmul.mubr.bf16.gmra.mxu0 %v1497
        %v1536 = vpop.f32.mrf.mxu0
        %v1537 = vadd.f32 0.0, %v1536
        %v1538 = vpop.f32.mrf.mxu0
        %v1539 = vpop.f32.mrf.mxu0
        %v1540 = vpop.f32.mrf.mxu0
        %1541 = vdwg.mxu0
        %v1543 = vsel %vm1357, %v1353, 0
        %v1546 = vsel %vm1357, %v1125, 0
        %1548 = vmatprep.subr.bf16.mxu0 0
        %1549 = vmatpush1.bf16.xpose.msra.mxu0 0
        %1550 = vmatprep.subr.bf16.mxu0 0
        %1551 = vmatpush1.bf16.xpose.msra.mxu0 0
        %1552 = vmatprep.subr.bf16.mxu0 0
        %1553 = vmatpush1.bf16.xpose.msra.mxu0 0
        %1554 = vmatprep.subr.bf16.mxu0 0
        %1555 = vmatpush1.bf16.xpose.msra.mxu0 0
        %1556 = vmatprep.subr.bf16.mxu0 0
        %1557 = vmatpush1.bf16.xpose.msra.mxu0 0
        %1558 = vmatprep.subr.bf16.mxu0 0
        %1559 = vmatpush1.bf16.xpose.msra.mxu0 0
        %1560 = vmatprep.subr.bf16.mxu0 0
        %1561 = vmatpush1.bf16.xpose.msra.mxu0 0
        %1562 = vmatprep.subr.bf16.mxu0 0
        %1563 = vmatpush1.bf16.xpose.msra.mxu0 %v1546
        %1564 = vmatprep.subr.bf16.mxu0 0
        %1565 = vmatpush2.bf16.xpose.msra.mxu0 0
        %1566 = vmatprep.subr.bf16.mxu0 0
        %1567 = vmatpush2.bf16.xpose.msra.mxu0 0
        %1568 = vmatprep.subr.bf16.mxu0 0
        %1569 = vmatpush2.bf16.xpose.msra.mxu0 0
        %1570 = vmatprep.subr.bf16.mxu0 0
        %1571 = vmatpush2.bf16.xpose.msra.mxu0 0
        %1572 = vmatprep.subr.bf16.mxu0 0
        %1573 = vmatpush2.bf16.xpose.msra.mxu0 0
        %1574 = vmatprep.subr.bf16.mxu0 0
        %1575 = vmatpush2.bf16.xpose.msra.mxu0 0
        %1576 = vmatprep.subr.bf16.mxu0 0
        %1577 = vmatpush2.bf16.xpose.msra.mxu0 0
        %1578 = vmatprep.subr.bf16.mxu0 0
        %1579 = vmatpush2.bf16.xpose.msra.mxu0 0
        %1580 = vmatprep.mubr.bf16.mxu0 0
        %1581 = vmatmul.mubr.bf16.gmra.mxu0 %v1543
        %v1582 = vpop.f32.mrf.mxu0
        %v1583 = vadd.f32 0.0, %v1582
        %v1584 = vpop.f32.mrf.mxu0
        %v1585 = vpop.f32.mrf.mxu0
        %v1586 = vpop.f32.mrf.mxu0
        %1587 = vdwg.mxu0
        %v1589 = vsel %vm1357, %v1354, 0
        %v1592 = vsel %vm1357, %v1128, 0
        %1594 = vmatprep.subr.bf16.mxu0 0
        %1595 = vmatpush1.bf16.xpose.msra.mxu0 0
        %1596 = vmatprep.subr.bf16.mxu0 0
        %1597 = vmatpush1.bf16.xpose.msra.mxu0 0
        %1598 = vmatprep.subr.bf16.mxu0 0
        %1599 = vmatpush1.bf16.xpose.msra.mxu0 0
        %1600 = vmatprep.subr.bf16.mxu0 0
        %1601 = vmatpush1.bf16.xpose.msra.mxu0 0
        %1602 = vmatprep.subr.bf16.mxu0 0
        %1603 = vmatpush1.bf16.xpose.msra.mxu0 0
        %1604 = vmatprep.subr.bf16.mxu0 0
        %1605 = vmatpush1.bf16.xpose.msra.mxu0 0
        %1606 = vmatprep.subr.bf16.mxu0 0
        %1607 = vmatpush1.bf16.xpose.msra.mxu0 0
        %1608 = vmatprep.subr.bf16.mxu0 0
        %1609 = vmatpush1.bf16.xpose.msra.mxu0 %v1592
        %1610 = vmatprep.subr.bf16.mxu0 0
        %1611 = vmatpush2.bf16.xpose.msra.mxu0 0
        %1612 = vmatprep.subr.bf16.mxu0 0
        %1613 = vmatpush2.bf16.xpose.msra.mxu0 0
        %1614 = vmatprep.subr.bf16.mxu0 0
        %1615 = vmatpush2.bf16.xpose.msra.mxu0 0
        %1616 = vmatprep.subr.bf16.mxu0 0
        %1617 = vmatpush2.bf16.xpose.msra.mxu0 0
        %1618 = vmatprep.subr.bf16.mxu0 0
        %1619 = vmatpush2.bf16.xpose.msra.mxu0 0
        %1620 = vmatprep.subr.bf16.mxu0 0
        %1621 = vmatpush2.bf16.xpose.msra.mxu0 0
        %1622 = vmatprep.subr.bf16.mxu0 0
        %1623 = vmatpush2.bf16.xpose.msra.mxu0 0
        %1624 = vmatprep.subr.bf16.mxu0 0
        %1625 = vmatpush2.bf16.xpose.msra.mxu0 0
        %1626 = vmatprep.mubr.bf16.mxu0 0
        %1627 = vmatmul.mubr.bf16.gmra.mxu0 %v1589
        %v1628 = vpop.f32.mrf.mxu0
        %v1629 = vadd.f32 0.0, %v1628
        %v1630 = vpop.f32.mrf.mxu0
        %v1631 = vpop.f32.mrf.mxu0
        %v1632 = vpop.f32.mrf.mxu0
        %1633 = vdwg.mxu0
        %v1635 = vsel %vm1357, %v1355, 0
        %v1638 = vsel %vm1357, %v1131, 0
        %1640 = vmatprep.subr.bf16.mxu0 0
        %1641 = vmatpush1.bf16.xpose.msra.mxu0 0
        %1642 = vmatprep.subr.bf16.mxu0 0
        %1643 = vmatpush1.bf16.xpose.msra.mxu0 0
        %1644 = vmatprep.subr.bf16.mxu0 0
        %1645 = vmatpush1.bf16.xpose.msra.mxu0 0
        %1646 = vmatprep.subr.bf16.mxu0 0
        %1647 = vmatpush1.bf16.xpose.msra.mxu0 0
        %1648 = vmatprep.subr.bf16.mxu0 0
        %1649 = vmatpush1.bf16.xpose.msra.mxu0 0
        %1650 = vmatprep.subr.bf16.mxu0 0
        %1651 = vmatpush1.bf16.xpose.msra.mxu0 0
        %1652 = vmatprep.subr.bf16.mxu0 0
        %1653 = vmatpush1.bf16.xpose.msra.mxu0 0
        %1654 = vmatprep.subr.bf16.mxu0 0
        %1655 = vmatpush1.bf16.xpose.msra.mxu0 %v1638
        %1656 = vmatprep.subr.bf16.mxu0 0
        %1657 = vmatpush2.bf16.xpose.msra.mxu0 0
        %1658 = vmatprep.subr.bf16.mxu0 0
        %1659 = vmatpush2.bf16.xpose.msra.mxu0 0
        %1660 = vmatprep.subr.bf16.mxu0 0
        %1661 = vmatpush2.bf16.xpose.msra.mxu0 0
        %1662 = vmatprep.subr.bf16.mxu0 0
        %1663 = vmatpush2.bf16.xpose.msra.mxu0 0
        %1664 = vmatprep.subr.bf16.mxu0 0
        %1665 = vmatpush2.bf16.xpose.msra.mxu0 0
        %1666 = vmatprep.subr.bf16.mxu0 0
        %1667 = vmatpush2.bf16.xpose.msra.mxu0 0
        %1668 = vmatprep.subr.bf16.mxu0 0
        %1669 = vmatpush2.bf16.xpose.msra.mxu0 0
        %1670 = vmatprep.subr.bf16.mxu0 0
        %1671 = vmatpush2.bf16.xpose.msra.mxu0 0
        %1672 = vmatprep.mubr.bf16.mxu0 0
        %1673 = vmatmul.mubr.bf16.gmra.mxu0 %v1635
        %v1674 = vpop.f32.mrf.mxu0
        %v1675 = vadd.f32 0.0, %v1674
        %v1676 = vpop.f32.mrf.mxu0
        %v1677 = vpop.f32.mrf.mxu0
        %v1678 = vpop.f32.mrf.mxu0
        %1679 = vdwg.mxu0
        %v1681 = vsel %vm1357, %v1356, 0
        %v1684 = vsel %vm1357, %v1134, 0
        %1686 = vmatprep.subr.bf16.mxu0 0
        %1687 = vmatpush1.bf16.xpose.msra.mxu0 0
        %1688 = vmatprep.subr.bf16.mxu0 0
        %1689 = vmatpush1.bf16.xpose.msra.mxu0 0
        %1690 = vmatprep.subr.bf16.mxu0 0
        %1691 = vmatpush1.bf16.xpose.msra.mxu0 0
        %1692 = vmatprep.subr.bf16.mxu0 0
        %1693 = vmatpush1.bf16.xpose.msra.mxu0 0
        %1694 = vmatprep.subr.bf16.mxu0 0
        %1695 = vmatpush1.bf16.xpose.msra.mxu0 0
        %1696 = vmatprep.subr.bf16.mxu0 0
        %1697 = vmatpush1.bf16.xpose.msra.mxu0 0
        %1698 = vmatprep.subr.bf16.mxu0 0
        %1699 = vmatpush1.bf16.xpose.msra.mxu0 0
        %1700 = vmatprep.subr.bf16.mxu0 0
        %1701 = vmatpush1.bf16.xpose.msra.mxu0 %v1684
        %1702 = vmatprep.subr.bf16.mxu0 0
        %1703 = vmatpush2.bf16.xpose.msra.mxu0 0
        %1704 = vmatprep.subr.bf16.mxu0 0
        %1705 = vmatpush2.bf16.xpose.msra.mxu0 0
        %1706 = vmatprep.subr.bf16.mxu0 0
        %1707 = vmatpush2.bf16.xpose.msra.mxu0 0
        %1708 = vmatprep.subr.bf16.mxu0 0
        %1709 = vmatpush2.bf16.xpose.msra.mxu0 0
        %1710 = vmatprep.subr.bf16.mxu0 0
        %1711 = vmatpush2.bf16.xpose.msra.mxu0 0
        %1712 = vmatprep.subr.bf16.mxu0 0
        %1713 = vmatpush2.bf16.xpose.msra.mxu0 0
        %1714 = vmatprep.subr.bf16.mxu0 0
        %1715 = vmatpush2.bf16.xpose.msra.mxu0 0
        %1716 = vmatprep.subr.bf16.mxu0 0
        %1717 = vmatpush2.bf16.xpose.msra.mxu0 0
        %1718 = vmatprep.mubr.bf16.mxu0 0
        %1719 = vmatmul.mubr.bf16.gmra.mxu0 %v1681
        %v1720 = vpop.f32.mrf.mxu0
        %v1721 = vadd.f32 0.0, %v1720
        %v1722 = vpop.f32.mrf.mxu0
        %v1723 = vpop.f32.mrf.mxu0
        %v1724 = vpop.f32.mrf.mxu0
        %1725 = vdwg.mxu0
        %v1726 = vld [vmem:[#allocation3] sm:$0xff]
        %v1727 = vld [vmem:[#allocation3 + $0x8] sm:$0xff]
        %v1728 = vld [vmem:[#allocation3 + $0x10] sm:$0xff]
        %v1729 = vld [vmem:[#allocation3 + $0x18] sm:$0xff]
        %v1730 = vld [vmem:[#allocation3 + $0x20] sm:$0xff]
        %v1731 = vld [vmem:[#allocation3 + $0x28] sm:$0xff]
        %v1732 = vld [vmem:[#allocation3 + $0x30] sm:$0xff]
        %v1733 = vld [vmem:[#allocation3 + $0x38] sm:$0xff]
        %vm1734 = vcmask 64512
        %v1735 = vsel %vm1734, %v1399, -inf
        %1736 = vmax.xlane.f32.xlu0 %v1735
        %v1737 = vpop.xlane.xlu0 %1736
        %v1738 = vsel %vm1734, %v1445, -inf
        %1739 = vmax.xlane.f32.xlu0 %v1738
        %v1740 = vpop.xlane.xlu0 %1739
        %v1741 = vsel %vm1734, %v1491, -inf
        %1742 = vmax.xlane.f32.xlu0 %v1741
        %v1743 = vpop.xlane.xlu0 %1742
        %v1744 = vsel %vm1734, %v1537, -inf
        %1745 = vmax.xlane.f32.xlu0 %v1744
        %v1746 = vpop.xlane.xlu0 %1745
        %v1747 = vsel %vm1734, %v1583, -inf
        %1748 = vmax.xlane.f32.xlu0 %v1747
        %v1749 = vpop.xlane.xlu0 %1748
        %v1750 = vsel %vm1734, %v1629, -inf
        %1751 = vmax.xlane.f32.xlu0 %v1750
        %v1752 = vpop.xlane.xlu0 %1751
        %v1753 = vsel %vm1734, %v1675, -inf
        %1754 = vmax.xlane.f32.xlu0 %v1753
        %v1755 = vpop.xlane.xlu0 %1754
        %v1756 = vsel %vm1734, %v1721, -inf
        %1757 = vmax.xlane.f32.xlu0 %v1756
        %v1758 = vpop.xlane.xlu0 %1757
        %v1759 = vmax.f32 %v1726, %v1737
        %v1760 = vmax.f32 %v1727, %v1740
        %v1761 = vmax.f32 %v1728, %v1743
        %v1762 = vmax.f32 %v1729, %v1746
        %v1763 = vmax.f32 %v1730, %v1749
        %v1764 = vmax.f32 %v1731, %v1752
        %v1765 = vmax.f32 %v1732, %v1755
        %v1766 = vmax.f32 %v1733, %v1758
        %v1767 = vsub.f32 %v1726, %v1759
        %v1768 = vsub.f32 %v1727, %v1760
        %v1769 = vsub.f32 %v1728, %v1761
        %v1770 = vsub.f32 %v1729, %v1762
        %v1771 = vsub.f32 %v1730, %v1763
        %v1772 = vsub.f32 %v1731, %v1764
        %v1773 = vsub.f32 %v1732, %v1765
        %v1774 = vsub.f32 %v1733, %v1766
        %v1775 = vmul.f32 %v1767, 1.442695
        %v1776 = vpow.pop %v1775
        %v1777 = vmul.f32 %v1768, 1.442695
        %v1778 = vpow.pop %v1777
        %v1779 = vmul.f32 %v1769, 1.442695
        %v1780 = vpow.pop %v1779
        %v1781 = vmul.f32 %v1770, 1.442695
        %v1782 = vpow.pop %v1781
        %v1783 = vmul.f32 %v1771, 1.442695
        %v1784 = vpow.pop %v1783
        %v1785 = vmul.f32 %v1772, 1.442695
        %v1786 = vpow.pop %v1785
        %v1787 = vmul.f32 %v1773, 1.442695
        %v1788 = vpow.pop %v1787
        %v1789 = vmul.f32 %v1774, 1.442695
        %v1790 = vpow.pop %v1789
        %1792 = vset.pattern.permute.xlu0 0
        %1793 = vperm.xlu0 %1792, %v1759
        %v1794 = vpop.permute.xlu0 %1793
        %1797 = vset.pattern.permute.xlu0 0
        %1798 = vperm.xlu0 %1797, %v1760
        %v1799 = vpop.permute.xlu0 %1798
        %1802 = vset.pattern.permute.xlu0 0
        %1803 = vperm.xlu0 %1802, %v1761
        %v1804 = vpop.permute.xlu0 %1803
        %1807 = vset.pattern.permute.xlu0 0
        %1808 = vperm.xlu0 %1807, %v1762
        %v1809 = vpop.permute.xlu0 %1808
        %1812 = vset.pattern.permute.xlu0 0
        %1813 = vperm.xlu0 %1812, %v1763
        %v1814 = vpop.permute.xlu0 %1813
        %1817 = vset.pattern.permute.xlu0 0
        %1818 = vperm.xlu0 %1817, %v1764
        %v1819 = vpop.permute.xlu0 %1818
        %1822 = vset.pattern.permute.xlu0 0
        %1823 = vperm.xlu0 %1822, %v1765
        %v1824 = vpop.permute.xlu0 %1823
        %1827 = vset.pattern.permute.xlu0 0
        %1828 = vperm.xlu0 %1827, %v1766
        %v1829 = vpop.permute.xlu0 %1828
        %v1831 = vsub.f32 %v1399, %v1794
        %v1832 = vsub.f32 %v1445, %v1799
        %v1833 = vsub.f32 %v1491, %v1804
        %v1834 = vsub.f32 %v1537, %v1809
        %v1835 = vsub.f32 %v1583, %v1814
        %v1836 = vsub.f32 %v1629, %v1819
        %v1837 = vsub.f32 %v1675, %v1824
        %v1838 = vsub.f32 %v1721, %v1829
        %v1839 = vmul.f32 %v1831, 1.442695
        %v1840 = vpow.pop %v1839
        %v1841 = vmul.f32 %v1832, 1.442695
        %v1842 = vpow.pop %v1841
        %v1843 = vmul.f32 %v1833, 1.442695
        %v1844 = vpow.pop %v1843
        %v1845 = vmul.f32 %v1834, 1.442695
        %v1846 = vpow.pop %v1845
        %v1847 = vmul.f32 %v1835, 1.442695
        %v1848 = vpow.pop %v1847
        %v1849 = vmul.f32 %v1836, 1.442695
        %v1850 = vpow.pop %v1849
        %v1851 = vmul.f32 %v1837, 1.442695
        %v1852 = vpow.pop %v1851
        %v1853 = vmul.f32 %v1838, 1.442695
        %v1854 = vpow.pop %v1853
        %v1855 = vld [vmem:[#allocation4] sm:$0xff]
        %v1856 = vld [vmem:[#allocation4 + $0x8] sm:$0xff]
        %v1857 = vld [vmem:[#allocation4 + $0x10] sm:$0xff]
        %v1858 = vld [vmem:[#allocation4 + $0x18] sm:$0xff]
        %v1859 = vld [vmem:[#allocation4 + $0x20] sm:$0xff]
        %v1860 = vld [vmem:[#allocation4 + $0x28] sm:$0xff]
        %v1861 = vld [vmem:[#allocation4 + $0x30] sm:$0xff]
        %v1862 = vld [vmem:[#allocation4 + $0x38] sm:$0xff]
        %v1863 = vmul.f32 %v1776, %v1855
        %v1864 = vmul.f32 %v1778, %v1856
        %v1865 = vmul.f32 %v1780, %v1857
        %v1866 = vmul.f32 %v1782, %v1858
        %v1867 = vmul.f32 %v1784, %v1859
        %v1868 = vmul.f32 %v1786, %v1860
        %v1869 = vmul.f32 %v1788, %v1861
        %v1870 = vmul.f32 %v1790, %v1862
        %v1871 = vsel %vm1734, %v1840, 0.0
        %1872 = vadd.xlane.f32.xlu0 %v1871
        %v1873 = vpop.xlane.xlu0 %1872
        %v1874 = vsel %vm1734, %v1842, 0.0
        %1875 = vadd.xlane.f32.xlu0 %v1874
        %v1876 = vpop.xlane.xlu0 %1875
        %v1877 = vsel %vm1734, %v1844, 0.0
        %1878 = vadd.xlane.f32.xlu0 %v1877
        %v1879 = vpop.xlane.xlu0 %1878
        %v1880 = vsel %vm1734, %v1846, 0.0
        %1881 = vadd.xlane.f32.xlu0 %v1880
        %v1882 = vpop.xlane.xlu0 %1881
        %v1883 = vsel %vm1734, %v1848, 0.0
        %1884 = vadd.xlane.f32.xlu0 %v1883
        %v1885 = vpop.xlane.xlu0 %1884
        %v1886 = vsel %vm1734, %v1850, 0.0
        %1887 = vadd.xlane.f32.xlu0 %v1886
        %v1888 = vpop.xlane.xlu0 %1887
        %v1889 = vsel %vm1734, %v1852, 0.0
        %1890 = vadd.xlane.f32.xlu0 %v1889
        %v1891 = vpop.xlane.xlu0 %1890
        %v1892 = vsel %vm1734, %v1854, 0.0
        %1893 = vadd.xlane.f32.xlu0 %v1892
        %v1894 = vpop.xlane.xlu0 %1893
        %v1895 = vadd.f32 %v1863, %v1873
        %v1896 = vadd.f32 %v1864, %v1876
        %v1897 = vadd.f32 %v1865, %v1879
        %v1898 = vadd.f32 %v1866, %v1882
        %v1899 = vadd.f32 %v1867, %v1885
        %v1900 = vadd.f32 %v1868, %v1888
        %v1901 = vadd.f32 %v1869, %v1891
        %v1902 = vadd.f32 %v1870, %v1894
        %vm1903 = vcmask 7168
        %1904 = vst.msk [vmem:[#allocation4] sm:$0xff] %vm1903, %v1895
        %1905 = vst.msk [vmem:[#allocation4 + $0x8] sm:$0xff] %vm1903, %v1896
        %1906 = vst.msk [vmem:[#allocation4 + $0x10] sm:$0xff] %vm1903, %v1897
        %1907 = vst.msk [vmem:[#allocation4 + $0x18] sm:$0xff] %vm1903, %v1898
        %1908 = vst.msk [vmem:[#allocation4 + $0x20] sm:$0xff] %vm1903, %v1899
        %1909 = vst.msk [vmem:[#allocation4 + $0x28] sm:$0xff] %vm1903, %v1900
        %1910 = vst.msk [vmem:[#allocation4 + $0x30] sm:$0xff] %vm1903, %v1901
        %1911 = vst.msk [vmem:[#allocation4 + $0x38] sm:$0xff] %vm1903, %v1902
        %v1912 = vld [vmem:[#allocation5] sm:$0xff]
        %v1913 = vld [vmem:[#allocation5 + $0x8] sm:$0xff]
        %v1914 = vld [vmem:[#allocation5 + $0x10] sm:$0xff]
        %v1915 = vld [vmem:[#allocation5 + $0x18] sm:$0xff]
        %v1916 = vld [vmem:[#allocation5 + $0x20] sm:$0xff]
        %v1917 = vld [vmem:[#allocation5 + $0x28] sm:$0xff]
        %v1918 = vld [vmem:[#allocation5 + $0x30] sm:$0xff]
        %v1919 = vld [vmem:[#allocation5 + $0x38] sm:$0xff]
        %1921 = vset.pattern.permute.xlu0 0
        %1922 = vperm.xlu0 %1921, %v1776
        %v1923 = vpop.permute.xlu0 %1922
        %1926 = vset.pattern.permute.xlu0 0
        %1927 = vperm.xlu0 %1926, %v1778
        %v1928 = vpop.permute.xlu0 %1927
        %1931 = vset.pattern.permute.xlu0 0
        %1932 = vperm.xlu0 %1931, %v1780
        %v1933 = vpop.permute.xlu0 %1932
        %1936 = vset.pattern.permute.xlu0 0
        %1937 = vperm.xlu0 %1936, %v1782
        %v1938 = vpop.permute.xlu0 %1937
        %1941 = vset.pattern.permute.xlu0 0
        %1942 = vperm.xlu0 %1941, %v1784
        %v1943 = vpop.permute.xlu0 %1942
        %1946 = vset.pattern.permute.xlu0 0
        %1947 = vperm.xlu0 %1946, %v1786
        %v1948 = vpop.permute.xlu0 %1947
        %1951 = vset.pattern.permute.xlu0 0
        %1952 = vperm.xlu0 %1951, %v1788
        %v1953 = vpop.permute.xlu0 %1952
        %1956 = vset.pattern.permute.xlu0 0
        %1957 = vperm.xlu0 %1956, %v1790
        %v1958 = vpop.permute.xlu0 %1957
        %v1960 = vmul.f32 %v1923, %v1912
        %v1961 = vmul.f32 %v1928, %v1913
        %v1962 = vmul.f32 %v1933, %v1914
        %v1963 = vmul.f32 %v1938, %v1915
        %v1964 = vmul.f32 %v1943, %v1916
        %v1965 = vmul.f32 %v1948, %v1917
        %v1966 = vmul.f32 %v1953, %v1918
        %v1967 = vmul.f32 %v1958, %v1919
        %v1968 = vpack.c.bf16 %v1840, %v1840
        %v1969 = vpack.c.bf16 %v1842, %v1842
        %v1970 = vpack.c.bf16 %v1844, %v1844
        %v1971 = vpack.c.bf16 %v1846, %v1846
        %v1972 = vpack.c.bf16 %v1848, %v1848
        %v1973 = vpack.c.bf16 %v1850, %v1850
        %v1974 = vpack.c.bf16 %v1852, %v1852
        %v1975 = vpack.c.bf16 %v1854, %v1854
        %v1977 = vsel %vm1734, %v1968, 0
        %vm1979 = vcmask 1043456
        %v1981 = vsel %vm1979, %v1327, 0
        %1983 = vmatprep.subr.bf16.mxu0 0
        %1984 = vmatpush1.bf16.msra.mxu0 0
        %1985 = vmatprep.subr.bf16.mxu0 0
        %1986 = vmatpush1.bf16.msra.mxu0 0
        %1987 = vmatprep.subr.bf16.mxu0 0
        %1988 = vmatpush1.bf16.msra.mxu0 0
        %1989 = vmatprep.subr.bf16.mxu0 0
        %1990 = vmatpush1.bf16.msra.mxu0 0
        %1991 = vmatprep.subr.bf16.mxu0 0
        %1992 = vmatpush1.bf16.msra.mxu0 0
        %1993 = vmatprep.subr.bf16.mxu0 0
        %1994 = vmatpush1.bf16.msra.mxu0 0
        %1995 = vmatprep.subr.bf16.mxu0 0
        %1996 = vmatpush1.bf16.msra.mxu0 0
        %1997 = vmatprep.subr.bf16.mxu0 0
        %1998 = vmatpush1.bf16.msra.mxu0 %v1981
        %1999 = vmatprep.subr.bf16.mxu0 0
        %2000 = vmatpush2.bf16.msra.mxu0 0
        %2001 = vmatprep.subr.bf16.mxu0 0
        %2002 = vmatpush2.bf16.msra.mxu0 0
        %2003 = vmatprep.subr.bf16.mxu0 0
        %2004 = vmatpush2.bf16.msra.mxu0 0
        %2005 = vmatprep.subr.bf16.mxu0 0
        %2006 = vmatpush2.bf16.msra.mxu0 0
        %2007 = vmatprep.subr.bf16.mxu0 0
        %2008 = vmatpush2.bf16.msra.mxu0 0
        %2009 = vmatprep.subr.bf16.mxu0 0
        %2010 = vmatpush2.bf16.msra.mxu0 0
        %2011 = vmatprep.subr.bf16.mxu0 0
        %2012 = vmatpush2.bf16.msra.mxu0 0
        %2013 = vmatprep.subr.bf16.mxu0 0
        %2014 = vmatpush2.bf16.msra.mxu0 0
        %2015 = vmatprep.mubr.bf16.mxu0 0
        %2016 = vmatmul.mubr.bf16.gmra.mxu0 %v1977
        %v2017 = vpop.f32.mrf.mxu0
        %v2018 = vadd.f32 0.0, %v2017
        %v2019 = vpop.f32.mrf.mxu0
        %v2020 = vpop.f32.mrf.mxu0
        %v2021 = vpop.f32.mrf.mxu0
        %2022 = vdwg.mxu0
        %v2024 = vsel %vm1734, %v1969, 0
        %v2027 = vsel %vm1979, %v1330, 0
        %2029 = vmatprep.subr.bf16.mxu0 0
        %2030 = vmatpush1.bf16.msra.mxu0 0
        %2031 = vmatprep.subr.bf16.mxu0 0
        %2032 = vmatpush1.bf16.msra.mxu0 0
        %2033 = vmatprep.subr.bf16.mxu0 0
        %2034 = vmatpush1.bf16.msra.mxu0 0
        %2035 = vmatprep.subr.bf16.mxu0 0
        %2036 = vmatpush1.bf16.msra.mxu0 0
        %2037 = vmatprep.subr.bf16.mxu0 0
        %2038 = vmatpush1.bf16.msra.mxu0 0
        %2039 = vmatprep.subr.bf16.mxu0 0
        %2040 = vmatpush1.bf16.msra.mxu0 0
        %2041 = vmatprep.subr.bf16.mxu0 0
        %2042 = vmatpush1.bf16.msra.mxu0 0
        %2043 = vmatprep.subr.bf16.mxu0 0
        %2044 = vmatpush1.bf16.msra.mxu0 %v2027
        %2045 = vmatprep.subr.bf16.mxu0 0
        %2046 = vmatpush2.bf16.msra.mxu0 0
        %2047 = vmatprep.subr.bf16.mxu0 0
        %2048 = vmatpush2.bf16.msra.mxu0 0
        %2049 = vmatprep.subr.bf16.mxu0 0
        %2050 = vmatpush2.bf16.msra.mxu0 0
        %2051 = vmatprep.subr.bf16.mxu0 0
        %2052 = vmatpush2.bf16.msra.mxu0 0
        %2053 = vmatprep.subr.bf16.mxu0 0
        %2054 = vmatpush2.bf16.msra.mxu0 0
        %2055 = vmatprep.subr.bf16.mxu0 0
        %2056 = vmatpush2.bf16.msra.mxu0 0
        %2057 = vmatprep.subr.bf16.mxu0 0
        %2058 = vmatpush2.bf16.msra.mxu0 0
        %2059 = vmatprep.subr.bf16.mxu0 0
        %2060 = vmatpush2.bf16.msra.mxu0 0
        %2061 = vmatprep.mubr.bf16.mxu0 0
        %2062 = vmatmul.mubr.bf16.gmra.mxu0 %v2024
        %v2063 = vpop.f32.mrf.mxu0
        %v2064 = vadd.f32 0.0, %v2063
        %v2065 = vpop.f32.mrf.mxu0
        %v2066 = vpop.f32.mrf.mxu0
        %v2067 = vpop.f32.mrf.mxu0
        %2068 = vdwg.mxu0
        %v2070 = vsel %vm1734, %v1970, 0
        %v2073 = vsel %vm1979, %v1333, 0
        %2075 = vmatprep.subr.bf16.mxu0 0
        %2076 = vmatpush1.bf16.msra.mxu0 0
        %2077 = vmatprep.subr.bf16.mxu0 0
        %2078 = vmatpush1.bf16.msra.mxu0 0
        %2079 = vmatprep.subr.bf16.mxu0 0
        %2080 = vmatpush1.bf16.msra.mxu0 0
        %2081 = vmatprep.subr.bf16.mxu0 0
        %2082 = vmatpush1.bf16.msra.mxu0 0
        %2083 = vmatprep.subr.bf16.mxu0 0
        %2084 = vmatpush1.bf16.msra.mxu0 0
        %2085 = vmatprep.subr.bf16.mxu0 0
        %2086 = vmatpush1.bf16.msra.mxu0 0
        %2087 = vmatprep.subr.bf16.mxu0 0
        %2088 = vmatpush1.bf16.msra.mxu0 0
        %2089 = vmatprep.subr.bf16.mxu0 0
        %2090 = vmatpush1.bf16.msra.mxu0 %v2073
        %2091 = vmatprep.subr.bf16.mxu0 0
        %2092 = vmatpush2.bf16.msra.mxu0 0
        %2093 = vmatprep.subr.bf16.mxu0 0
        %2094 = vmatpush2.bf16.msra.mxu0 0
        %2095 = vmatprep.subr.bf16.mxu0 0
        %2096 = vmatpush2.bf16.msra.mxu0 0
        %2097 = vmatprep.subr.bf16.mxu0 0
        %2098 = vmatpush2.bf16.msra.mxu0 0
        %2099 = vmatprep.subr.bf16.mxu0 0
        %2100 = vmatpush2.bf16.msra.mxu0 0
        %2101 = vmatprep.subr.bf16.mxu0 0
        %2102 = vmatpush2.bf16.msra.mxu0 0
        %2103 = vmatprep.subr.bf16.mxu0 0
        %2104 = vmatpush2.bf16.msra.mxu0 0
        %2105 = vmatprep.subr.bf16.mxu0 0
        %2106 = vmatpush2.bf16.msra.mxu0 0
        %2107 = vmatprep.mubr.bf16.mxu0 0
        %2108 = vmatmul.mubr.bf16.gmra.mxu0 %v2070
        %v2109 = vpop.f32.mrf.mxu0
        %v2110 = vadd.f32 0.0, %v2109
        %v2111 = vpop.f32.mrf.mxu0
        %v2112 = vpop.f32.mrf.mxu0
        %v2113 = vpop.f32.mrf.mxu0
        %2114 = vdwg.mxu0
        %v2116 = vsel %vm1734, %v1971, 0
        %v2119 = vsel %vm1979, %v1336, 0
        %2121 = vmatprep.subr.bf16.mxu0 0
        %2122 = vmatpush1.bf16.msra.mxu0 0
        %2123 = vmatprep.subr.bf16.mxu0 0
        %2124 = vmatpush1.bf16.msra.mxu0 0
        %2125 = vmatprep.subr.bf16.mxu0 0
        %2126 = vmatpush1.bf16.msra.mxu0 0
        %2127 = vmatprep.subr.bf16.mxu0 0
        %2128 = vmatpush1.bf16.msra.mxu0 0
        %2129 = vmatprep.subr.bf16.mxu0 0
        %2130 = vmatpush1.bf16.msra.mxu0 0
        %2131 = vmatprep.subr.bf16.mxu0 0
        %2132 = vmatpush1.bf16.msra.mxu0 0
        %2133 = vmatprep.subr.bf16.mxu0 0
        %2134 = vmatpush1.bf16.msra.mxu0 0
        %2135 = vmatprep.subr.bf16.mxu0 0
        %2136 = vmatpush1.bf16.msra.mxu0 %v2119
        %2137 = vmatprep.subr.bf16.mxu0 0
        %2138 = vmatpush2.bf16.msra.mxu0 0
        %2139 = vmatprep.subr.bf16.mxu0 0
        %2140 = vmatpush2.bf16.msra.mxu0 0
        %2141 = vmatprep.subr.bf16.mxu0 0
        %2142 = vmatpush2.bf16.msra.mxu0 0
        %2143 = vmatprep.subr.bf16.mxu0 0
        %2144 = vmatpush2.bf16.msra.mxu0 0
        %2145 = vmatprep.subr.bf16.mxu0 0
        %2146 = vmatpush2.bf16.msra.mxu0 0
        %2147 = vmatprep.subr.bf16.mxu0 0
        %2148 = vmatpush2.bf16.msra.mxu0 0
        %2149 = vmatprep.subr.bf16.mxu0 0
        %2150 = vmatpush2.bf16.msra.mxu0 0
        %2151 = vmatprep.subr.bf16.mxu0 0
        %2152 = vmatpush2.bf16.msra.mxu0 0
        %2153 = vmatprep.mubr.bf16.mxu0 0
        %2154 = vmatmul.mubr.bf16.gmra.mxu0 %v2116
        %v2155 = vpop.f32.mrf.mxu0
        %v2156 = vadd.f32 0.0, %v2155
        %v2157 = vpop.f32.mrf.mxu0
        %v2158 = vpop.f32.mrf.mxu0
        %v2159 = vpop.f32.mrf.mxu0
        %2160 = vdwg.mxu0
        %v2162 = vsel %vm1734, %v1972, 0
        %v2165 = vsel %vm1979, %v1339, 0
        %2167 = vmatprep.subr.bf16.mxu0 0
        %2168 = vmatpush1.bf16.msra.mxu0 0
        %2169 = vmatprep.subr.bf16.mxu0 0
        %2170 = vmatpush1.bf16.msra.mxu0 0
        %2171 = vmatprep.subr.bf16.mxu0 0
        %2172 = vmatpush1.bf16.msra.mxu0 0
        %2173 = vmatprep.subr.bf16.mxu0 0
        %2174 = vmatpush1.bf16.msra.mxu0 0
        %2175 = vmatprep.subr.bf16.mxu0 0
        %2176 = vmatpush1.bf16.msra.mxu0 0
        %2177 = vmatprep.subr.bf16.mxu0 0
        %2178 = vmatpush1.bf16.msra.mxu0 0
        %2179 = vmatprep.subr.bf16.mxu0 0
        %2180 = vmatpush1.bf16.msra.mxu0 0
        %2181 = vmatprep.subr.bf16.mxu0 0
        %2182 = vmatpush1.bf16.msra.mxu0 %v2165
        %2183 = vmatprep.subr.bf16.mxu0 0
        %2184 = vmatpush2.bf16.msra.mxu0 0
        %2185 = vmatprep.subr.bf16.mxu0 0
        %2186 = vmatpush2.bf16.msra.mxu0 0
        %2187 = vmatprep.subr.bf16.mxu0 0
        %2188 = vmatpush2.bf16.msra.mxu0 0
        %2189 = vmatprep.subr.bf16.mxu0 0
        %2190 = vmatpush2.bf16.msra.mxu0 0
        %2191 = vmatprep.subr.bf16.mxu0 0
        %2192 = vmatpush2.bf16.msra.mxu0 0
        %2193 = vmatprep.subr.bf16.mxu0 0
        %2194 = vmatpush2.bf16.msra.mxu0 0
        %2195 = vmatprep.subr.bf16.mxu0 0
        %2196 = vmatpush2.bf16.msra.mxu0 0
        %2197 = vmatprep.subr.bf16.mxu0 0
        %2198 = vmatpush2.bf16.msra.mxu0 0
        %2199 = vmatprep.mubr.bf16.mxu0 0
        %2200 = vmatmul.mubr.bf16.gmra.mxu0 %v2162
        %v2201 = vpop.f32.mrf.mxu0
        %v2202 = vadd.f32 0.0, %v2201
        %v2203 = vpop.f32.mrf.mxu0
        %v2204 = vpop.f32.mrf.mxu0
        %v2205 = vpop.f32.mrf.mxu0
        %2206 = vdwg.mxu0
        %v2208 = vsel %vm1734, %v1973, 0
        %v2211 = vsel %vm1979, %v1342, 0
        %2213 = vmatprep.subr.bf16.mxu0 0
        %2214 = vmatpush1.bf16.msra.mxu0 0
        %2215 = vmatprep.subr.bf16.mxu0 0
        %2216 = vmatpush1.bf16.msra.mxu0 0
        %2217 = vmatprep.subr.bf16.mxu0 0
        %2218 = vmatpush1.bf16.msra.mxu0 0
        %2219 = vmatprep.subr.bf16.mxu0 0
        %2220 = vmatpush1.bf16.msra.mxu0 0
        %2221 = vmatprep.subr.bf16.mxu0 0
        %2222 = vmatpush1.bf16.msra.mxu0 0
        %2223 = vmatprep.subr.bf16.mxu0 0
        %2224 = vmatpush1.bf16.msra.mxu0 0
        %2225 = vmatprep.subr.bf16.mxu0 0
        %2226 = vmatpush1.bf16.msra.mxu0 0
        %2227 = vmatprep.subr.bf16.mxu0 0
        %2228 = vmatpush1.bf16.msra.mxu0 %v2211
        %2229 = vmatprep.subr.bf16.mxu0 0
        %2230 = vmatpush2.bf16.msra.mxu0 0
        %2231 = vmatprep.subr.bf16.mxu0 0
        %2232 = vmatpush2.bf16.msra.mxu0 0
        %2233 = vmatprep.subr.bf16.mxu0 0
        %2234 = vmatpush2.bf16.msra.mxu0 0
        %2235 = vmatprep.subr.bf16.mxu0 0
        %2236 = vmatpush2.bf16.msra.mxu0 0
        %2237 = vmatprep.subr.bf16.mxu0 0
        %2238 = vmatpush2.bf16.msra.mxu0 0
        %2239 = vmatprep.subr.bf16.mxu0 0
        %2240 = vmatpush2.bf16.msra.mxu0 0
        %2241 = vmatprep.subr.bf16.mxu0 0
        %2242 = vmatpush2.bf16.msra.mxu0 0
        %2243 = vmatprep.subr.bf16.mxu0 0
        %2244 = vmatpush2.bf16.msra.mxu0 0
        %2245 = vmatprep.mubr.bf16.mxu0 0
        %2246 = vmatmul.mubr.bf16.gmra.mxu0 %v2208
        %v2247 = vpop.f32.mrf.mxu0
        %v2248 = vadd.f32 0.0, %v2247
        %v2249 = vpop.f32.mrf.mxu0
        %v2250 = vpop.f32.mrf.mxu0
        %v2251 = vpop.f32.mrf.mxu0
        %2252 = vdwg.mxu0
        %v2254 = vsel %vm1734, %v1974, 0
        %v2257 = vsel %vm1979, %v1345, 0
        %2259 = vmatprep.subr.bf16.mxu0 0
        %2260 = vmatpush1.bf16.msra.mxu0 0
        %2261 = vmatprep.subr.bf16.mxu0 0
        %2262 = vmatpush1.bf16.msra.mxu0 0
        %2263 = vmatprep.subr.bf16.mxu0 0
        %2264 = vmatpush1.bf16.msra.mxu0 0
        %2265 = vmatprep.subr.bf16.mxu0 0
        %2266 = vmatpush1.bf16.msra.mxu0 0
        %2267 = vmatprep.subr.bf16.mxu0 0
        %2268 = vmatpush1.bf16.msra.mxu0 0
        %2269 = vmatprep.subr.bf16.mxu0 0
        %2270 = vmatpush1.bf16.msra.mxu0 0
        %2271 = vmatprep.subr.bf16.mxu0 0
        %2272 = vmatpush1.bf16.msra.mxu0 0
        %2273 = vmatprep.subr.bf16.mxu0 0
        %2274 = vmatpush1.bf16.msra.mxu0 %v2257
        %2275 = vmatprep.subr.bf16.mxu0 0
        %2276 = vmatpush2.bf16.msra.mxu0 0
        %2277 = vmatprep.subr.bf16.mxu0 0
        %2278 = vmatpush2.bf16.msra.mxu0 0
        %2279 = vmatprep.subr.bf16.mxu0 0
        %2280 = vmatpush2.bf16.msra.mxu0 0
        %2281 = vmatprep.subr.bf16.mxu0 0
        %2282 = vmatpush2.bf16.msra.mxu0 0
        %2283 = vmatprep.subr.bf16.mxu0 0
        %2284 = vmatpush2.bf16.msra.mxu0 0
        %2285 = vmatprep.subr.bf16.mxu0 0
        %2286 = vmatpush2.bf16.msra.mxu0 0
        %2287 = vmatprep.subr.bf16.mxu0 0
        %2288 = vmatpush2.bf16.msra.mxu0 0
        %2289 = vmatprep.subr.bf16.mxu0 0
        %2290 = vmatpush2.bf16.msra.mxu0 0
        %2291 = vmatprep.mubr.bf16.mxu0 0
        %2292 = vmatmul.mubr.bf16.gmra.mxu0 %v2254
        %v2293 = vpop.f32.mrf.mxu0
        %v2294 = vadd.f32 0.0, %v2293
        %v2295 = vpop.f32.mrf.mxu0
        %v2296 = vpop.f32.mrf.mxu0
        %v2297 = vpop.f32.mrf.mxu0
        %2298 = vdwg.mxu0
        %v2300 = vsel %vm1734, %v1975, 0
        %v2303 = vsel %vm1979, %v1348, 0
        %2305 = vmatprep.subr.bf16.mxu0 0
        %2306 = vmatpush1.bf16.msra.mxu0 0
        %2307 = vmatprep.subr.bf16.mxu0 0
        %2308 = vmatpush1.bf16.msra.mxu0 0
        %2309 = vmatprep.subr.bf16.mxu0 0
        %2310 = vmatpush1.bf16.msra.mxu0 0
        %2311 = vmatprep.subr.bf16.mxu0 0
        %2312 = vmatpush1.bf16.msra.mxu0 0
        %2313 = vmatprep.subr.bf16.mxu0 0
        %2314 = vmatpush1.bf16.msra.mxu0 0
        %2315 = vmatprep.subr.bf16.mxu0 0
        %2316 = vmatpush1.bf16.msra.mxu0 0
        %2317 = vmatprep.subr.bf16.mxu0 0
        %2318 = vmatpush1.bf16.msra.mxu0 0
        %2319 = vmatprep.subr.bf16.mxu0 0
        %2320 = vmatpush1.bf16.msra.mxu0 %v2303
        %2321 = vmatprep.subr.bf16.mxu0 0
        %2322 = vmatpush2.bf16.msra.mxu0 0
        %2323 = vmatprep.subr.bf16.mxu0 0
        %2324 = vmatpush2.bf16.msra.mxu0 0
        %2325 = vmatprep.subr.bf16.mxu0 0
        %2326 = vmatpush2.bf16.msra.mxu0 0
        %2327 = vmatprep.subr.bf16.mxu0 0
        %2328 = vmatpush2.bf16.msra.mxu0 0
        %2329 = vmatprep.subr.bf16.mxu0 0
        %2330 = vmatpush2.bf16.msra.mxu0 0
        %2331 = vmatprep.subr.bf16.mxu0 0
        %2332 = vmatpush2.bf16.msra.mxu0 0
        %2333 = vmatprep.subr.bf16.mxu0 0
        %2334 = vmatpush2.bf16.msra.mxu0 0
        %2335 = vmatprep.subr.bf16.mxu0 0
        %2336 = vmatpush2.bf16.msra.mxu0 0
        %2337 = vmatprep.mubr.bf16.mxu0 0
        %2338 = vmatmul.mubr.bf16.gmra.mxu0 %v2300
        %v2339 = vpop.f32.mrf.mxu0
        %v2340 = vadd.f32 0.0, %v2339
        %v2341 = vpop.f32.mrf.mxu0
        %v2342 = vpop.f32.mrf.mxu0
        %v2343 = vpop.f32.mrf.mxu0
        %2344 = vdwg.mxu0
        %v2345 = vadd.f32 %v1960, %v2018
        %v2346 = vadd.f32 %v1961, %v2064
        %v2347 = vadd.f32 %v1962, %v2110
        %v2348 = vadd.f32 %v1963, %v2156
        %v2349 = vadd.f32 %v1964, %v2202
        %v2350 = vadd.f32 %v1965, %v2248
        %v2351 = vadd.f32 %v1966, %v2294
        %v2352 = vadd.f32 %v1967, %v2340
        %2353 = vst.msk [vmem:[#allocation5] sm:$0xff] %vm1357, %v2345
        %2354 = vst.msk [vmem:[#allocation5 + $0x8] sm:$0xff] %vm1357, %v2346
        %2355 = vst.msk [vmem:[#allocation5 + $0x10] sm:$0xff] %vm1357, %v2347
        %2356 = vst.msk [vmem:[#allocation5 + $0x18] sm:$0xff] %vm1357, %v2348
        %2357 = vst.msk [vmem:[#allocation5 + $0x20] sm:$0xff] %vm1357, %v2349
        %2358 = vst.msk [vmem:[#allocation5 + $0x28] sm:$0xff] %vm1357, %v2350
        %2359 = vst.msk [vmem:[#allocation5 + $0x30] sm:$0xff] %vm1357, %v2351
        %2360 = vst.msk [vmem:[#allocation5 + $0x38] sm:$0xff] %vm1357, %v2352
        %2361 = vst.msk [vmem:[#allocation3] sm:$0xff] %vm1903, %v1759
        %2362 = vst.msk [vmem:[#allocation3 + $0x8] sm:$0xff] %vm1903, %v1760
        %2363 = vst.msk [vmem:[#allocation3 + $0x10] sm:$0xff] %vm1903, %v1761
        %2364 = vst.msk [vmem:[#allocation3 + $0x18] sm:$0xff] %vm1903, %v1762
        %2365 = vst.msk [vmem:[#allocation3 + $0x20] sm:$0xff] %vm1903, %v1763
        %2366 = vst.msk [vmem:[#allocation3 + $0x28] sm:$0xff] %vm1903, %v1764
        %2367 = vst.msk [vmem:[#allocation3 + $0x30] sm:$0xff] %vm1903, %v1765
        %2368 = vst.msk [vmem:[#allocation3 + $0x38] sm:$0xff] %vm1903, %v1766
        // Predicated region
        $region85: #{tpu_custom_call.1} parent=51 // pred_check
          %p2369 = pneg %p471
        $region86: #{tpu_custom_call.1} parent=51 // pred_check_branch
          %2371 = sbr.rel (%p2369) target = $region88
        $region87: #{tpu_custom_call.1} parent=51 // pred_region
          %v2372 = vld [vmem:[#allocation5] sm:$0xff]
          %v2373 = vld [vmem:[#allocation5 + $0x8] sm:$0xff]
          %v2374 = vld [vmem:[#allocation5 + $0x10] sm:$0xff]
          %v2375 = vld [vmem:[#allocation5 + $0x18] sm:$0xff]
          %v2376 = vld [vmem:[#allocation5 + $0x20] sm:$0xff]
          %v2377 = vld [vmem:[#allocation5 + $0x28] sm:$0xff]
          %v2378 = vld [vmem:[#allocation5 + $0x30] sm:$0xff]
          %v2379 = vld [vmem:[#allocation5 + $0x38] sm:$0xff]
          %v2380 = vld [vmem:[#allocation4] sm:$0xff]
          %v2381 = vld [vmem:[#allocation4 + $0x8] sm:$0xff]
          %v2382 = vld [vmem:[#allocation4 + $0x10] sm:$0xff]
          %v2383 = vld [vmem:[#allocation4 + $0x18] sm:$0xff]
          %v2384 = vld [vmem:[#allocation4 + $0x20] sm:$0xff]
          %v2385 = vld [vmem:[#allocation4 + $0x28] sm:$0xff]
          %v2386 = vld [vmem:[#allocation4 + $0x30] sm:$0xff]
          %v2387 = vld [vmem:[#allocation4 + $0x38] sm:$0xff]
          %v2388 = vrcp.pop %v2380
          %v2389 = vrcp.pop %v2381
          %v2390 = vrcp.pop %v2382
          %v2391 = vrcp.pop %v2383
          %v2392 = vrcp.pop %v2384
          %v2393 = vrcp.pop %v2385
          %v2394 = vrcp.pop %v2386
          %v2395 = vrcp.pop %v2387
          %2397 = vset.pattern.permute.xlu0 0
          %2398 = vperm.xlu0 %2397, %v2388
          %v2399 = vpop.permute.xlu0 %2398
          %2402 = vset.pattern.permute.xlu0 0
          %2403 = vperm.xlu0 %2402, %v2389
          %v2404 = vpop.permute.xlu0 %2403
          %2407 = vset.pattern.permute.xlu0 0
          %2408 = vperm.xlu0 %2407, %v2390
          %v2409 = vpop.permute.xlu0 %2408
          %2412 = vset.pattern.permute.xlu0 0
          %2413 = vperm.xlu0 %2412, %v2391
          %v2414 = vpop.permute.xlu0 %2413
          %2417 = vset.pattern.permute.xlu0 0
          %2418 = vperm.xlu0 %2417, %v2392
          %v2419 = vpop.permute.xlu0 %2418
          %2422 = vset.pattern.permute.xlu0 0
          %2423 = vperm.xlu0 %2422, %v2393
          %v2424 = vpop.permute.xlu0 %2423
          %2427 = vset.pattern.permute.xlu0 0
          %2428 = vperm.xlu0 %2427, %v2394
          %v2429 = vpop.permute.xlu0 %2428
          %2432 = vset.pattern.permute.xlu0 0
          %2433 = vperm.xlu0 %2432, %v2395
          %v2434 = vpop.permute.xlu0 %2433
          %v2436 = vmul.f32 %v2372, %v2399
          %v2437 = vmul.f32 %v2373, %v2404
          %v2438 = vmul.f32 %v2374, %v2409
          %v2439 = vmul.f32 %v2375, %v2414
          %v2440 = vmul.f32 %v2376, %v2419
          %v2441 = vmul.f32 %v2377, %v2424
          %v2442 = vmul.f32 %v2378, %v2429
          %v2443 = vmul.f32 %v2379, %v2434
          %v2444 = vpack.c.bf16 %v2436, %v2436
          %v2445 = vpack.c.bf16 %v2437, %v2437
          %v2446 = vpack.c.bf16 %v2438, %v2438
          %v2447 = vpack.c.bf16 %v2439, %v2439
          %v2448 = vpack.c.bf16 %v2440, %v2440
          %v2449 = vpack.c.bf16 %v2441, %v2441
          %v2450 = vpack.c.bf16 %v2442, %v2442
          %v2451 = vpack.c.bf16 %v2443, %v2443
          %v2452 = vcombine.low %v2444, %v2448
          %v2454 = vunpack.c.l.s4 1983009808
          %v2455 = vunpack.c.0.s8 %v2454
          %v2456 = vlaneseq
          %v2457 = vshrl.u32 %v2456, 7
          %v2458 = vsub.s32 %v2455, %v2457
          %v2459 = vrot.slane %v2452, %v2458
          %v2460 = vcombine.low %v2446, %v2450
          %v2462 = vunpack.c.l.s4 1983009808
          %v2463 = vunpack.c.0.s8 %v2462
          %v2464 = vlaneseq
          %v2465 = vshrl.u32 %v2464, 7
          %v2466 = vsub.s32 %v2463, %v2465
          %v2467 = vrot.slane %v2460, %v2466
          %v2468 = vcombine.low %v2459, %v2467
          %v2469 = vcombine.high %v2459, %v2467
          %v2471 = vunpack.c.l.s4 1934713408
          %v2472 = vunpack.c.0.s8 %v2471
          %v2473 = vlaneseq
          %v2474 = vshrl.u32 %v2473, 7
          %v2475 = vsub.s32 %v2472, %v2474
          %v2476 = vrot.slane %v2468, %v2475
          %v2478 = vunpack.c.l.s4 1934713408
          %v2479 = vunpack.c.0.s8 %v2478
          %v2480 = vlaneseq
          %v2481 = vshrl.u32 %v2480, 7
          %v2482 = vsub.s32 %v2479, %v2481
          %v2483 = vrot.slane %v2469, %v2482
          %v2484 = vcombine.high %v2476, 0
          %v2485 = vcombine.high %v2483, 0
          %v2486 = vcombine.low %v2445, %v2449
          %v2488 = vunpack.c.l.s4 1983009808
          %v2489 = vunpack.c.0.s8 %v2488
          %v2490 = vlaneseq
          %v2491 = vshrl.u32 %v2490, 7
          %v2492 = vsub.s32 %v2489, %v2491
          %v2493 = vrot.slane %v2486, %v2492
          %v2494 = vcombine.low %v2447, %v2451
          %v2496 = vunpack.c.l.s4 1983009808
          %v2497 = vunpack.c.0.s8 %v2496
          %v2498 = vlaneseq
          %v2499 = vshrl.u32 %v2498, 7
          %v2500 = vsub.s32 %v2497, %v2499
          %v2501 = vrot.slane %v2494, %v2500
          %v2502 = vcombine.low %v2493, %v2501
          %v2503 = vcombine.high %v2493, %v2501
          %v2505 = vunpack.c.l.s4 1934713408
          %v2506 = vunpack.c.0.s8 %v2505
          %v2507 = vlaneseq
          %v2508 = vshrl.u32 %v2507, 7
          %v2509 = vsub.s32 %v2506, %v2508
          %v2510 = vrot.slane %v2502, %v2509
          %v2512 = vunpack.c.l.s4 1934713408
          %v2513 = vunpack.c.0.s8 %v2512
          %v2514 = vlaneseq
          %v2515 = vshrl.u32 %v2514, 7
          %v2516 = vsub.s32 %v2513, %v2515
          %v2517 = vrot.slane %v2503, %v2516
          %v2518 = vcombine.high %v2510, 0
          %v2519 = vcombine.high %v2517, 0
          %v2522 = vpack.i.b16 %v2510, %v2476
          %v2524 = vshrl.u32 %v2476, 16
          %v2525 = vshrl.u32 %v2510, 16
          %v2526 = vpack.i.b16 %v2525, %v2524
          %v2530 = vpack.i.b16 %v2518, %v2484
          %v2532 = vshrl.u32 %v2484, 16
          %v2533 = vshrl.u32 %v2518, 16
          %v2534 = vpack.i.b16 %v2533, %v2532
          %v2538 = vpack.i.b16 %v2517, %v2483
          %v2540 = vshrl.u32 %v2483, 16
          %v2541 = vshrl.u32 %v2517, 16
          %v2542 = vpack.i.b16 %v2541, %v2540
          %v2546 = vpack.i.b16 %v2519, %v2485
          %v2548 = vshrl.u32 %v2485, 16
          %v2549 = vshrl.u32 %v2519, 16
          %v2550 = vpack.i.b16 %v2549, %v2548
          %v2552 = vcombine.low %v2522, %v2538
          %v2554 = vunpack.c.l.s4 1983009808
          %v2555 = vunpack.c.0.s8 %v2554
          %v2556 = vlaneseq
          %v2557 = vshrl.u32 %v2556, 7
          %v2558 = vsub.s32 %v2555, %v2557
          %v2559 = vrot.slane %v2552, %v2558
          %v2560 = vcombine.low %v2530, %v2546
          %v2562 = vunpack.c.l.s4 1983009808
          %v2563 = vunpack.c.0.s8 %v2562
          %v2564 = vlaneseq
          %v2565 = vshrl.u32 %v2564, 7
          %v2566 = vsub.s32 %v2563, %v2565
          %v2567 = vrot.slane %v2560, %v2566
          %v2568 = vcombine.low %v2559, %v2567
          %v2569 = vcombine.high %v2559, %v2567
          %v2571 = vunpack.c.l.s4 1934713408
          %v2572 = vunpack.c.0.s8 %v2571
          %v2573 = vlaneseq
          %v2574 = vshrl.u32 %v2573, 7
          %v2575 = vsub.s32 %v2572, %v2574
          %v2576 = vrot.slane %v2568, %v2575
          %v2578 = vunpack.c.l.s4 1934713408
          %v2579 = vunpack.c.0.s8 %v2578
          %v2580 = vlaneseq
          %v2581 = vshrl.u32 %v2580, 7
          %v2582 = vsub.s32 %v2579, %v2581
          %v2583 = vrot.slane %v2569, %v2582
          %v2584 = vcombine.high %v2576, 0
          %v2585 = vcombine.high %v2583, 0
          %v2586 = vcombine.low %v2526, %v2542
          %v2588 = vunpack.c.l.s4 1983009808
          %v2589 = vunpack.c.0.s8 %v2588
          %v2590 = vlaneseq
          %v2591 = vshrl.u32 %v2590, 7
          %v2592 = vsub.s32 %v2589, %v2591
          %v2593 = vrot.slane %v2586, %v2592
          %v2594 = vcombine.low %v2534, %v2550
          %v2596 = vunpack.c.l.s4 1983009808
          %v2597 = vunpack.c.0.s8 %v2596
          %v2598 = vlaneseq
          %v2599 = vshrl.u32 %v2598, 7
          %v2600 = vsub.s32 %v2597, %v2599
          %v2601 = vrot.slane %v2594, %v2600
          %v2602 = vcombine.low %v2593, %v2601
          %v2603 = vcombine.high %v2593, %v2601
          %v2605 = vunpack.c.l.s4 1934713408
          %v2606 = vunpack.c.0.s8 %v2605
          %v2607 = vlaneseq
          %v2608 = vshrl.u32 %v2607, 7
          %v2609 = vsub.s32 %v2606, %v2608
          %v2610 = vrot.slane %v2602, %v2609
          %v2612 = vunpack.c.l.s4 1934713408
          %v2613 = vunpack.c.0.s8 %v2612
          %v2614 = vlaneseq
          %v2615 = vshrl.u32 %v2614, 7
          %v2616 = vsub.s32 %v2613, %v2615
          %v2617 = vrot.slane %v2603, %v2616
          %v2618 = vcombine.high %v2610, 0
          %v2619 = vcombine.high %v2617, 0
          %v2622 = vpack.i.b16 %v2610, %v2576
          %v2623 = vshrl.u32 %v2576, 16
          %v2624 = vshrl.u32 %v2610, 16
          %v2625 = vpack.i.b16 %v2624, %v2623
          %v2628 = vpack.i.b16 %v2618, %v2584
          %v2629 = vshrl.u32 %v2584, 16
          %v2630 = vshrl.u32 %v2618, 16
          %v2631 = vpack.i.b16 %v2630, %v2629
          %v2634 = vpack.i.b16 %v2617, %v2583
          %v2635 = vshrl.u32 %v2583, 16
          %v2636 = vshrl.u32 %v2617, 16
          %v2637 = vpack.i.b16 %v2636, %v2635
          %v2640 = vpack.i.b16 %v2619, %v2585
          %v2641 = vshrl.u32 %v2585, 16
          %v2642 = vshrl.u32 %v2619, 16
          %v2643 = vpack.i.b16 %v2642, %v2641
          %2644 = vrot.lane.b32.xlu0 %v2625, 4
          %v2645 = vpop.permute.xlu0 %2644
          %2646 = vrot.lane.b32.xlu0 %v2628, 8
          %v2647 = vpop.permute.xlu0 %2646
          %2648 = vrot.lane.b32.xlu0 %v2631, 12
          %v2649 = vpop.permute.xlu0 %2648
          %2650 = vrot.lane.b32.xlu0 %v2634, 16
          %v2651 = vpop.permute.xlu0 %2650
          %2652 = vrot.lane.b32.xlu0 %v2637, 20
          %v2653 = vpop.permute.xlu0 %2652
          %2654 = vrot.lane.b32.xlu0 %v2640, 24
          %v2655 = vpop.permute.xlu0 %2654
          %2656 = vrot.lane.b32.xlu0 %v2643, 28
          %v2657 = vpop.permute.xlu0 %2656
          %v2660 = vsel %vm1357, %v2622, %v2645
          %v2662 = vsel %vm1734, %v2660, %v2647
          %vm2663 = vcmask 97280
          %v2665 = vsel %vm2663, %v2662, %v2649
          %vm2666 = vcmask 130048
          %v2668 = vsel %vm2666, %v2665, %v2651
          %vm2669 = vcmask 162816
          %v2671 = vsel %vm2669, %v2668, %v2653
          %vm2672 = vcmask 195584
          %v2674 = vsel %vm2672, %v2671, %v2655
          %vm2675 = vcmask 228352
          %v2677 = vsel %vm2675, %v2674, %v2657
          %v2678 = vld [vmem:[#allocation17] sm:$0xf]
          %v2679 = vld [vmem:[#allocation17 + $0x4] sm:$0xf]
          %v2680 = vld [vmem:[#allocation17 + $0x8] sm:$0xf]
          %v2681 = vld [vmem:[#allocation17 + $0xc] sm:$0xf]
          %v2682 = vld [vmem:[%s7] sm:$0x1]
          %v2684 = vlaneseq
          %v2685 = vshrl.u32 %v2684, 7
          %v2686 = vsub.s32 0, %v2685
          %v2687 = vrot.slane %v2682, %v2686
          %v2693 = vunpack.c.l.b16 %v2678
          %v2694 = vunpack.c.l.b16 %v2679
          %v2695 = vunpack.c.l.b16 %v2680
          %v2696 = vunpack.c.l.b16 %v2681
          %v2697 = vpack.c.b16 %v2694, %v2693
          %v2698 = vpack.c.b16 %v2696, %v2695
          %v2701 = vsel %vm814, %v2677, 0
          %2703 = vmatprep.subr.bf16.mxu0 0
          %2704 = vmatpush1.bf16.msra.mxu0 0
          %2705 = vmatprep.subr.bf16.mxu0 0
          %2706 = vmatpush1.bf16.msra.mxu0 0
          %2707 = vmatprep.subr.bf16.mxu0 0
          %2708 = vmatpush1.bf16.msra.mxu0 0
          %2709 = vmatprep.subr.bf16.mxu0 0
          %2710 = vmatpush1.bf16.msra.mxu0 0
          %2711 = vmatprep.subr.bf16.mxu0 0
          %2712 = vmatpush1.bf16.msra.mxu0 0
          %2713 = vmatprep.subr.bf16.mxu0 0
          %2714 = vmatpush1.bf16.msra.mxu0 0
          %2715 = vmatprep.subr.bf16.mxu0 0
          %2716 = vmatpush1.bf16.msra.mxu0 %v2698
          %2717 = vmatprep.subr.bf16.mxu0 0
          %2718 = vmatpush1.bf16.msra.mxu0 %v2697
          %2719 = vmatprep.subr.bf16.mxu0 0
          %2720 = vmatpush2.bf16.msra.mxu0 0
          %2721 = vmatprep.subr.bf16.mxu0 0
          %2722 = vmatpush2.bf16.msra.mxu0 0
          %2723 = vmatprep.subr.bf16.mxu0 0
          %2724 = vmatpush2.bf16.msra.mxu0 0
          %2725 = vmatprep.subr.bf16.mxu0 0
          %2726 = vmatpush2.bf16.msra.mxu0 0
          %2727 = vmatprep.subr.bf16.mxu0 0
          %2728 = vmatpush2.bf16.msra.mxu0 0
          %2729 = vmatprep.subr.bf16.mxu0 0
          %2730 = vmatpush2.bf16.msra.mxu0 0
          %2731 = vmatprep.subr.bf16.mxu0 0
          %2732 = vmatpush2.bf16.msra.mxu0 0
          %2733 = vmatprep.subr.bf16.mxu0 0
          %2734 = vmatpush2.bf16.msra.mxu0 0
          %2735 = vmatprep.mubr.bf16.mxu0 0
          %2736 = vmatmul.mubr.bf16.gmra.mxu0 %v2701
          %v2737 = vpop.f32.mrf.mxu0
          %v2738 = vadd.f32 %v2687, %v2737
          %v2739 = vpop.f32.mrf.mxu0
          %v2740 = vpop.f32.mrf.mxu0
          %v2741 = vpop.f32.mrf.mxu0
          %2742 = vdwg.mxu0
          %2743 = vst.msk [vmem:[%s467] sm:$0xff] %vm814, %v2738
        $region88: #{tpu_custom_call.1} parent=51 // pred_fallthru
          _
        %s2744 = sand.u32 %s237, 1
        %s2745 = scalar_lea.sflag [#allocation8], %s2744
        %s2746 = sand.u32 %s237, 1
        %s2747 = smul.addr %s2746, 8
        %s2748 = scalar_lea.vmem [#allocation18], %s2747
        // Predicated region
        $region89: #{tpu_custom_call.1} parent=51 // pred_check
          %p2749 = pneg %p247
        $region90: #{tpu_custom_call.1} parent=51 // pred_check_branch
          %2751 = sbr.rel (%p2749) target = $region92
        $region91: #{tpu_custom_call.1} parent=51 // pred_region
          %s2753 = ssub.s32 128, 128
          %2754 = vsyncadd %s2745, %s2753
          %s2755 = smul.addr %s34, 128
          %s2756 = scalar_lea.hbm %s8, %s2755
          %s2758 = sshll.u32 %s2748, 4
          %s2759 = int_to_ptr.vmem [resolvable:$true] %s2758
          %2761 = dma.vmem_to_hbm [thread:$0]  %s2759, 128, %s2756, %s2745
        $region92: #{tpu_custom_call.1} parent=51 // pred_fallthru
          _
      $region52: #{tpu_custom_call.1} parent=5 // pred_fallthru
        _
      %p2762 = scmp.le.s32.totalorder 2, %s25
      // Predicated region
      $region93: #{tpu_custom_call.1} parent=5 // pred_check
        %p2763 = pneg %p2762
      $region94: #{tpu_custom_call.1} parent=5 // pred_check_branch
        %2765 = sbr.rel (%p2763) target = $region96
      $region95: #{tpu_custom_call.1} parent=5 // pred_region
        %s2766 = ssub.s32 %s25, 2
        // Predicated region
        $region97: #{tpu_custom_call.1} parent=95 // pred_check
          %p2767 = pneg %p253
        $region98: #{tpu_custom_call.1} parent=95 // pred_check_branch
          %2769 = sbr.rel (%p2767) target = $region100
        $region99: #{tpu_custom_call.1} parent=95 // pred_region
          %s2770 = sand.u32 %s238, 1
          %s2771 = scalar_lea.sflag [#allocation8], %s2770
          %s2772 = sand.u32 %s238, 1
          %s2773 = smul.addr %s2772, 8
          %s2774 = scalar_lea.vmem [#allocation18], %s2773
          %2775 = dma.done %s2771, 128
        $region100: #{tpu_custom_call.1} parent=95 // pred_fallthru
          _
      $region96: #{tpu_custom_call.1} parent=5 // pred_fallthru
        _
    $region6: #{tpu_custom_call.1} parent=1 // loop_footer
      %s29 = sadd.s32 1, %s25
    $region7: #{tpu_custom_call.1} parent=1 // loop_footer_branch
      %24 = sbr.rel target = $region3
    $region8: #{tpu_custom_call.1} parent=1 // loop_exit
      _
    %2776 = vsyncpa [#allocation7], 1
    %s2777 = scalar_lea.sflag [#allocation7], 1
    %2778 = vsyncpa %s2777, 1
    %2779 = vsyncpa [#allocation10], 1
    %s2780 = scalar_lea.sflag [#allocation10], 1
    %2781 = vsyncpa %s2780, 1
    %2782 = vsyncpa [#allocation13], 1
    %2783 = vsyncpa [#allocation16], 1
    %2784 = vsyncpa [#allocation8], 1
    %s2785 = scalar_lea.sflag [#allocation8], 1
    %2786 = vsyncpa %s2785, 1

</llo_original>
